<compile_context>
chip_gen: v7x
topology: tpu7x:2x2x1
jax: 0.10.0
libtpu: 0.0.40
codegen_flags: <defaults>
</compile_context>

<pallas_src>
import jax
import jax.numpy as jnp
from jax import lax
from jax.experimental import pallas as pl
from jax.experimental.pallas import tpu as pltpu

# ----- logical sizes (match the PyTorch module) -----
NODE_INPUT_DIM = 15
OUTPUT_DIM = 12
HIDDEN = 64
NUM_STEP_PROP = 6
NUM_STEP_SET2SET = 6

# ----- padded, lane/sublane-dense sizes used inside the kernel -----
F_IN_P = 128     # node_input_dim padded to a full lane width
HP = 128         # node_hidden_dim padded
OUT_P = 128      # output_dim padded (sliced back to 12 outside)
NP = 128         # num nodes padded
BP = 8           # num graphs padded (sublane-friendly)

BF16 = jnp.bfloat16
VMEM_SPEC = pl.BlockSpec(memory_space=pltpu.MemorySpace.VMEM)


# ------------------------------ fused kernel -------------------------------

def _gcn_forward_kernel(x_ref, a_ref, mask_ref,
                        w0_ref, b0_ref, wc_ref, bc_ref,
                        wih_ref, blstm_ref,
                        w1_ref, b1_ref, w2_ref, b2_ref,
                        out_ref):
    # Load every operand exactly once; they stay VMEM/vreg resident across all
    # (unrolled) steps. Weight matrices arrive pre-cast to bf16.
    x = x_ref[...].astype(BF16)
    a_norm = a_ref[...].astype(BF16)
    mask = mask_ref[...]
    w0, b0 = w0_ref[...], b0_ref[...]
    wc, bc = wc_ref[...], bc_ref[...]
    w_ih, b_lstm = wih_ref[...], blstm_ref[...]
    w1, b1 = w1_ref[...], b1_ref[...]
    w2, b2 = w2_ref[...], b2_ref[...]

    # Hoisted loop-invariant broadcasts (JAX does not CSE broadcast_in_dim)
    # and the softmax mask bias.
    b0_b = jnp.broadcast_to(b0, (NP, HP))
    bc_b = jnp.broadcast_to(bc, (NP, HP))
    b_lstm_b = jnp.broadcast_to(b_lstm, (BP, 4 * HP))
    b1_b = jnp.broadcast_to(b1, (BP, HP))
    b2_b = jnp.broadcast_to(b2, (BP, OUT_P))
    mask_bias = jnp.where(mask > 0, jnp.float32(0.0), jnp.float32(-1e30))

    # lin0 + relu (bf16 operands, f32 accumulate; elementwise stays f32)
    nodes = jnp.maximum(
        jnp.dot(x, w0, preferred_element_type=jnp.float32) + b0_b, 0.0)

    # 6x GCNConv propagation: relu(A_norm @ (h @ W) + b)
    def prop_body(_, h_nodes):
        hw = jnp.dot(h_nodes.astype(BF16), wc,
                     preferred_element_type=jnp.float32)
        return jnp.maximum(
            jnp.dot(a_norm, hw.astype(BF16),
                    preferred_element_type=jnp.float32) + bc_b, 0.0)

    nodes = lax.fori_loop(0, NUM_STEP_PROP, prop_body, nodes, unroll=True)

    # Cast + transpose once (loop-invariant), outside the Set2Set loop.
    nodes_bf = nodes.astype(BF16)
    nodes_t_bf = nodes_bf.T

    # Set2Set pooling: 6 steps of (LSTM cell -> masked softmax attention ->
    # weighted readout -> q_star = [q, r]).
    q_star0 = jnp.zeros((BP, 2 * HP), jnp.float32)
    h0 = jnp.zeros((BP, HP), jnp.float32)
    c0 = jnp.zeros((BP, HP), jnp.float32)

    def s2s_body(_, carry):
        q_star, h, c = carry
        # w_hh is folded into the q-rows of w_ih at padding time, valid because
        # q_star[:, :HP] == h at every step (both zero at step 0).
        gates = (jnp.dot(q_star.astype(BF16), w_ih,
                         preferred_element_type=jnp.float32) + b_lstm_b)
        # Gate-major padded layout -> slices fall on 128-lane tile boundaries.
        # PyTorch gate order: i, f, g, o.
        i_g = jax.nn.sigmoid(gates[:, 0 * HP:1 * HP])
        f_g = jax.nn.sigmoid(gates[:, 1 * HP:2 * HP])
        g_g = jnp.tanh(gates[:, 2 * HP:3 * HP])
        o_g = jax.nn.sigmoid(gates[:, 3 * HP:4 * HP])
        c_new = f_g * c + i_g * g_g
        h_new = o_g * jnp.tanh(c_new)
        q = h_new

        # scores[b, n] = <q[b], nodes[n]>, masked to the nodes of graph b.
        scores = jnp.dot(q.astype(BF16), nodes_t_bf,
                         preferred_element_type=jnp.float32) + mask_bias
        m = jnp.max(scores, axis=-1, keepdims=True)
        e = jnp.exp(scores - m) * mask
        denom = jnp.sum(e, axis=-1, keepdims=True) + jnp.float32(1e-16)
        att = e * pl.reciprocal(denom, approx=True)
        r = jnp.dot(att.astype(BF16), nodes_bf,
                    preferred_element_type=jnp.float32)

        # In-kernel concat; both halves are 128-lane aligned.
        q_star_new = jnp.concatenate([q, r], axis=-1)
        return (q_star_new, h_new, c_new)

    q_star, _, _ = lax.fori_loop(0, NUM_STEP_SET2SET, s2s_body,
                                 (q_star0, h0, c0), unroll=True)

    # lin1 + relu, lin2
    y = jnp.maximum(
        jnp.dot(q_star.astype(BF16), w1,
                preferred_element_type=jnp.float32) + b1_b, 0.0)
    y = jnp.dot(y.astype(BF16), w2, preferred_element_type=jnp.float32) + b2_b
    out_ref[...] = y


def gcn_forward(padded_params, x_pad, a_pad, mask_pad):
    return pl.pallas_call(
        _gcn_forward_kernel,
        out_shape=jax.ShapeDtypeStruct((BP, OUT_P), jnp.float32),
        in_specs=[VMEM_SPEC] * 13,
        out_specs=VMEM_SPEC,
        compiler_params=pltpu.CompilerParams(
            vmem_limit_bytes=32 * 1024 * 1024),
    )(x_pad, a_pad, mask_pad,
      padded_params["w0"], padded_params["b0"],
      padded_params["wc"], padded_params["bc"],
      padded_params["w_ih"], padded_params["b_lstm"],
      padded_params["w1"], padded_params["b1"],
      padded_params["w2"], padded_params["b2"])


# ------------------------- params & padding helpers -------------------------

def init_params(key):
    ks = jax.random.split(key, 12)
    s = 0.1
    return {
        # weights stored as (in, out) == torch weight transposed
        "w0": jax.random.normal(ks[0], (NODE_INPUT_DIM, HIDDEN), jnp.float32) * s,
        "b0": jax.random.normal(ks[1], (1, HIDDEN), jnp.float32) * s,
        "wc": jax.random.normal(ks[2], (HIDDEN, HIDDEN), jnp.float32) * s,
        "bc": jax.random.normal(ks[3], (1, HIDDEN), jnp.float32) * s,
        # LSTM(input=2H, hidden=H): W_ih^T (2H,4H), W_hh^T (H,4H), b=b_ih+b_hh
        "w_ih": jax.random.normal(ks[4], (2 * HIDDEN, 4 * HIDDEN), jnp.float32) * s,
        "w_hh": jax.random.normal(ks[5], (HIDDEN, 4 * HIDDEN), jnp.float32) * s,
        "b_lstm": jax.random.normal(ks[6], (1, 4 * HIDDEN), jnp.float32) * s,
        "w1": jax.random.normal(ks[7], (2 * HIDDEN, HIDDEN), jnp.float32) * s,
        "b1": jax.random.normal(ks[8], (1, HIDDEN), jnp.float32) * s,
        "w2": jax.random.normal(ks[9], (HIDDEN, OUTPUT_DIM), jnp.float32) * s,
        "b2": jnp.zeros((1, OUTPUT_DIM), jnp.float32),
    }


def _pad2(a, shape):
    out = jnp.zeros(shape, a.dtype)
    return out.at[:a.shape[0], :a.shape[1]].set(a)


def pad_params(p):
    """Gate-major padding; weight matrices cast to bf16 (MXU operands),
    biases stay f32 (added post-accumulation)."""
    H = HIDDEN
    # Gate-major padding: gate k lives in columns [k*HP, k*HP + H).
    w_ih_p = jnp.zeros((2 * HP, 4 * HP), jnp.float32)
    b_lstm_p = jnp.zeros((1, 4 * HP), jnp.float32)
    for g in range(4):
        src = p["w_ih"][:, g * H:(g + 1) * H]
        hh = p["w_hh"][:, g * H:(g + 1) * H]
        # Fold w_hh into the q-rows (q_star[:, :H] == h at every Set2Set step,
        # including step 0 where both are zero), eliminating the h @ w_hh dot.
        w_ih_p = w_ih_p.at[0:H, g * HP:g * HP + H].set(src[0:H] + hh)
        # r rows: q_star columns [HP, HP + H) of the padded layout.
        w_ih_p = w_ih_p.at[HP:HP + H, g * HP:g * HP + H].set(src[H:2 * H])
        b_lstm_p = b_lstm_p.at[:, g * HP:g * HP + H].set(
            p["b_lstm"][:, g * H:(g + 1) * H])

    w1_p = jnp.zeros((2 * HP, HP), jnp.float32)
    w1_p = w1_p.at[0:H, 0:H].set(p["w1"][0:H])
    w1_p = w1_p.at[HP:HP + H, 0:H].set(p["w1"][H:2 * H])

    return {
        "w0": _pad2(p["w0"], (F_IN_P, HP)).astype(BF16),
        "b0": _pad2(p["b0"], (1, HP)),
        "wc": _pad2(p["wc"], (HP, HP)).astype(BF16),
        "bc": _pad2(p["bc"], (1, HP)),
        "w_ih": w_ih_p.astype(BF16),
        "b_lstm": b_lstm_p,
        "w1": w1_p.astype(BF16),
        "b1": _pad2(p["b1"], (1, HP)),
        "w2": _pad2(p["w2"], (HP, OUT_P)).astype(BF16),
        "b2": _pad2(p["b2"], (1, OUT_P)),
    }


def gcn_normalized_adjacency(edge_index, num_nodes):
    # GCNConv default: A_hat = A + I, A_norm = D^{-1/2} A_hat D^{-1/2}
    # NOTE: matches PyG gcn_norm for simple graphs (no duplicate edges / no
    # pre-existing self loops in edge_index).
    src, dst = edge_index[0], edge_index[1]
    adj = jnp.zeros((num_nodes, num_nodes), jnp.float32)
    adj = adj.at[dst, src].set(1.0)
    adj = adj + jnp.eye(num_nodes, dtype=jnp.float32)
    deg = jnp.sum(adj, axis=1)
    dinv = jax.lax.rsqrt(deg)
    return dinv[:, None] * adj * dinv[None, :]


# ------------------------- pure-JAX reference check -------------------------

def gcn_reference(p, x, a_norm, batch_mask):
    out = jnp.maximum(x @ p["w0"] + p["b0"], 0.0)
    for _ in range(NUM_STEP_PROP):
        out = jnp.maximum(a_norm @ (out @ p["wc"]) + p["bc"], 0.0)
    B = batch_mask.shape[0]
    H = HIDDEN
    q_star = jnp.zeros((B, 2 * H), jnp.float32)
    h = jnp.zeros((B, H), jnp.float32)
    c = jnp.zeros((B, H), jnp.float32)
    for _ in range(NUM_STEP_SET2SET):
        gates = q_star @ p["w_ih"] + h @ p["w_hh"] + p["b_lstm"]
        i = jax.nn.sigmoid(gates[:, 0 * H:1 * H])
        f = jax.nn.sigmoid(gates[:, 1 * H:2 * H])
        g = jnp.tanh(gates[:, 2 * H:3 * H])
        o = jax.nn.sigmoid(gates[:, 3 * H:4 * H])
        c = f * c + i * g
        h = o * jnp.tanh(c)
        q = h
        scores = q @ out.T
        scores = jnp.where(batch_mask > 0, scores, -1e30)
        m = jnp.max(scores, axis=-1, keepdims=True)
        e = jnp.exp(scores - m) * batch_mask
        att = e / (jnp.sum(e, axis=-1, keepdims=True) + 1e-16)
        r = att @ out
        q_star = jnp.concatenate([q, r], axis=-1)
    y = jnp.maximum(q_star @ p["w1"] + p["b1"], 0.0)
    return y @ p["w2"] + p["b2"]


# --------------------------------- driver ----------------------------------

if __name__ == "__main__":
    key = jax.random.PRNGKey(0)
    pkey, xkey = jax.random.split(key)
    params = init_params(pkey)
    padded = pad_params(params)

    # Small synthetic graph batch: 2 graphs x 8 nodes = 16 nodes, ring edges.
    N = 16
    B = 2
    x = jax.random.normal(xkey, (N, NODE_INPUT_DIM), jnp.float32)

    src_list, dst_list = [], []
    for g in range(B):
        off = g * 8
        for i in range(8):
            a, b = off + i, off + (i + 1) % 8
            src_list += [a, b]
            dst_list += [b, a]
    edge_index = jnp.array([src_list, dst_list], dtype=jnp.int32)

    batch = jnp.array([0] * 8 + [1] * 8, dtype=jnp.int32)
    batch_mask = (batch[None, :] == jnp.arange(B, dtype=jnp.int32)[:, None]
                  ).astype(jnp.float32)                       # (B, N)
    a_norm = gcn_normalized_adjacency(edge_index, N)          # (N, N)

    # Lane/sublane-dense padded inputs for the fused kernel. Invariant: padded
    # node rows/cols of a_pad and padded entries of mask_pad are EXACTLY zero,
    # so padded nodes (which acquire relu(bias) features) never leak into real
    # graphs.
    x_pad = _pad2(x, (NP, F_IN_P))
    a_pad = _pad2(a_norm, (NP, NP))
    mask_pad = _pad2(batch_mask, (BP, NP))

    fwd = jax.jit(gcn_forward)
    y_pad = jax.block_until_ready(fwd(padded, x_pad, a_pad, mask_pad))
    y = y_pad[:B, :OUTPUT_DIM]

    y_ref = gcn_reference(params, x, a_norm, batch_mask)

    assert y.shape == (B, OUTPUT_DIM), y.shape
    assert jnp.all(jnp.isfinite(y))
    # bf16 MXU operands (f32 accumulate) -> relaxed tolerance vs f32 reference.
    assert jnp.allclose(y, y_ref, rtol=3e-2, atol=3e-2), (
        float(jnp.max(jnp.abs(y - y_ref))))
    print("KERNEL_OK")
</pallas_src>

<mosaic_0001>
module attributes {stable_mosaic.version = 11 : i64} {
  func.func @_gcn_forward_kernel(%arg0: memref<128x128xf32, #tpu.memory_space<vmem>>, %arg1: memref<128x128xf32, #tpu.memory_space<vmem>>, %arg2: memref<8x128xf32, #tpu.memory_space<vmem>>, %arg3: memref<128x128xbf16, #tpu.memory_space<vmem>>, %arg4: memref<1x128xf32, #tpu.memory_space<vmem>>, %arg5: memref<128x128xbf16, #tpu.memory_space<vmem>>, %arg6: memref<1x128xf32, #tpu.memory_space<vmem>>, %arg7: memref<256x512xbf16, #tpu.memory_space<vmem>>, %arg8: memref<1x512xf32, #tpu.memory_space<vmem>>, %arg9: memref<256x128xbf16, #tpu.memory_space<vmem>>, %arg10: memref<1x128xf32, #tpu.memory_space<vmem>>, %arg11: memref<128x128xbf16, #tpu.memory_space<vmem>>, %arg12: memref<1x128xf32, #tpu.memory_space<vmem>>, %arg13: memref<8x128xf32, #tpu.memory_space<vmem>>) attributes {dimension_semantics = [], scalar_prefetch = 0 : i64, scratch_operands = 0 : i64, tpu.core_type = #tpu.core_type<tc>} {
    %c0 = arith.constant 0 : index
    %c0_0 = arith.constant 0 : index
    %0 = vector.load %arg0[%c0, %c0_0] : memref<128x128xf32, #tpu.memory_space<vmem>>, vector<128x128xf32>
    %1 = arith.truncf %0 : vector<128x128xf32> to vector<128x128xbf16>
    %c0_1 = arith.constant 0 : index
    %c0_2 = arith.constant 0 : index
    %2 = vector.load %arg1[%c0_1, %c0_2] : memref<128x128xf32, #tpu.memory_space<vmem>>, vector<128x128xf32>
    %3 = arith.truncf %2 : vector<128x128xf32> to vector<128x128xbf16>
    %c0_3 = arith.constant 0 : index
    %c0_4 = arith.constant 0 : index
    %4 = vector.load %arg2[%c0_3, %c0_4] : memref<8x128xf32, #tpu.memory_space<vmem>>, vector<8x128xf32>
    %c0_5 = arith.constant 0 : index
    %c0_6 = arith.constant 0 : index
    %5 = vector.load %arg3[%c0_5, %c0_6] : memref<128x128xbf16, #tpu.memory_space<vmem>>, vector<128x128xbf16>
    %c0_7 = arith.constant 0 : index
    %c0_8 = arith.constant 0 : index
    %6 = vector.load %arg4[%c0_7, %c0_8] : memref<1x128xf32, #tpu.memory_space<vmem>>, vector<1x128xf32>
    %c0_9 = arith.constant 0 : index
    %c0_10 = arith.constant 0 : index
    %7 = vector.load %arg5[%c0_9, %c0_10] : memref<128x128xbf16, #tpu.memory_space<vmem>>, vector<128x128xbf16>
    %c0_11 = arith.constant 0 : index
    %c0_12 = arith.constant 0 : index
    %8 = vector.load %arg6[%c0_11, %c0_12] : memref<1x128xf32, #tpu.memory_space<vmem>>, vector<1x128xf32>
    %c0_13 = arith.constant 0 : index
    %c0_14 = arith.constant 0 : index
    %9 = vector.load %arg7[%c0_13, %c0_14] : memref<256x512xbf16, #tpu.memory_space<vmem>>, vector<256x512xbf16>
    %c0_15 = arith.constant 0 : index
    %c0_16 = arith.constant 0 : index
    %10 = vector.load %arg8[%c0_15, %c0_16] : memref<1x512xf32, #tpu.memory_space<vmem>>, vector<1x512xf32>
    %c0_17 = arith.constant 0 : index
    %c0_18 = arith.constant 0 : index
    %11 = vector.load %arg9[%c0_17, %c0_18] : memref<256x128xbf16, #tpu.memory_space<vmem>>, vector<256x128xbf16>
    %c0_19 = arith.constant 0 : index
    %c0_20 = arith.constant 0 : index
    %12 = vector.load %arg10[%c0_19, %c0_20] : memref<1x128xf32, #tpu.memory_space<vmem>>, vector<1x128xf32>
    %c0_21 = arith.constant 0 : index
    %c0_22 = arith.constant 0 : index
    %13 = vector.load %arg11[%c0_21, %c0_22] : memref<128x128xbf16, #tpu.memory_space<vmem>>, vector<128x128xbf16>
    %c0_23 = arith.constant 0 : index
    %c0_24 = arith.constant 0 : index
    %14 = vector.load %arg12[%c0_23, %c0_24] : memref<1x128xf32, #tpu.memory_space<vmem>>, vector<1x128xf32>
    %15 = vector.shape_cast %6 : vector<1x128xf32> to vector<1x128xf32>
    %16 = vector.broadcast %15 : vector<1x128xf32> to vector<128x128xf32>
    %17 = vector.shape_cast %8 : vector<1x128xf32> to vector<1x128xf32>
    %18 = vector.broadcast %17 : vector<1x128xf32> to vector<128x128xf32>
    %19 = vector.shape_cast %10 : vector<1x512xf32> to vector<1x512xf32>
    %20 = vector.broadcast %19 : vector<1x512xf32> to vector<8x512xf32>
    %21 = vector.shape_cast %12 : vector<1x128xf32> to vector<1x128xf32>
    %22 = vector.broadcast %21 : vector<1x128xf32> to vector<8x128xf32>
    %23 = vector.shape_cast %14 : vector<1x128xf32> to vector<1x128xf32>
    %24 = vector.broadcast %23 : vector<1x128xf32> to vector<8x128xf32>
    %cst = arith.constant 0.000000e+00 : f32
    %25 = vector.broadcast %cst : f32 to vector<8x128xf32>
    %26 = arith.cmpf ogt, %4, %25 : vector<8x128xf32>
    %cst_25 = arith.constant 0.000000e+00 : f32
    %cst_26 = arith.constant -1.000000e+30 : f32
    %27 = vector.broadcast %cst_25 : f32 to vector<8x128xf32>
    %28 = vector.broadcast %cst_26 : f32 to vector<8x128xf32>
    %29 = arith.select %26, %27, %28 : vector<8x128xi1>, vector<8x128xf32>
    %cst_27 = arith.constant dense<0.000000e+00> : vector<128x128xf32>
    %30 = tpu.matmul %1, %5, %cst_27 {dimension_numbers = #tpu.dot_dimension_numbers<[1], [0], [0], [1], [0, 0, 1, 1], [], []>} : vector<128x128xbf16>, vector<128x128xbf16>, vector<128x128xf32> -> vector<128x128xf32>
    %31 = arith.addf %30, %16 : vector<128x128xf32>
    %cst_28 = arith.constant 0.000000e+00 : f32
    %32 = vector.broadcast %cst_28 : f32 to vector<128x128xf32>
    %33 = arith.maximumf %31, %32 : vector<128x128xf32>
    %c0_i32 = arith.constant 0 : i32
    %34 = arith.truncf %33 : vector<128x128xf32> to vector<128x128xbf16>
    %cst_29 = arith.constant dense<0.000000e+00> : vector<128x128xf32>
    %35 = tpu.matmul %34, %7, %cst_29 {dimension_numbers = #tpu.dot_dimension_numbers<[1], [0], [0], [1], [0, 0, 1, 1], [], []>} : vector<128x128xbf16>, vector<128x128xbf16>, vector<128x128xf32> -> vector<128x128xf32>
    %36 = arith.truncf %35 : vector<128x128xf32> to vector<128x128xbf16>
    %cst_30 = arith.constant dense<0.000000e+00> : vector<128x128xf32>
    %37 = tpu.matmul %3, %36, %cst_30 {dimension_numbers = #tpu.dot_dimension_numbers<[1], [0], [0], [1], [0, 0, 1, 1], [], []>} : vector<128x128xbf16>, vector<128x128xbf16>, vector<128x128xf32> -> vector<128x128xf32>
    %38 = arith.addf %37, %18 : vector<128x128xf32>
    %cst_31 = arith.constant 0.000000e+00 : f32
    %39 = vector.broadcast %cst_31 : f32 to vector<128x128xf32>
    %40 = arith.maximumf %38, %39 : vector<128x128xf32>
    %c1_i32 = arith.constant 1 : i32
    %41 = arith.truncf %40 : vector<128x128xf32> to vector<128x128xbf16>
    %cst_32 = arith.constant dense<0.000000e+00> : vector<128x128xf32>
    %42 = tpu.matmul %41, %7, %cst_32 {dimension_numbers = #tpu.dot_dimension_numbers<[1], [0], [0], [1], [0, 0, 1, 1], [], []>} : vector<128x128xbf16>, vector<128x128xbf16>, vector<128x128xf32> -> vector<128x128xf32>
    %43 = arith.truncf %42 : vector<128x128xf32> to vector<128x128xbf16>
    %cst_33 = arith.constant dense<0.000000e+00> : vector<128x128xf32>
    %44 = tpu.matmul %3, %43, %cst_33 {dimension_numbers = #tpu.dot_dimension_numbers<[1], [0], [0], [1], [0, 0, 1, 1], [], []>} : vector<128x128xbf16>, vector<128x128xbf16>, vector<128x128xf32> -> vector<128x128xf32>
    %45 = arith.addf %44, %18 : vector<128x128xf32>
    %cst_34 = arith.constant 0.000000e+00 : f32
    %46 = vector.broadcast %cst_34 : f32 to vector<128x128xf32>
    %47 = arith.maximumf %45, %46 : vector<128x128xf32>
    %c2_i32 = arith.constant 2 : i32
    %48 = arith.truncf %47 : vector<128x128xf32> to vector<128x128xbf16>
    %cst_35 = arith.constant dense<0.000000e+00> : vector<128x128xf32>
    %49 = tpu.matmul %48, %7, %cst_35 {dimension_numbers = #tpu.dot_dimension_numbers<[1], [0], [0], [1], [0, 0, 1, 1], [], []>} : vector<128x128xbf16>, vector<128x128xbf16>, vector<128x128xf32> -> vector<128x128xf32>
    %50 = arith.truncf %49 : vector<128x128xf32> to vector<128x128xbf16>
    %cst_36 = arith.constant dense<0.000000e+00> : vector<128x128xf32>
    %51 = tpu.matmul %3, %50, %cst_36 {dimension_numbers = #tpu.dot_dimension_numbers<[1], [0], [0], [1], [0, 0, 1, 1], [], []>} : vector<128x128xbf16>, vector<128x128xbf16>, vector<128x128xf32> -> vector<128x128xf32>
    %52 = arith.addf %51, %18 : vector<128x128xf32>
    %cst_37 = arith.constant 0.000000e+00 : f32
    %53 = vector.broadcast %cst_37 : f32 to vector<128x128xf32>
    %54 = arith.maximumf %52, %53 : vector<128x128xf32>
    %c3_i32 = arith.constant 3 : i32
    %55 = arith.truncf %54 : vector<128x128xf32> to vector<128x128xbf16>
    %cst_38 = arith.constant dense<0.000000e+00> : vector<128x128xf32>
    %56 = tpu.matmul %55, %7, %cst_38 {dimension_numbers = #tpu.dot_dimension_numbers<[1], [0], [0], [1], [0, 0, 1, 1], [], []>} : vector<128x128xbf16>, vector<128x128xbf16>, vector<128x128xf32> -> vector<128x128xf32>
    %57 = arith.truncf %56 : vector<128x128xf32> to vector<128x128xbf16>
    %cst_39 = arith.constant dense<0.000000e+00> : vector<128x128xf32>
    %58 = tpu.matmul %3, %57, %cst_39 {dimension_numbers = #tpu.dot_dimension_numbers<[1], [0], [0], [1], [0, 0, 1, 1], [], []>} : vector<128x128xbf16>, vector<128x128xbf16>, vector<128x128xf32> -> vector<128x128xf32>
    %59 = arith.addf %58, %18 : vector<128x128xf32>
    %cst_40 = arith.constant 0.000000e+00 : f32
    %60 = vector.broadcast %cst_40 : f32 to vector<128x128xf32>
    %61 = arith.maximumf %59, %60 : vector<128x128xf32>
    %c4_i32 = arith.constant 4 : i32
    %62 = arith.truncf %61 : vector<128x128xf32> to vector<128x128xbf16>
    %cst_41 = arith.constant dense<0.000000e+00> : vector<128x128xf32>
    %63 = tpu.matmul %62, %7, %cst_41 {dimension_numbers = #tpu.dot_dimension_numbers<[1], [0], [0], [1], [0, 0, 1, 1], [], []>} : vector<128x128xbf16>, vector<128x128xbf16>, vector<128x128xf32> -> vector<128x128xf32>
    %64 = arith.truncf %63 : vector<128x128xf32> to vector<128x128xbf16>
    %cst_42 = arith.constant dense<0.000000e+00> : vector<128x128xf32>
    %65 = tpu.matmul %3, %64, %cst_42 {dimension_numbers = #tpu.dot_dimension_numbers<[1], [0], [0], [1], [0, 0, 1, 1], [], []>} : vector<128x128xbf16>, vector<128x128xbf16>, vector<128x128xf32> -> vector<128x128xf32>
    %66 = arith.addf %65, %18 : vector<128x128xf32>
    %cst_43 = arith.constant 0.000000e+00 : f32
    %67 = vector.broadcast %cst_43 : f32 to vector<128x128xf32>
    %68 = arith.maximumf %66, %67 : vector<128x128xf32>
    %c5_i32 = arith.constant 5 : i32
    %69 = arith.truncf %68 : vector<128x128xf32> to vector<128x128xbf16>
    %cst_44 = arith.constant dense<0.000000e+00> : vector<128x128xf32>
    %70 = tpu.matmul %69, %7, %cst_44 {dimension_numbers = #tpu.dot_dimension_numbers<[1], [0], [0], [1], [0, 0, 1, 1], [], []>} : vector<128x128xbf16>, vector<128x128xbf16>, vector<128x128xf32> -> vector<128x128xf32>
    %71 = arith.truncf %70 : vector<128x128xf32> to vector<128x128xbf16>
    %cst_45 = arith.constant dense<0.000000e+00> : vector<128x128xf32>
    %72 = tpu.matmul %3, %71, %cst_45 {dimension_numbers = #tpu.dot_dimension_numbers<[1], [0], [0], [1], [0, 0, 1, 1], [], []>} : vector<128x128xbf16>, vector<128x128xbf16>, vector<128x128xf32> -> vector<128x128xf32>
    %73 = arith.addf %72, %18 : vector<128x128xf32>
    %cst_46 = arith.constant 0.000000e+00 : f32
    %74 = vector.broadcast %cst_46 : f32 to vector<128x128xf32>
    %75 = arith.maximumf %73, %74 : vector<128x128xf32>
    %76 = arith.truncf %75 : vector<128x128xf32> to vector<128x128xbf16>
    %77 = tpu.transpose %76, [1, 0] : vector<128x128xbf16> -> vector<128x128xbf16>
    %cst_47 = arith.constant 0.000000e+00 : f32
    %78 = vector.broadcast %cst_47 : f32 to vector<8x256xf32>
    %cst_48 = arith.constant 0.000000e+00 : f32
    %79 = vector.broadcast %cst_48 : f32 to vector<8x128xf32>
    %c0_i32_49 = arith.constant 0 : i32
    %80 = arith.truncf %78 : vector<8x256xf32> to vector<8x256xbf16>
    %cst_50 = arith.constant dense<0.000000e+00> : vector<8x512xf32>
    %81 = tpu.matmul %80, %9, %cst_50 {dimension_numbers = #tpu.dot_dimension_numbers<[1], [0], [0], [1], [0, 0, 1, 1], [], []>} : vector<8x256xbf16>, vector<256x512xbf16>, vector<8x512xf32> -> vector<8x512xf32>
    %82 = arith.addf %81, %20 : vector<8x512xf32>
    %83 = vector.extract_strided_slice %82 {offsets = [0, 0], sizes = [8, 128], strides = [1, 1]} : vector<8x512xf32> to vector<8x128xf32>
    %84 = arith.negf %83 : vector<8x128xf32>
    %85 = math.exp %84 : vector<8x128xf32>
    %cst_51 = arith.constant 1.000000e+00 : f32
    %86 = vector.broadcast %cst_51 : f32 to vector<8x128xf32>
    %87 = arith.addf %86, %85 : vector<8x128xf32>
    %88 = arith.divf %86, %87 : vector<8x128xf32>
    %89 = vector.extract_strided_slice %82 {offsets = [0, 128], sizes = [8, 128], strides = [1, 1]} : vector<8x512xf32> to vector<8x128xf32>
    %90 = arith.negf %89 : vector<8x128xf32>
    %91 = math.exp %90 : vector<8x128xf32>
    %cst_52 = arith.constant 1.000000e+00 : f32
    %92 = vector.broadcast %cst_52 : f32 to vector<8x128xf32>
    %93 = arith.addf %92, %91 : vector<8x128xf32>
    %94 = arith.divf %92, %93 : vector<8x128xf32>
    %95 = vector.extract_strided_slice %82 {offsets = [0, 256], sizes = [8, 128], strides = [1, 1]} : vector<8x512xf32> to vector<8x128xf32>
    %96 = math.tanh %95 : vector<8x128xf32>
    %97 = vector.extract_strided_slice %82 {offsets = [0, 384], sizes = [8, 128], strides = [1, 1]} : vector<8x512xf32> to vector<8x128xf32>
    %98 = arith.negf %97 : vector<8x128xf32>
    %99 = math.exp %98 : vector<8x128xf32>
    %cst_53 = arith.constant 1.000000e+00 : f32
    %100 = vector.broadcast %cst_53 : f32 to vector<8x128xf32>
    %101 = arith.addf %100, %99 : vector<8x128xf32>
    %102 = arith.divf %100, %101 : vector<8x128xf32>
    %103 = arith.mulf %94, %79 : vector<8x128xf32>
    %104 = arith.mulf %88, %96 : vector<8x128xf32>
    %105 = arith.addf %103, %104 : vector<8x128xf32>
    %106 = math.tanh %105 : vector<8x128xf32>
    %107 = arith.mulf %102, %106 : vector<8x128xf32>
    %108 = arith.truncf %107 : vector<8x128xf32> to vector<8x128xbf16>
    %cst_54 = arith.constant dense<0.000000e+00> : vector<8x128xf32>
    %109 = tpu.matmul %108, %77, %cst_54 {dimension_numbers = #tpu.dot_dimension_numbers<[1], [0], [0], [1], [0, 0, 1, 1], [], []>} : vector<8x128xbf16>, vector<128x128xbf16>, vector<8x128xf32> -> vector<8x128xf32>
    %110 = arith.addf %109, %29 : vector<8x128xf32>
    %cst_55 = arith.constant dense<0xFF800000> : vector<8xf32>
    %111 = vector.multi_reduction <maximumf>, %110, %cst_55 [1] : vector<8x128xf32> to vector<8xf32>
    %112 = vector.shape_cast %111 : vector<8xf32> to vector<8x1xf32>
    %113 = vector.broadcast %112 : vector<8x1xf32> to vector<8x128xf32>
    %114 = arith.subf %110, %113 : vector<8x128xf32>
    %115 = math.exp %114 : vector<8x128xf32>
    %116 = arith.mulf %115, %4 : vector<8x128xf32>
    %cst_56 = arith.constant dense<0.000000e+00> : vector<8xf32>
    %117 = vector.multi_reduction <add>, %116, %cst_56 [1] : vector<8x128xf32> to vector<8xf32>
    %118 = vector.shape_cast %117 : vector<8xf32> to vector<8x1xf32>
    %cst_57 = arith.constant 1.000000e-16 : f32
    %119 = vector.broadcast %cst_57 : f32 to vector<8x1xf32>
    %120 = arith.addf %118, %119 : vector<8x1xf32>
    %121 = tpu.reciprocal %120 {approx = true} : vector<8x1xf32> -> vector<8x1xf32>
    %122 = vector.broadcast %121 : vector<8x1xf32> to vector<8x128xf32>
    %123 = arith.mulf %116, %122 : vector<8x128xf32>
    %124 = arith.truncf %123 : vector<8x128xf32> to vector<8x128xbf16>
    %cst_58 = arith.constant dense<0.000000e+00> : vector<8x128xf32>
    %125 = tpu.matmul %124, %76, %cst_58 {dimension_numbers = #tpu.dot_dimension_numbers<[1], [0], [0], [1], [0, 0, 1, 1], [], []>} : vector<8x128xbf16>, vector<128x128xbf16>, vector<8x128xf32> -> vector<8x128xf32>
    %126 = tpu.concatenate %107, %125 in 1 : vector<8x128xf32>, vector<8x128xf32> -> vector<8x256xf32>
    %c1_i32_59 = arith.constant 1 : i32
    %127 = arith.truncf %126 : vector<8x256xf32> to vector<8x256xbf16>
    %cst_60 = arith.constant dense<0.000000e+00> : vector<8x512xf32>
    %128 = tpu.matmul %127, %9, %cst_60 {dimension_numbers = #tpu.dot_dimension_numbers<[1], [0], [0], [1], [0, 0, 1, 1], [], []>} : vector<8x256xbf16>, vector<256x512xbf16>, vector<8x512xf32> -> vector<8x512xf32>
    %129 = arith.addf %128, %20 : vector<8x512xf32>
    %130 = vector.extract_strided_slice %129 {offsets = [0, 0], sizes = [8, 128], strides = [1, 1]} : vector<8x512xf32> to vector<8x128xf32>
    %131 = arith.negf %130 : vector<8x128xf32>
    %132 = math.exp %131 : vector<8x128xf32>
    %cst_61 = arith.constant 1.000000e+00 : f32
    %133 = vector.broadcast %cst_61 : f32 to vector<8x128xf32>
    %134 = arith.addf %133, %132 : vector<8x128xf32>
    %135 = arith.divf %133, %134 : vector<8x128xf32>
    %136 = vector.extract_strided_slice %129 {offsets = [0, 128], sizes = [8, 128], strides = [1, 1]} : vector<8x512xf32> to vector<8x128xf32>
    %137 = arith.negf %136 : vector<8x128xf32>
    %138 = math.exp %137 : vector<8x128xf32>
    %cst_62 = arith.constant 1.000000e+00 : f32
    %139 = vector.broadcast %cst_62 : f32 to vector<8x128xf32>
    %140 = arith.addf %139, %138 : vector<8x128xf32>
    %141 = arith.divf %139, %140 : vector<8x128xf32>
    %142 = vector.extract_strided_slice %129 {offsets = [0, 256], sizes = [8, 128], strides = [1, 1]} : vector<8x512xf32> to vector<8x128xf32>
    %143 = math.tanh %142 : vector<8x128xf32>
    %144 = vector.extract_strided_slice %129 {offsets = [0, 384], sizes = [8, 128], strides = [1, 1]} : vector<8x512xf32> to vector<8x128xf32>
    %145 = arith.negf %144 : vector<8x128xf32>
    %146 = math.exp %145 : vector<8x128xf32>
    %cst_63 = arith.constant 1.000000e+00 : f32
    %147 = vector.broadcast %cst_63 : f32 to vector<8x128xf32>
    %148 = arith.addf %147, %146 : vector<8x128xf32>
    %149 = arith.divf %147, %148 : vector<8x128xf32>
    %150 = arith.mulf %141, %105 : vector<8x128xf32>
    %151 = arith.mulf %135, %143 : vector<8x128xf32>
    %152 = arith.addf %150, %151 : vector<8x128xf32>
    %153 = math.tanh %152 : vector<8x128xf32>
    %154 = arith.mulf %149, %153 : vector<8x128xf32>
    %155 = arith.truncf %154 : vector<8x128xf32> to vector<8x128xbf16>
    %cst_64 = arith.constant dense<0.000000e+00> : vector<8x128xf32>
    %156 = tpu.matmul %155, %77, %cst_64 {dimension_numbers = #tpu.dot_dimension_numbers<[1], [0], [0], [1], [0, 0, 1, 1], [], []>} : vector<8x128xbf16>, vector<128x128xbf16>, vector<8x128xf32> -> vector<8x128xf32>
    %157 = arith.addf %156, %29 : vector<8x128xf32>
    %cst_65 = arith.constant dense<0xFF800000> : vector<8xf32>
    %158 = vector.multi_reduction <maximumf>, %157, %cst_65 [1] : vector<8x128xf32> to vector<8xf32>
    %159 = vector.shape_cast %158 : vector<8xf32> to vector<8x1xf32>
    %160 = vector.broadcast %159 : vector<8x1xf32> to vector<8x128xf32>
    %161 = arith.subf %157, %160 : vector<8x128xf32>
    %162 = math.exp %161 : vector<8x128xf32>
    %163 = arith.mulf %162, %4 : vector<8x128xf32>
    %cst_66 = arith.constant dense<0.000000e+00> : vector<8xf32>
    %164 = vector.multi_reduction <add>, %163, %cst_66 [1] : vector<8x128xf32> to vector<8xf32>
    %165 = vector.shape_cast %164 : vector<8xf32> to vector<8x1xf32>
    %cst_67 = arith.constant 1.000000e-16 : f32
    %166 = vector.broadcast %cst_67 : f32 to vector<8x1xf32>
    %167 = arith.addf %165, %166 : vector<8x1xf32>
    %168 = tpu.reciprocal %167 {approx = true} : vector<8x1xf32> -> vector<8x1xf32>
    %169 = vector.broadcast %168 : vector<8x1xf32> to vector<8x128xf32>
    %170 = arith.mulf %163, %169 : vector<8x128xf32>
    %171 = arith.truncf %170 : vector<8x128xf32> to vector<8x128xbf16>
    %cst_68 = arith.constant dense<0.000000e+00> : vector<8x128xf32>
    %172 = tpu.matmul %171, %76, %cst_68 {dimension_numbers = #tpu.dot_dimension_numbers<[1], [0], [0], [1], [0, 0, 1, 1], [], []>} : vector<8x128xbf16>, vector<128x128xbf16>, vector<8x128xf32> -> vector<8x128xf32>
    %173 = tpu.concatenate %154, %172 in 1 : vector<8x128xf32>, vector<8x128xf32> -> vector<8x256xf32>
    %c2_i32_69 = arith.constant 2 : i32
    %174 = arith.truncf %173 : vector<8x256xf32> to vector<8x256xbf16>
    %cst_70 = arith.constant dense<0.000000e+00> : vector<8x512xf32>
    %175 = tpu.matmul %174, %9, %cst_70 {dimension_numbers = #tpu.dot_dimension_numbers<[1], [0], [0], [1], [0, 0, 1, 1], [], []>} : vector<8x256xbf16>, vector<256x512xbf16>, vector<8x512xf32> -> vector<8x512xf32>
    %176 = arith.addf %175, %20 : vector<8x512xf32>
    %177 = vector.extract_strided_slice %176 {offsets = [0, 0], sizes = [8, 128], strides = [1, 1]} : vector<8x512xf32> to vector<8x128xf32>
    %178 = arith.negf %177 : vector<8x128xf32>
    %179 = math.exp %178 : vector<8x128xf32>
    %cst_71 = arith.constant 1.000000e+00 : f32
    %180 = vector.broadcast %cst_71 : f32 to vector<8x128xf32>
    %181 = arith.addf %180, %179 : vector<8x128xf32>
    %182 = arith.divf %180, %181 : vector<8x128xf32>
    %183 = vector.extract_strided_slice %176 {offsets = [0, 128], sizes = [8, 128], strides = [1, 1]} : vector<8x512xf32> to vector<8x128xf32>
    %184 = arith.negf %183 : vector<8x128xf32>
    %185 = math.exp %184 : vector<8x128xf32>
    %cst_72 = arith.constant 1.000000e+00 : f32
    %186 = vector.broadcast %cst_72 : f32 to vector<8x128xf32>
    %187 = arith.addf %186, %185 : vector<8x128xf32>
    %188 = arith.divf %186, %187 : vector<8x128xf32>
    %189 = vector.extract_strided_slice %176 {offsets = [0, 256], sizes = [8, 128], strides = [1, 1]} : vector<8x512xf32> to vector<8x128xf32>
    %190 = math.tanh %189 : vector<8x128xf32>
    %191 = vector.extract_strided_slice %176 {offsets = [0, 384], sizes = [8, 128], strides = [1, 1]} : vector<8x512xf32> to vector<8x128xf32>
    %192 = arith.negf %191 : vector<8x128xf32>
    %193 = math.exp %192 : vector<8x128xf32>
    %cst_73 = arith.constant 1.000000e+00 : f32
    %194 = vector.broadcast %cst_73 : f32 to vector<8x128xf32>
    %195 = arith.addf %194, %193 : vector<8x128xf32>
    %196 = arith.divf %194, %195 : vector<8x128xf32>
    %197 = arith.mulf %188, %152 : vector<8x128xf32>
    %198 = arith.mulf %182, %190 : vector<8x128xf32>
    %199 = arith.addf %197, %198 : vector<8x128xf32>
    %200 = math.tanh %199 : vector<8x128xf32>
    %201 = arith.mulf %196, %200 : vector<8x128xf32>
    %202 = arith.truncf %201 : vector<8x128xf32> to vector<8x128xbf16>
    %cst_74 = arith.constant dense<0.000000e+00> : vector<8x128xf32>
    %203 = tpu.matmul %202, %77, %cst_74 {dimension_numbers = #tpu.dot_dimension_numbers<[1], [0], [0], [1], [0, 0, 1, 1], [], []>} : vector<8x128xbf16>, vector<128x128xbf16>, vector<8x128xf32> -> vector<8x128xf32>
    %204 = arith.addf %203, %29 : vector<8x128xf32>
    %cst_75 = arith.constant dense<0xFF800000> : vector<8xf32>
    %205 = vector.multi_reduction <maximumf>, %204, %cst_75 [1] : vector<8x128xf32> to vector<8xf32>
    %206 = vector.shape_cast %205 : vector<8xf32> to vector<8x1xf32>
    %207 = vector.broadcast %206 : vector<8x1xf32> to vector<8x128xf32>
    %208 = arith.subf %204, %207 : vector<8x128xf32>
    %209 = math.exp %208 : vector<8x128xf32>
    %210 = arith.mulf %209, %4 : vector<8x128xf32>
    %cst_76 = arith.constant dense<0.000000e+00> : vector<8xf32>
    %211 = vector.multi_reduction <add>, %210, %cst_76 [1] : vector<8x128xf32> to vector<8xf32>
    %212 = vector.shape_cast %211 : vector<8xf32> to vector<8x1xf32>
    %cst_77 = arith.constant 1.000000e-16 : f32
    %213 = vector.broadcast %cst_77 : f32 to vector<8x1xf32>
    %214 = arith.addf %212, %213 : vector<8x1xf32>
    %215 = tpu.reciprocal %214 {approx = true} : vector<8x1xf32> -> vector<8x1xf32>
    %216 = vector.broadcast %215 : vector<8x1xf32> to vector<8x128xf32>
    %217 = arith.mulf %210, %216 : vector<8x128xf32>
    %218 = arith.truncf %217 : vector<8x128xf32> to vector<8x128xbf16>
    %cst_78 = arith.constant dense<0.000000e+00> : vector<8x128xf32>
    %219 = tpu.matmul %218, %76, %cst_78 {dimension_numbers = #tpu.dot_dimension_numbers<[1], [0], [0], [1], [0, 0, 1, 1], [], []>} : vector<8x128xbf16>, vector<128x128xbf16>, vector<8x128xf32> -> vector<8x128xf32>
    %220 = tpu.concatenate %201, %219 in 1 : vector<8x128xf32>, vector<8x128xf32> -> vector<8x256xf32>
    %c3_i32_79 = arith.constant 3 : i32
    %221 = arith.truncf %220 : vector<8x256xf32> to vector<8x256xbf16>
    %cst_80 = arith.constant dense<0.000000e+00> : vector<8x512xf32>
    %222 = tpu.matmul %221, %9, %cst_80 {dimension_numbers = #tpu.dot_dimension_numbers<[1], [0], [0], [1], [0, 0, 1, 1], [], []>} : vector<8x256xbf16>, vector<256x512xbf16>, vector<8x512xf32> -> vector<8x512xf32>
    %223 = arith.addf %222, %20 : vector<8x512xf32>
    %224 = vector.extract_strided_slice %223 {offsets = [0, 0], sizes = [8, 128], strides = [1, 1]} : vector<8x512xf32> to vector<8x128xf32>
    %225 = arith.negf %224 : vector<8x128xf32>
    %226 = math.exp %225 : vector<8x128xf32>
    %cst_81 = arith.constant 1.000000e+00 : f32
    %227 = vector.broadcast %cst_81 : f32 to vector<8x128xf32>
    %228 = arith.addf %227, %226 : vector<8x128xf32>
    %229 = arith.divf %227, %228 : vector<8x128xf32>
    %230 = vector.extract_strided_slice %223 {offsets = [0, 128], sizes = [8, 128], strides = [1, 1]} : vector<8x512xf32> to vector<8x128xf32>
    %231 = arith.negf %230 : vector<8x128xf32>
    %232 = math.exp %231 : vector<8x128xf32>
    %cst_82 = arith.constant 1.000000e+00 : f32
    %233 = vector.broadcast %cst_82 : f32 to vector<8x128xf32>
    %234 = arith.addf %233, %232 : vector<8x128xf32>
    %235 = arith.divf %233, %234 : vector<8x128xf32>
    %236 = vector.extract_strided_slice %223 {offsets = [0, 256], sizes = [8, 128], strides = [1, 1]} : vector<8x512xf32> to vector<8x128xf32>
    %237 = math.tanh %236 : vector<8x128xf32>
    %238 = vector.extract_strided_slice %223 {offsets = [0, 384], sizes = [8, 128], strides = [1, 1]} : vector<8x512xf32> to vector<8x128xf32>
    %239 = arith.negf %238 : vector<8x128xf32>
    %240 = math.exp %239 : vector<8x128xf32>
    %cst_83 = arith.constant 1.000000e+00 : f32
    %241 = vector.broadcast %cst_83 : f32 to vector<8x128xf32>
    %242 = arith.addf %241, %240 : vector<8x128xf32>
    %243 = arith.divf %241, %242 : vector<8x128xf32>
    %244 = arith.mulf %235, %199 : vector<8x128xf32>
    %245 = arith.mulf %229, %237 : vector<8x128xf32>
    %246 = arith.addf %244, %245 : vector<8x128xf32>
    %247 = math.tanh %246 : vector<8x128xf32>
    %248 = arith.mulf %243, %247 : vector<8x128xf32>
    %249 = arith.truncf %248 : vector<8x128xf32> to vector<8x128xbf16>
    %cst_84 = arith.constant dense<0.000000e+00> : vector<8x128xf32>
    %250 = tpu.matmul %249, %77, %cst_84 {dimension_numbers = #tpu.dot_dimension_numbers<[1], [0], [0], [1], [0, 0, 1, 1], [], []>} : vector<8x128xbf16>, vector<128x128xbf16>, vector<8x128xf32> -> vector<8x128xf32>
    %251 = arith.addf %250, %29 : vector<8x128xf32>
    %cst_85 = arith.constant dense<0xFF800000> : vector<8xf32>
    %252 = vector.multi_reduction <maximumf>, %251, %cst_85 [1] : vector<8x128xf32> to vector<8xf32>
    %253 = vector.shape_cast %252 : vector<8xf32> to vector<8x1xf32>
    %254 = vector.broadcast %253 : vector<8x1xf32> to vector<8x128xf32>
    %255 = arith.subf %251, %254 : vector<8x128xf32>
    %256 = math.exp %255 : vector<8x128xf32>
    %257 = arith.mulf %256, %4 : vector<8x128xf32>
    %cst_86 = arith.constant dense<0.000000e+00> : vector<8xf32>
    %258 = vector.multi_reduction <add>, %257, %cst_86 [1] : vector<8x128xf32> to vector<8xf32>
    %259 = vector.shape_cast %258 : vector<8xf32> to vector<8x1xf32>
    %cst_87 = arith.constant 1.000000e-16 : f32
    %260 = vector.broadcast %cst_87 : f32 to vector<8x1xf32>
    %261 = arith.addf %259, %260 : vector<8x1xf32>
    %262 = tpu.reciprocal %261 {approx = true} : vector<8x1xf32> -> vector<8x1xf32>
    %263 = vector.broadcast %262 : vector<8x1xf32> to vector<8x128xf32>
    %264 = arith.mulf %257, %263 : vector<8x128xf32>
    %265 = arith.truncf %264 : vector<8x128xf32> to vector<8x128xbf16>
    %cst_88 = arith.constant dense<0.000000e+00> : vector<8x128xf32>
    %266 = tpu.matmul %265, %76, %cst_88 {dimension_numbers = #tpu.dot_dimension_numbers<[1], [0], [0], [1], [0, 0, 1, 1], [], []>} : vector<8x128xbf16>, vector<128x128xbf16>, vector<8x128xf32> -> vector<8x128xf32>
    %267 = tpu.concatenate %248, %266 in 1 : vector<8x128xf32>, vector<8x128xf32> -> vector<8x256xf32>
    %c4_i32_89 = arith.constant 4 : i32
    %268 = arith.truncf %267 : vector<8x256xf32> to vector<8x256xbf16>
    %cst_90 = arith.constant dense<0.000000e+00> : vector<8x512xf32>
    %269 = tpu.matmul %268, %9, %cst_90 {dimension_numbers = #tpu.dot_dimension_numbers<[1], [0], [0], [1], [0, 0, 1, 1], [], []>} : vector<8x256xbf16>, vector<256x512xbf16>, vector<8x512xf32> -> vector<8x512xf32>
    %270 = arith.addf %269, %20 : vector<8x512xf32>
    %271 = vector.extract_strided_slice %270 {offsets = [0, 0], sizes = [8, 128], strides = [1, 1]} : vector<8x512xf32> to vector<8x128xf32>
    %272 = arith.negf %271 : vector<8x128xf32>
    %273 = math.exp %272 : vector<8x128xf32>
    %cst_91 = arith.constant 1.000000e+00 : f32
    %274 = vector.broadcast %cst_91 : f32 to vector<8x128xf32>
    %275 = arith.addf %274, %273 : vector<8x128xf32>
    %276 = arith.divf %274, %275 : vector<8x128xf32>
    %277 = vector.extract_strided_slice %270 {offsets = [0, 128], sizes = [8, 128], strides = [1, 1]} : vector<8x512xf32> to vector<8x128xf32>
    %278 = arith.negf %277 : vector<8x128xf32>
    %279 = math.exp %278 : vector<8x128xf32>
    %cst_92 = arith.constant 1.000000e+00 : f32
    %280 = vector.broadcast %cst_92 : f32 to vector<8x128xf32>
    %281 = arith.addf %280, %279 : vector<8x128xf32>
    %282 = arith.divf %280, %281 : vector<8x128xf32>
    %283 = vector.extract_strided_slice %270 {offsets = [0, 256], sizes = [8, 128], strides = [1, 1]} : vector<8x512xf32> to vector<8x128xf32>
    %284 = math.tanh %283 : vector<8x128xf32>
    %285 = vector.extract_strided_slice %270 {offsets = [0, 384], sizes = [8, 128], strides = [1, 1]} : vector<8x512xf32> to vector<8x128xf32>
    %286 = arith.negf %285 : vector<8x128xf32>
    %287 = math.exp %286 : vector<8x128xf32>
    %cst_93 = arith.constant 1.000000e+00 : f32
    %288 = vector.broadcast %cst_93 : f32 to vector<8x128xf32>
    %289 = arith.addf %288, %287 : vector<8x128xf32>
    %290 = arith.divf %288, %289 : vector<8x128xf32>
    %291 = arith.mulf %282, %246 : vector<8x128xf32>
    %292 = arith.mulf %276, %284 : vector<8x128xf32>
    %293 = arith.addf %291, %292 : vector<8x128xf32>
    %294 = math.tanh %293 : vector<8x128xf32>
    %295 = arith.mulf %290, %294 : vector<8x128xf32>
    %296 = arith.truncf %295 : vector<8x128xf32> to vector<8x128xbf16>
    %cst_94 = arith.constant dense<0.000000e+00> : vector<8x128xf32>
    %297 = tpu.matmul %296, %77, %cst_94 {dimension_numbers = #tpu.dot_dimension_numbers<[1], [0], [0], [1], [0, 0, 1, 1], [], []>} : vector<8x128xbf16>, vector<128x128xbf16>, vector<8x128xf32> -> vector<8x128xf32>
    %298 = arith.addf %297, %29 : vector<8x128xf32>
    %cst_95 = arith.constant dense<0xFF800000> : vector<8xf32>
    %299 = vector.multi_reduction <maximumf>, %298, %cst_95 [1] : vector<8x128xf32> to vector<8xf32>
    %300 = vector.shape_cast %299 : vector<8xf32> to vector<8x1xf32>
    %301 = vector.broadcast %300 : vector<8x1xf32> to vector<8x128xf32>
    %302 = arith.subf %298, %301 : vector<8x128xf32>
    %303 = math.exp %302 : vector<8x128xf32>
    %304 = arith.mulf %303, %4 : vector<8x128xf32>
    %cst_96 = arith.constant dense<0.000000e+00> : vector<8xf32>
    %305 = vector.multi_reduction <add>, %304, %cst_96 [1] : vector<8x128xf32> to vector<8xf32>
    %306 = vector.shape_cast %305 : vector<8xf32> to vector<8x1xf32>
    %cst_97 = arith.constant 1.000000e-16 : f32
    %307 = vector.broadcast %cst_97 : f32 to vector<8x1xf32>
    %308 = arith.addf %306, %307 : vector<8x1xf32>
    %309 = tpu.reciprocal %308 {approx = true} : vector<8x1xf32> -> vector<8x1xf32>
    %310 = vector.broadcast %309 : vector<8x1xf32> to vector<8x128xf32>
    %311 = arith.mulf %304, %310 : vector<8x128xf32>
    %312 = arith.truncf %311 : vector<8x128xf32> to vector<8x128xbf16>
    %cst_98 = arith.constant dense<0.000000e+00> : vector<8x128xf32>
    %313 = tpu.matmul %312, %76, %cst_98 {dimension_numbers = #tpu.dot_dimension_numbers<[1], [0], [0], [1], [0, 0, 1, 1], [], []>} : vector<8x128xbf16>, vector<128x128xbf16>, vector<8x128xf32> -> vector<8x128xf32>
    %314 = tpu.concatenate %295, %313 in 1 : vector<8x128xf32>, vector<8x128xf32> -> vector<8x256xf32>
    %c5_i32_99 = arith.constant 5 : i32
    %315 = arith.truncf %314 : vector<8x256xf32> to vector<8x256xbf16>
    %cst_100 = arith.constant dense<0.000000e+00> : vector<8x512xf32>
    %316 = tpu.matmul %315, %9, %cst_100 {dimension_numbers = #tpu.dot_dimension_numbers<[1], [0], [0], [1], [0, 0, 1, 1], [], []>} : vector<8x256xbf16>, vector<256x512xbf16>, vector<8x512xf32> -> vector<8x512xf32>
    %317 = arith.addf %316, %20 : vector<8x512xf32>
    %318 = vector.extract_strided_slice %317 {offsets = [0, 0], sizes = [8, 128], strides = [1, 1]} : vector<8x512xf32> to vector<8x128xf32>
    %319 = arith.negf %318 : vector<8x128xf32>
    %320 = math.exp %319 : vector<8x128xf32>
    %cst_101 = arith.constant 1.000000e+00 : f32
    %321 = vector.broadcast %cst_101 : f32 to vector<8x128xf32>
    %322 = arith.addf %321, %320 : vector<8x128xf32>
    %323 = arith.divf %321, %322 : vector<8x128xf32>
    %324 = vector.extract_strided_slice %317 {offsets = [0, 128], sizes = [8, 128], strides = [1, 1]} : vector<8x512xf32> to vector<8x128xf32>
    %325 = arith.negf %324 : vector<8x128xf32>
    %326 = math.exp %325 : vector<8x128xf32>
    %cst_102 = arith.constant 1.000000e+00 : f32
    %327 = vector.broadcast %cst_102 : f32 to vector<8x128xf32>
    %328 = arith.addf %327, %326 : vector<8x128xf32>
    %329 = arith.divf %327, %328 : vector<8x128xf32>
    %330 = vector.extract_strided_slice %317 {offsets = [0, 256], sizes = [8, 128], strides = [1, 1]} : vector<8x512xf32> to vector<8x128xf32>
    %331 = math.tanh %330 : vector<8x128xf32>
    %332 = vector.extract_strided_slice %317 {offsets = [0, 384], sizes = [8, 128], strides = [1, 1]} : vector<8x512xf32> to vector<8x128xf32>
    %333 = arith.negf %332 : vector<8x128xf32>
    %334 = math.exp %333 : vector<8x128xf32>
    %cst_103 = arith.constant 1.000000e+00 : f32
    %335 = vector.broadcast %cst_103 : f32 to vector<8x128xf32>
    %336 = arith.addf %335, %334 : vector<8x128xf32>
    %337 = arith.divf %335, %336 : vector<8x128xf32>
    %338 = arith.mulf %329, %293 : vector<8x128xf32>
    %339 = arith.mulf %323, %331 : vector<8x128xf32>
    %340 = arith.addf %338, %339 : vector<8x128xf32>
    %341 = math.tanh %340 : vector<8x128xf32>
    %342 = arith.mulf %337, %341 : vector<8x128xf32>
    %343 = arith.truncf %342 : vector<8x128xf32> to vector<8x128xbf16>
    %cst_104 = arith.constant dense<0.000000e+00> : vector<8x128xf32>
    %344 = tpu.matmul %343, %77, %cst_104 {dimension_numbers = #tpu.dot_dimension_numbers<[1], [0], [0], [1], [0, 0, 1, 1], [], []>} : vector<8x128xbf16>, vector<128x128xbf16>, vector<8x128xf32> -> vector<8x128xf32>
    %345 = arith.addf %344, %29 : vector<8x128xf32>
    %cst_105 = arith.constant dense<0xFF800000> : vector<8xf32>
    %346 = vector.multi_reduction <maximumf>, %345, %cst_105 [1] : vector<8x128xf32> to vector<8xf32>
    %347 = vector.shape_cast %346 : vector<8xf32> to vector<8x1xf32>
    %348 = vector.broadcast %347 : vector<8x1xf32> to vector<8x128xf32>
    %349 = arith.subf %345, %348 : vector<8x128xf32>
    %350 = math.exp %349 : vector<8x128xf32>
    %351 = arith.mulf %350, %4 : vector<8x128xf32>
    %cst_106 = arith.constant dense<0.000000e+00> : vector<8xf32>
    %352 = vector.multi_reduction <add>, %351, %cst_106 [1] : vector<8x128xf32> to vector<8xf32>
    %353 = vector.shape_cast %352 : vector<8xf32> to vector<8x1xf32>
    %cst_107 = arith.constant 1.000000e-16 : f32
    %354 = vector.broadcast %cst_107 : f32 to vector<8x1xf32>
    %355 = arith.addf %353, %354 : vector<8x1xf32>
    %356 = tpu.reciprocal %355 {approx = true} : vector<8x1xf32> -> vector<8x1xf32>
    %357 = vector.broadcast %356 : vector<8x1xf32> to vector<8x128xf32>
    %358 = arith.mulf %351, %357 : vector<8x128xf32>
    %359 = arith.truncf %358 : vector<8x128xf32> to vector<8x128xbf16>
    %cst_108 = arith.constant dense<0.000000e+00> : vector<8x128xf32>
    %360 = tpu.matmul %359, %76, %cst_108 {dimension_numbers = #tpu.dot_dimension_numbers<[1], [0], [0], [1], [0, 0, 1, 1], [], []>} : vector<8x128xbf16>, vector<128x128xbf16>, vector<8x128xf32> -> vector<8x128xf32>
    %361 = tpu.concatenate %342, %360 in 1 : vector<8x128xf32>, vector<8x128xf32> -> vector<8x256xf32>
    %362 = arith.truncf %361 : vector<8x256xf32> to vector<8x256xbf16>
    %cst_109 = arith.constant dense<0.000000e+00> : vector<8x128xf32>
    %363 = tpu.matmul %362, %11, %cst_109 {dimension_numbers = #tpu.dot_dimension_numbers<[1], [0], [0], [1], [0, 0, 1, 1], [], []>} : vector<8x256xbf16>, vector<256x128xbf16>, vector<8x128xf32> -> vector<8x128xf32>
    %364 = arith.addf %363, %22 : vector<8x128xf32>
    %cst_110 = arith.constant 0.000000e+00 : f32
    %365 = vector.broadcast %cst_110 : f32 to vector<8x128xf32>
    %366 = arith.maximumf %364, %365 : vector<8x128xf32>
    %367 = arith.truncf %366 : vector<8x128xf32> to vector<8x128xbf16>
    %cst_111 = arith.constant dense<0.000000e+00> : vector<8x128xf32>
    %368 = tpu.matmul %367, %13, %cst_111 {dimension_numbers = #tpu.dot_dimension_numbers<[1], [0], [0], [1], [0, 0, 1, 1], [], []>} : vector<8x128xbf16>, vector<128x128xbf16>, vector<8x128xf32> -> vector<8x128xf32>
    %369 = arith.addf %368, %24 : vector<8x128xf32>
    %c0_112 = arith.constant 0 : index
    %c0_113 = arith.constant 0 : index
    %370 = vector.load %arg13[%c0_112, %c0_113] : memref<8x128xf32, #tpu.memory_space<vmem>>, vector<8x128xf32>
    tpu.vector_store %arg13[%c0_112, %c0_113], %369 {strides = array<i32>} : memref<8x128xf32, #tpu.memory_space<vmem>>, vector<8x128xf32>,
    return
  }
}

</mosaic_0001>

<llo_original>
// kernel: gcn_forward.1
$region0: #{gcn_forward.1}
  #allocation0 [shape = 'u32[]', space=smem, size = 0x4, offset = 0x4, fixed_abs, tag = 'smem constant byte address 0x4 - core index']
  #allocation1 [shape = 'u32[144,128]{1,0:T(1,128)}', space=vmem, size = 0x12000, scoped, tag = 'internal scratch']
  %s0 = inlined_call_operand.hbm [shape: f32[128,128], index: 0, kind: input, shape index: {}]
  %s1 = inlined_call_operand.hbm [shape: f32[128,128], index: 1, kind: input, shape index: {}]
  %s2 = inlined_call_operand.vmem [shape: f32[8,128], index: 2, kind: input, shape index: {}]
  %s3 = inlined_call_operand.hbm [shape: bf16[128,128], index: 3, kind: input, shape index: {}]
  %s4 = inlined_call_operand.hbm [shape: f32[1,128], index: 4, kind: input, shape index: {}]
  %s5 = inlined_call_operand.hbm [shape: bf16[128,128], index: 5, kind: input, shape index: {}]
  %s6 = inlined_call_operand.vmem [shape: f32[1,128], index: 6, kind: input, shape index: {}]
  %s7 = inlined_call_operand.hbm [shape: bf16[256,512], index: 7, kind: input, shape index: {}]
  %s8 = inlined_call_operand.vmem [shape: f32[1,512], index: 8, kind: input, shape index: {}]
  %s9 = inlined_call_operand.hbm [shape: bf16[256,128], index: 9, kind: input, shape index: {}]
  %s10 = inlined_call_operand.vmem [shape: f32[1,128], index: 10, kind: input, shape index: {}]
  %s11 = inlined_call_operand.hbm [shape: bf16[128,128], index: 11, kind: input, shape index: {}]
  %s12 = inlined_call_operand.vmem [shape: f32[1,128], index: 12, kind: input, shape index: {}]
  %s13 = inlined_call_operand.hbm [shape: f32[8,128], index: 13, kind: output, shape index: {}]
  %s14 = sld [smem:[#allocation0]]
  $region94: #{gcn_forward.1} parent=0
    _
  %s16 = ssub.s32 1, %s14
  %s17 = scalar_select 0, %s16, %s14
  $region1: #{gcn_forward.1} parent=0
    #allocation2 [shape = 'u8[65536]{0}', space=vmem, size = 0x10000, scoped, tag = 'input window, operand 0, single buffered']
    #allocation3 [shape = 's32[1]{0}', space=sflag, size = 0x4, scoped, tag = 'scoped memory for gcn_forward.1']
    #allocation4 [shape = 's32[1]{0}', space=sflag, size = 0x4, scoped, tag = 'scoped memory for gcn_forward.1']
    #allocation5 [shape = 'u8[65536]{0}', space=vmem, size = 0x10000, scoped, tag = 'input window, operand 1, single buffered']
    #allocation6 [shape = 's32[1]{0}', space=sflag, size = 0x4, scoped, tag = 'scoped memory for gcn_forward.1']
    #allocation7 [shape = 'u8[32768]{0}', space=vmem, size = 0x8000, scoped, tag = 'input window, operand 3, single buffered']
    #allocation8 [shape = 'u8[512]{0}', space=vmem, size = 0x400, scoped, tag = 'input window, operand 4, single buffered']
    #allocation9 [shape = 's32[1]{0}', space=sflag, size = 0x4, scoped, tag = 'scoped memory for gcn_forward.1']
    #allocation10 [shape = 'u8[32768]{0}', space=vmem, size = 0x8000, scoped, tag = 'input window, operand 5, single buffered']
    #allocation11 [shape = 'u8[262144]{0}', space=vmem, size = 0x40000, scoped, tag = 'input window, operand 7, single buffered']
    #allocation12 [shape = 's32[1]{0}', space=sflag, size = 0x4, scoped, tag = 'scoped memory for gcn_forward.1']
    #allocation13 [shape = 'u8[65536]{0}', space=vmem, size = 0x10000, scoped, tag = 'input window, operand 9, single buffered']
    #allocation14 [shape = 'u8[32768]{0}', space=vmem, size = 0x8000, scoped, tag = 'input window, operand 11, single buffered']
    #allocation15 [shape = 's32[1]{0}', space=sflag, size = 0x4, scoped, tag = 'scoped memory for gcn_forward.1']
    #allocation16 [shape = 'u8[4096]{0}', space=vmem, size = 0x1000, scoped, tag = 'output window, operand 0, single buffered']
    %18 = vsyncpa [#allocation3], 0
    %19 = vsyncpa [#allocation6], 0
    %20 = vsyncpa [#allocation9], 0
    %21 = vsyncpa [#allocation12], 0
    %22 = vsyncpa [#allocation15], 0
    %23 = vsyncpa [#allocation4], 0
    // Predicated region
    $region2: #{gcn_forward.1} parent=1 // pred_check
      _
    $region3: #{gcn_forward.1} parent=1 // pred_check_branch
      %25 = sbr.rel (0) target = $region5
    $region4: #{gcn_forward.1} parent=1 // pred_region
      %s27 = ssub.s32 2048, 2048
      %28 = vsyncadd [#allocation3], %s27
      %s29 = sshll.u32 [#allocation2], 4
      %s30 = int_to_ptr.vmem [resolvable:$true] %s29
      %35 = dma.hbm_to_vmem [thread:$0]  %s0, 2048, %s30, [#allocation3], 128, 128, 8
    $region5: #{gcn_forward.1} parent=1 // pred_fallthru
      _
    // Predicated region
    $region6: #{gcn_forward.1} parent=1 // pred_check
      _
    $region7: #{gcn_forward.1} parent=1 // pred_check_branch
      %37 = sbr.rel (0) target = $region9
    $region8: #{gcn_forward.1} parent=1 // pred_region
      %s39 = ssub.s32 2048, 2048
      %40 = vsyncadd [#allocation6], %s39
      %s41 = sshll.u32 [#allocation5], 4
      %s42 = int_to_ptr.vmem [resolvable:$true] %s41
      %47 = dma.hbm_to_vmem [thread:$0]  %s1, 2048, %s42, [#allocation6], 128, 128, 8
    $region9: #{gcn_forward.1} parent=1 // pred_fallthru
      _
    // Predicated region
    $region10: #{gcn_forward.1} parent=1 // pred_check
      _
    $region11: #{gcn_forward.1} parent=1 // pred_check_branch
      %49 = sbr.rel (0) target = $region13
    $region12: #{gcn_forward.1} parent=1 // pred_region
      _
    $region13: #{gcn_forward.1} parent=1 // pred_fallthru
      _
    // Predicated region
    $region14: #{gcn_forward.1} parent=1 // pred_check
      _
    $region15: #{gcn_forward.1} parent=1 // pred_check_branch
      %51 = sbr.rel (0) target = $region17
    $region16: #{gcn_forward.1} parent=1 // pred_region
      %s53 = ssub.s32 1024, 1024
      %54 = vsyncadd [#allocation6], %s53
      %s55 = sshll.u32 [#allocation7], 4
      %s56 = int_to_ptr.vmem [resolvable:$true] %s55
      %61 = dma.hbm_to_vmem [thread:$0]  %s3, 1024, %s56, [#allocation6], 64, 64, 4
    $region17: #{gcn_forward.1} parent=1 // pred_fallthru
      _
    // Predicated region
    $region18: #{gcn_forward.1} parent=1 // pred_check
      _
    $region19: #{gcn_forward.1} parent=1 // pred_check_branch
      %63 = sbr.rel (0) target = $region21
    $region20: #{gcn_forward.1} parent=1 // pred_region
      %s65 = ssub.s32 16, 16
      %66 = vsyncadd [#allocation9], %s65
      %s68 = sshll.u32 [#allocation8], 4
      %s69 = int_to_ptr.vmem [resolvable:$true] %s68
      %71 = dma.hbm_to_vmem [thread:$0]  %s4, 16, %s69, [#allocation9]
    $region21: #{gcn_forward.1} parent=1 // pred_fallthru
      _
    // Predicated region
    $region22: #{gcn_forward.1} parent=1 // pred_check
      _
    $region23: #{gcn_forward.1} parent=1 // pred_check_branch
      %73 = sbr.rel (0) target = $region25
    $region24: #{gcn_forward.1} parent=1 // pred_region
      %s75 = ssub.s32 1024, 1024
      %76 = vsyncadd [#allocation9], %s75
      %s77 = sshll.u32 [#allocation10], 4
      %s78 = int_to_ptr.vmem [resolvable:$true] %s77
      %83 = dma.hbm_to_vmem [thread:$0]  %s5, 1024, %s78, [#allocation9], 64, 64, 4
    $region25: #{gcn_forward.1} parent=1 // pred_fallthru
      _
    // Predicated region
    $region26: #{gcn_forward.1} parent=1 // pred_check
      _
    $region27: #{gcn_forward.1} parent=1 // pred_check_branch
      %85 = sbr.rel (0) target = $region29
    $region28: #{gcn_forward.1} parent=1 // pred_region
      _
    $region29: #{gcn_forward.1} parent=1 // pred_fallthru
      _
    // Predicated region
    $region30: #{gcn_forward.1} parent=1 // pred_check
      _
    $region31: #{gcn_forward.1} parent=1 // pred_check_branch
      %87 = sbr.rel (0) target = $region33
    $region32: #{gcn_forward.1} parent=1 // pred_region
      %s89 = ssub.s32 8192, 8192
      %90 = vsyncadd [#allocation12], %s89
      %s91 = sshll.u32 [#allocation11], 4
      %s92 = int_to_ptr.vmem [resolvable:$true] %s91
      %97 = dma.hbm_to_vmem [thread:$0]  %s7, 8192, %s92, [#allocation12], 256, 256, 16
    $region33: #{gcn_forward.1} parent=1 // pred_fallthru
      _
    // Predicated region
    $region34: #{gcn_forward.1} parent=1 // pred_check
      _
    $region35: #{gcn_forward.1} parent=1 // pred_check_branch
      %99 = sbr.rel (0) target = $region37
    $region36: #{gcn_forward.1} parent=1 // pred_region
      _
    $region37: #{gcn_forward.1} parent=1 // pred_fallthru
      _
    // Predicated region
    $region38: #{gcn_forward.1} parent=1 // pred_check
      _
    $region39: #{gcn_forward.1} parent=1 // pred_check_branch
      %101 = sbr.rel (0) target = $region41
    $region40: #{gcn_forward.1} parent=1 // pred_region
      %s103 = ssub.s32 2048, 2048
      %104 = vsyncadd [#allocation12], %s103
      %s105 = sshll.u32 [#allocation13], 4
      %s106 = int_to_ptr.vmem [resolvable:$true] %s105
      %111 = dma.hbm_to_vmem [thread:$0]  %s9, 2048, %s106, [#allocation12], 64, 64, 4
    $region41: #{gcn_forward.1} parent=1 // pred_fallthru
      _
    // Predicated region
    $region42: #{gcn_forward.1} parent=1 // pred_check
      _
    $region43: #{gcn_forward.1} parent=1 // pred_check_branch
      %113 = sbr.rel (0) target = $region45
    $region44: #{gcn_forward.1} parent=1 // pred_region
      _
    $region45: #{gcn_forward.1} parent=1 // pred_fallthru
      _
    // Predicated region
    $region46: #{gcn_forward.1} parent=1 // pred_check
      _
    $region47: #{gcn_forward.1} parent=1 // pred_check_branch
      %115 = sbr.rel (0) target = $region49
    $region48: #{gcn_forward.1} parent=1 // pred_region
      %s117 = ssub.s32 1024, 1024
      %118 = vsyncadd [#allocation15], %s117
      %s119 = sshll.u32 [#allocation14], 4
      %s120 = int_to_ptr.vmem [resolvable:$true] %s119
      %125 = dma.hbm_to_vmem [thread:$0]  %s11, 1024, %s120, [#allocation15], 64, 64, 4
    $region49: #{gcn_forward.1} parent=1 // pred_fallthru
      _
    // Predicated region
    $region50: #{gcn_forward.1} parent=1 // pred_check
      _
    $region51: #{gcn_forward.1} parent=1 // pred_check_branch
      %127 = sbr.rel (0) target = $region53
    $region52: #{gcn_forward.1} parent=1 // pred_region
      _
    $region53: #{gcn_forward.1} parent=1 // pred_fallthru
      _
    // Predicated region
    $region54: #{gcn_forward.1} parent=1 // pred_check
      _
    $region55: #{gcn_forward.1} parent=1 // pred_check_branch
      %129 = sbr.rel (0) target = $region57
    $region56: #{gcn_forward.1} parent=1 // pred_region
      %130 = dma.done [#allocation3], 2048
    $region57: #{gcn_forward.1} parent=1 // pred_fallthru
      _
    // Predicated region
    $region58: #{gcn_forward.1} parent=1 // pred_check
      _
    $region59: #{gcn_forward.1} parent=1 // pred_check_branch
      %132 = sbr.rel (0) target = $region61
    $region60: #{gcn_forward.1} parent=1 // pred_region
      %133 = dma.done [#allocation6], 2048
    $region61: #{gcn_forward.1} parent=1 // pred_fallthru
      _
    // Predicated region
    $region62: #{gcn_forward.1} parent=1 // pred_check
      _
    $region63: #{gcn_forward.1} parent=1 // pred_check_branch
      %135 = sbr.rel (0) target = $region65
    $region64: #{gcn_forward.1} parent=1 // pred_region
      %136 = dma.done [#allocation6], 1024
    $region65: #{gcn_forward.1} parent=1 // pred_fallthru
      _
    // Predicated region
    $region66: #{gcn_forward.1} parent=1 // pred_check
      _
    $region67: #{gcn_forward.1} parent=1 // pred_check_branch
      %138 = sbr.rel (0) target = $region69
    $region68: #{gcn_forward.1} parent=1 // pred_region
      %139 = dma.done [#allocation9], 16
    $region69: #{gcn_forward.1} parent=1 // pred_fallthru
      _
    // Predicated region
    $region70: #{gcn_forward.1} parent=1 // pred_check
      _
    $region71: #{gcn_forward.1} parent=1 // pred_check_branch
      %141 = sbr.rel (0) target = $region73
    $region72: #{gcn_forward.1} parent=1 // pred_region
      %142 = dma.done [#allocation9], 1024
    $region73: #{gcn_forward.1} parent=1 // pred_fallthru
      _
    // Predicated region
    $region74: #{gcn_forward.1} parent=1 // pred_check
      _
    $region75: #{gcn_forward.1} parent=1 // pred_check_branch
      %144 = sbr.rel (0) target = $region77
    $region76: #{gcn_forward.1} parent=1 // pred_region
      %145 = dma.done [#allocation12], 8192
    $region77: #{gcn_forward.1} parent=1 // pred_fallthru
      _
    // Predicated region
    $region78: #{gcn_forward.1} parent=1 // pred_check
      _
    $region79: #{gcn_forward.1} parent=1 // pred_check_branch
      %147 = sbr.rel (0) target = $region81
    $region80: #{gcn_forward.1} parent=1 // pred_region
      %148 = dma.done [#allocation12], 2048
    $region81: #{gcn_forward.1} parent=1 // pred_fallthru
      _
    // Predicated region
    $region82: #{gcn_forward.1} parent=1 // pred_check
      _
    $region83: #{gcn_forward.1} parent=1 // pred_check_branch
      %150 = sbr.rel (0) target = $region85
    $region84: #{gcn_forward.1} parent=1 // pred_region
      %151 = dma.done [#allocation15], 1024
    $region85: #{gcn_forward.1} parent=1 // pred_fallthru
      _
    %v153 = vld [vmem:[#allocation2] sm:$0xff]
    %v154 = vld [vmem:[#allocation2 + $0x8] sm:$0xff]
    %v155 = vld [vmem:[#allocation2 + $0x10] sm:$0xff]
    %v156 = vld [vmem:[#allocation2 + $0x18] sm:$0xff]
    %v157 = vld [vmem:[#allocation2 + $0x20] sm:$0xff]
    %v158 = vld [vmem:[#allocation2 + $0x28] sm:$0xff]
    %v159 = vld [vmem:[#allocation2 + $0x30] sm:$0xff]
    %v160 = vld [vmem:[#allocation2 + $0x38] sm:$0xff]
    %v161 = vld [vmem:[#allocation2 + $0x40] sm:$0xff]
    %v162 = vld [vmem:[#allocation2 + $0x48] sm:$0xff]
    %v163 = vld [vmem:[#allocation2 + $0x50] sm:$0xff]
    %v164 = vld [vmem:[#allocation2 + $0x58] sm:$0xff]
    %v165 = vld [vmem:[#allocation2 + $0x60] sm:$0xff]
    %v166 = vld [vmem:[#allocation2 + $0x68] sm:$0xff]
    %v167 = vld [vmem:[#allocation2 + $0x70] sm:$0xff]
    %v168 = vld [vmem:[#allocation2 + $0x78] sm:$0xff]
    %v169 = vpack.c.bf16 %v154, %v153
    %v170 = vpack.c.bf16 %v156, %v155
    %v171 = vpack.c.bf16 %v158, %v157
    %v172 = vpack.c.bf16 %v160, %v159
    %v173 = vpack.c.bf16 %v162, %v161
    %v174 = vpack.c.bf16 %v164, %v163
    %v175 = vpack.c.bf16 %v166, %v165
    %v176 = vpack.c.bf16 %v168, %v167
    %v177 = vld [vmem:[#allocation5] sm:$0xff]
    %v178 = vld [vmem:[#allocation5 + $0x8] sm:$0xff]
    %v179 = vld [vmem:[#allocation5 + $0x10] sm:$0xff]
    %v180 = vld [vmem:[#allocation5 + $0x18] sm:$0xff]
    %v181 = vld [vmem:[#allocation5 + $0x20] sm:$0xff]
    %v182 = vld [vmem:[#allocation5 + $0x28] sm:$0xff]
    %v183 = vld [vmem:[#allocation5 + $0x30] sm:$0xff]
    %v184 = vld [vmem:[#allocation5 + $0x38] sm:$0xff]
    %v185 = vld [vmem:[#allocation5 + $0x40] sm:$0xff]
    %v186 = vld [vmem:[#allocation5 + $0x48] sm:$0xff]
    %v187 = vld [vmem:[#allocation5 + $0x50] sm:$0xff]
    %v188 = vld [vmem:[#allocation5 + $0x58] sm:$0xff]
    %v189 = vld [vmem:[#allocation5 + $0x60] sm:$0xff]
    %v190 = vld [vmem:[#allocation5 + $0x68] sm:$0xff]
    %v191 = vld [vmem:[#allocation5 + $0x70] sm:$0xff]
    %v192 = vld [vmem:[#allocation5 + $0x78] sm:$0xff]
    %v193 = vpack.c.bf16 %v178, %v177
    %v194 = vpack.c.bf16 %v180, %v179
    %v195 = vpack.c.bf16 %v182, %v181
    %v196 = vpack.c.bf16 %v184, %v183
    %v197 = vpack.c.bf16 %v186, %v185
    %v198 = vpack.c.bf16 %v188, %v187
    %v199 = vpack.c.bf16 %v190, %v189
    %v200 = vpack.c.bf16 %v192, %v191
    %v201 = vld [vmem:[%s2] sm:$0xff]
    %v202 = vld [vmem:[#allocation7] sm:$0xf]
    %v203 = vld [vmem:[#allocation7 + $0x4] sm:$0xf]
    %v204 = vld [vmem:[#allocation7 + $0x8] sm:$0xf]
    %v205 = vld [vmem:[#allocation7 + $0xc] sm:$0xf]
    %v206 = vld [vmem:[#allocation7 + $0x10] sm:$0xf]
    %v207 = vld [vmem:[#allocation7 + $0x14] sm:$0xf]
    %v208 = vld [vmem:[#allocation7 + $0x18] sm:$0xf]
    %v209 = vld [vmem:[#allocation7 + $0x1c] sm:$0xf]
    %v210 = vld [vmem:[#allocation7 + $0x20] sm:$0xf]
    %v211 = vld [vmem:[#allocation7 + $0x24] sm:$0xf]
    %v212 = vld [vmem:[#allocation7 + $0x28] sm:$0xf]
    %v213 = vld [vmem:[#allocation7 + $0x2c] sm:$0xf]
    %v214 = vld [vmem:[#allocation7 + $0x30] sm:$0xf]
    %v215 = vld [vmem:[#allocation7 + $0x34] sm:$0xf]
    %v216 = vld [vmem:[#allocation7 + $0x38] sm:$0xf]
    %v217 = vld [vmem:[#allocation7 + $0x3c] sm:$0xf]
    %v218 = vld [vmem:[#allocation8] sm:$0x1]
    %v219 = vld [vmem:[#allocation10] sm:$0xf]
    %v220 = vld [vmem:[#allocation10 + $0x4] sm:$0xf]
    %v221 = vld [vmem:[#allocation10 + $0x8] sm:$0xf]
    %v222 = vld [vmem:[#allocation10 + $0xc] sm:$0xf]
    %v223 = vld [vmem:[#allocation10 + $0x10] sm:$0xf]
    %v224 = vld [vmem:[#allocation10 + $0x14] sm:$0xf]
    %v225 = vld [vmem:[#allocation10 + $0x18] sm:$0xf]
    %v226 = vld [vmem:[#allocation10 + $0x1c] sm:$0xf]
    %v227 = vld [vmem:[#allocation10 + $0x20] sm:$0xf]
    %v228 = vld [vmem:[#allocation10 + $0x24] sm:$0xf]
    %v229 = vld [vmem:[#allocation10 + $0x28] sm:$0xf]
    %v230 = vld [vmem:[#allocation10 + $0x2c] sm:$0xf]
    %v231 = vld [vmem:[#allocation10 + $0x30] sm:$0xf]
    %v232 = vld [vmem:[#allocation10 + $0x34] sm:$0xf]
    %v233 = vld [vmem:[#allocation10 + $0x38] sm:$0xf]
    %v234 = vld [vmem:[#allocation10 + $0x3c] sm:$0xf]
    %v235 = vld [vmem:[%s6] sm:$0x1]
    %v236 = vld [vmem:[#allocation11] sm:$0xff]
    %v237 = vld [vmem:[#allocation11 + $0x8] sm:$0xff]
    %v238 = vld [vmem:[#allocation11 + $0x10] sm:$0xff]
    %v239 = vld [vmem:[#allocation11 + $0x18] sm:$0xff]
    %v240 = vld [vmem:[#allocation11 + $0x20] sm:$0xff]
    %v241 = vld [vmem:[#allocation11 + $0x28] sm:$0xff]
    %v242 = vld [vmem:[#allocation11 + $0x30] sm:$0xff]
    %v243 = vld [vmem:[#allocation11 + $0x38] sm:$0xff]
    %v244 = vld [vmem:[#allocation11 + $0x40] sm:$0xff]
    %v245 = vld [vmem:[#allocation11 + $0x48] sm:$0xff]
    %v246 = vld [vmem:[#allocation11 + $0x50] sm:$0xff]
    %v247 = vld [vmem:[#allocation11 + $0x58] sm:$0xff]
    %v248 = vld [vmem:[#allocation11 + $0x60] sm:$0xff]
    %v249 = vld [vmem:[#allocation11 + $0x68] sm:$0xff]
    %v250 = vld [vmem:[#allocation11 + $0x70] sm:$0xff]
    %v251 = vld [vmem:[#allocation11 + $0x78] sm:$0xff]
    %v252 = vld [vmem:[#allocation11 + $0x80] sm:$0xff]
    %v253 = vld [vmem:[#allocation11 + $0x88] sm:$0xff]
    %v254 = vld [vmem:[#allocation11 + $0x90] sm:$0xff]
    %v255 = vld [vmem:[#allocation11 + $0x98] sm:$0xff]
    %v256 = vld [vmem:[#allocation11 + $0xa0] sm:$0xff]
    %v257 = vld [vmem:[#allocation11 + $0xa8] sm:$0xff]
    %v258 = vld [vmem:[#allocation11 + $0xb0] sm:$0xff]
    %v259 = vld [vmem:[#allocation11 + $0xb8] sm:$0xff]
    %v260 = vld [vmem:[#allocation11 + $0xc0] sm:$0xff]
    %v261 = vld [vmem:[#allocation11 + $0xc8] sm:$0xff]
    %v262 = vld [vmem:[#allocation11 + $0xd0] sm:$0xff]
    %v263 = vld [vmem:[#allocation11 + $0xd8] sm:$0xff]
    %v264 = vld [vmem:[#allocation11 + $0xe0] sm:$0xff]
    %v265 = vld [vmem:[#allocation11 + $0xe8] sm:$0xff]
    %v266 = vld [vmem:[#allocation11 + $0xf0] sm:$0xff]
    %v267 = vld [vmem:[#allocation11 + $0xf8] sm:$0xff]
    %v268 = vld [vmem:[#allocation11 + $0x100] sm:$0xff]
    %v269 = vld [vmem:[#allocation11 + $0x108] sm:$0xff]
    %v270 = vld [vmem:[#allocation11 + $0x110] sm:$0xff]
    %v271 = vld [vmem:[#allocation11 + $0x118] sm:$0xff]
    %v272 = vld [vmem:[#allocation11 + $0x120] sm:$0xff]
    %v273 = vld [vmem:[#allocation11 + $0x128] sm:$0xff]
    %v274 = vld [vmem:[#allocation11 + $0x130] sm:$0xff]
    %v275 = vld [vmem:[#allocation11 + $0x138] sm:$0xff]
    %v276 = vld [vmem:[#allocation11 + $0x140] sm:$0xff]
    %v277 = vld [vmem:[#allocation11 + $0x148] sm:$0xff]
    %v278 = vld [vmem:[#allocation11 + $0x150] sm:$0xff]
    %v279 = vld [vmem:[#allocation11 + $0x158] sm:$0xff]
    %v280 = vld [vmem:[#allocation11 + $0x160] sm:$0xff]
    %v281 = vld [vmem:[#allocation11 + $0x168] sm:$0xff]
    %v282 = vld [vmem:[#allocation11 + $0x170] sm:$0xff]
    %v283 = vld [vmem:[#allocation11 + $0x178] sm:$0xff]
    %v284 = vld [vmem:[#allocation11 + $0x180] sm:$0xff]
    %v285 = vld [vmem:[#allocation11 + $0x188] sm:$0xff]
    %v286 = vld [vmem:[#allocation11 + $0x190] sm:$0xff]
    %v287 = vld [vmem:[#allocation11 + $0x198] sm:$0xff]
    %v288 = vld [vmem:[#allocation11 + $0x1a0] sm:$0xff]
    %v289 = vld [vmem:[#allocation11 + $0x1a8] sm:$0xff]
    %v290 = vld [vmem:[#allocation11 + $0x1b0] sm:$0xff]
    %v291 = vld [vmem:[#allocation11 + $0x1b8] sm:$0xff]
    %v292 = vld [vmem:[#allocation11 + $0x1c0] sm:$0xff]
    %v293 = vld [vmem:[#allocation11 + $0x1c8] sm:$0xff]
    %v294 = vld [vmem:[#allocation11 + $0x1d0] sm:$0xff]
    %v295 = vld [vmem:[#allocation11 + $0x1d8] sm:$0xff]
    %v296 = vld [vmem:[#allocation11 + $0x1e0] sm:$0xff]
    %v297 = vld [vmem:[#allocation11 + $0x1e8] sm:$0xff]
    %v298 = vld [vmem:[#allocation11 + $0x1f0] sm:$0xff]
    %v299 = vld [vmem:[#allocation11 + $0x1f8] sm:$0xff]
    %v300 = vld [vmem:[%s8] sm:$0xf]
    %v301 = vld [vmem:[#allocation13] sm:$0xf]
    %v302 = vld [vmem:[#allocation13 + $0x4] sm:$0xf]
    %v303 = vld [vmem:[#allocation13 + $0x8] sm:$0xf]
    %v304 = vld [vmem:[#allocation13 + $0xc] sm:$0xf]
    %v305 = vld [vmem:[#allocation13 + $0x10] sm:$0xf]
    %v306 = vld [vmem:[#allocation13 + $0x14] sm:$0xf]
    %v307 = vld [vmem:[#allocation13 + $0x18] sm:$0xf]
    %v308 = vld [vmem:[#allocation13 + $0x1c] sm:$0xf]
    %v309 = vld [vmem:[#allocation13 + $0x20] sm:$0xf]
    %v310 = vld [vmem:[#allocation13 + $0x24] sm:$0xf]
    %v311 = vld [vmem:[#allocation13 + $0x28] sm:$0xf]
    %v312 = vld [vmem:[#allocation13 + $0x2c] sm:$0xf]
    %v313 = vld [vmem:[#allocation13 + $0x30] sm:$0xf]
    %v314 = vld [vmem:[#allocation13 + $0x34] sm:$0xf]
    %v315 = vld [vmem:[#allocation13 + $0x38] sm:$0xf]
    %v316 = vld [vmem:[#allocation13 + $0x3c] sm:$0xf]
    %v317 = vld [vmem:[#allocation13 + $0x40] sm:$0xf]
    %v318 = vld [vmem:[#allocation13 + $0x44] sm:$0xf]
    %v319 = vld [vmem:[#allocation13 + $0x48] sm:$0xf]
    %v320 = vld [vmem:[#allocation13 + $0x4c] sm:$0xf]
    %v321 = vld [vmem:[#allocation13 + $0x50] sm:$0xf]
    %v322 = vld [vmem:[#allocation13 + $0x54] sm:$0xf]
    %v323 = vld [vmem:[#allocation13 + $0x58] sm:$0xf]
    %v324 = vld [vmem:[#allocation13 + $0x5c] sm:$0xf]
    %v325 = vld [vmem:[#allocation13 + $0x60] sm:$0xf]
    %v326 = vld [vmem:[#allocation13 + $0x64] sm:$0xf]
    %v327 = vld [vmem:[#allocation13 + $0x68] sm:$0xf]
    %v328 = vld [vmem:[#allocation13 + $0x6c] sm:$0xf]
    %v329 = vld [vmem:[#allocation13 + $0x70] sm:$0xf]
    %v330 = vld [vmem:[#allocation13 + $0x74] sm:$0xf]
    %v331 = vld [vmem:[#allocation13 + $0x78] sm:$0xf]
    %v332 = vld [vmem:[#allocation13 + $0x7c] sm:$0xf]
    %v333 = vld [vmem:[%s10] sm:$0x1]
    %v334 = vld [vmem:[#allocation14] sm:$0xf]
    %v335 = vld [vmem:[#allocation14 + $0x4] sm:$0xf]
    %v336 = vld [vmem:[#allocation14 + $0x8] sm:$0xf]
    %v337 = vld [vmem:[#allocation14 + $0xc] sm:$0xf]
    %v338 = vld [vmem:[#allocation14 + $0x10] sm:$0xf]
    %v339 = vld [vmem:[#allocation14 + $0x14] sm:$0xf]
    %v340 = vld [vmem:[#allocation14 + $0x18] sm:$0xf]
    %v341 = vld [vmem:[#allocation14 + $0x1c] sm:$0xf]
    %v342 = vld [vmem:[#allocation14 + $0x20] sm:$0xf]
    %v343 = vld [vmem:[#allocation14 + $0x24] sm:$0xf]
    %v344 = vld [vmem:[#allocation14 + $0x28] sm:$0xf]
    %v345 = vld [vmem:[#allocation14 + $0x2c] sm:$0xf]
    %v346 = vld [vmem:[#allocation14 + $0x30] sm:$0xf]
    %v347 = vld [vmem:[#allocation14 + $0x34] sm:$0xf]
    %v348 = vld [vmem:[#allocation14 + $0x38] sm:$0xf]
    %v349 = vld [vmem:[#allocation14 + $0x3c] sm:$0xf]
    %v350 = vld [vmem:[%s12] sm:$0x1]
    %v352 = vlaneseq
    %v353 = vshrl.u32 %v352, 7
    %v354 = vsub.s32 0, %v353
    %v355 = vrot.slane %v218, %v354
    %v358 = vlaneseq
    %v359 = vshrl.u32 %v358, 7
    %v360 = vsub.s32 0, %v359
    %v361 = vrot.slane %v235, %v360
    %v364 = vlaneseq
    %v365 = vshrl.u32 %v364, 7
    %v366 = vsub.s32 0, %v365
    %v367 = vrot.slane %v300, %v366
    %v368 = vlaneseq
    %v369 = vshrl.u32 %v368, 7
    %v370 = vsub.s32 1, %v369
    %v371 = vrot.slane %v300, %v370
    %v372 = vlaneseq
    %v373 = vshrl.u32 %v372, 7
    %v374 = vsub.s32 2, %v373
    %v375 = vrot.slane %v300, %v374
    %v376 = vlaneseq
    %v377 = vshrl.u32 %v376, 7
    %v378 = vsub.s32 3, %v377
    %v379 = vrot.slane %v300, %v378
    %v385 = vlaneseq
    %v386 = vshrl.u32 %v385, 7
    %v387 = vsub.s32 0, %v386
    %v388 = vrot.slane %v333, %v387
    %v391 = vlaneseq
    %v392 = vshrl.u32 %v391, 7
    %v393 = vsub.s32 0, %v392
    %v394 = vrot.slane %v350, %v393
    %vm396 = vcmp.gt.f32.partialorder %v201, 0.0
    %v397 = vsel %vm396, 0.0, -1e+30
    %v414 = vunpack.c.l.b16 %v202
    %v415 = vunpack.c.l.b16 %v203
    %v416 = vunpack.c.l.b16 %v204
    %v417 = vunpack.c.l.b16 %v205
    %v418 = vunpack.c.l.b16 %v206
    %v419 = vunpack.c.l.b16 %v207
    %v420 = vunpack.c.l.b16 %v208
    %v421 = vunpack.c.l.b16 %v209
    %v422 = vunpack.c.l.b16 %v210
    %v423 = vunpack.c.l.b16 %v211
    %v424 = vunpack.c.l.b16 %v212
    %v425 = vunpack.c.l.b16 %v213
    %v426 = vunpack.c.l.b16 %v214
    %v427 = vunpack.c.l.b16 %v215
    %v428 = vunpack.c.l.b16 %v216
    %v429 = vunpack.c.l.b16 %v217
    %v430 = vpack.c.b16 %v415, %v414
    %v431 = vpack.c.b16 %v417, %v416
    %v432 = vpack.c.b16 %v419, %v418
    %v433 = vpack.c.b16 %v421, %v420
    %v434 = vpack.c.b16 %v423, %v422
    %v435 = vpack.c.b16 %v425, %v424
    %v436 = vpack.c.b16 %v427, %v426
    %v437 = vpack.c.b16 %v429, %v428
    %446 = vmatprep.subr.bf16.mxu0 0
    %447 = vmatpush1.bf16.msra.mxu0 %v430
    %448 = vmatprep.subr.bf16.mxu0 0
    %449 = vmatpush1.bf16.msra.mxu0 %v431
    %450 = vmatprep.subr.bf16.mxu0 0
    %451 = vmatpush1.bf16.msra.mxu0 %v432
    %452 = vmatprep.subr.bf16.mxu0 0
    %453 = vmatpush1.bf16.msra.mxu0 %v433
    %454 = vmatprep.subr.bf16.mxu0 0
    %455 = vmatpush1.bf16.msra.mxu0 %v434
    %456 = vmatprep.subr.bf16.mxu0 0
    %457 = vmatpush1.bf16.msra.mxu0 %v435
    %458 = vmatprep.subr.bf16.mxu0 0
    %459 = vmatpush1.bf16.msra.mxu0 %v436
    %460 = vmatprep.subr.bf16.mxu0 0
    %461 = vmatpush1.bf16.msra.mxu0 %v437
    %462 = vmatprep.subr.bf16.mxu0 0
    %463 = vmatpush1.bf16.msra.mxu0 0
    %464 = vmatprep.subr.bf16.mxu0 0
    %465 = vmatpush1.bf16.msra.mxu0 0
    %466 = vmatprep.subr.bf16.mxu0 0
    %467 = vmatpush1.bf16.msra.mxu0 0
    %468 = vmatprep.subr.bf16.mxu0 0
    %469 = vmatpush1.bf16.msra.mxu0 0
    %470 = vmatprep.subr.bf16.mxu0 0
    %471 = vmatpush1.bf16.msra.mxu0 0
    %472 = vmatprep.subr.bf16.mxu0 0
    %473 = vmatpush1.bf16.msra.mxu0 0
    %474 = vmatprep.subr.bf16.mxu0 0
    %475 = vmatpush1.bf16.msra.mxu0 0
    %476 = vmatprep.subr.bf16.mxu0 0
    %477 = vmatpush1.bf16.msra.mxu0 0
    %478 = vmatprep.mubr.bf16.mxu0 0
    %479 = vmatmul.mubr.bf16.gmra.mrb[0].mxu0 %v169
    %v480 = vpop.f32.mrb[0].mxu0
    %v481 = vadd.f32 %v355, %v480
    %v482 = vpop.f32.mrb[0].mxu0
    %v483 = vpop.f32.mrb[0].mxu0
    %v484 = vadd.f32 %v355, %v483
    %v485 = vpop.f32.mrb[0].mxu0
    %486 = vmatprep.mubr.bf16.mxu0 0
    %487 = vmatmul.mubr.bf16.gmra.mrb[0].mxu0 %v170
    %v488 = vpop.f32.mrb[0].mxu0
    %v489 = vadd.f32 %v355, %v488
    %v490 = vpop.f32.mrb[0].mxu0
    %v491 = vpop.f32.mrb[0].mxu0
    %v492 = vadd.f32 %v355, %v491
    %v493 = vpop.f32.mrb[0].mxu0
    %494 = vmatprep.mubr.bf16.mxu0 0
    %495 = vmatmul.mubr.bf16.gmra.mrb[0].mxu0 %v171
    %v496 = vpop.f32.mrb[0].mxu0
    %v497 = vadd.f32 %v355, %v496
    %v498 = vpop.f32.mrb[0].mxu0
    %v499 = vpop.f32.mrb[0].mxu0
    %v500 = vadd.f32 %v355, %v499
    %v501 = vpop.f32.mrb[0].mxu0
    %502 = vmatprep.mubr.bf16.mxu0 0
    %503 = vmatmul.mubr.bf16.gmra.mrb[0].mxu0 %v172
    %v504 = vpop.f32.mrb[0].mxu0
    %v505 = vadd.f32 %v355, %v504
    %v506 = vpop.f32.mrb[0].mxu0
    %v507 = vpop.f32.mrb[0].mxu0
    %v508 = vadd.f32 %v355, %v507
    %v509 = vpop.f32.mrb[0].mxu0
    %510 = vmatprep.mubr.bf16.mxu0 0
    %511 = vmatmul.mubr.bf16.gmra.mrb[0].mxu0 %v173
    %v512 = vpop.f32.mrb[0].mxu0
    %v513 = vadd.f32 %v355, %v512
    %v514 = vpop.f32.mrb[0].mxu0
    %v515 = vpop.f32.mrb[0].mxu0
    %v516 = vadd.f32 %v355, %v515
    %v517 = vpop.f32.mrb[0].mxu0
    %518 = vmatprep.mubr.bf16.mxu0 0
    %519 = vmatmul.mubr.bf16.gmra.mrb[0].mxu0 %v174
    %v520 = vpop.f32.mrb[0].mxu0
    %v521 = vadd.f32 %v355, %v520
    %v522 = vpop.f32.mrb[0].mxu0
    %v523 = vpop.f32.mrb[0].mxu0
    %v524 = vadd.f32 %v355, %v523
    %v525 = vpop.f32.mrb[0].mxu0
    %526 = vmatprep.mubr.bf16.mxu0 0
    %527 = vmatmul.mubr.bf16.gmra.mrb[0].mxu0 %v175
    %v528 = vpop.f32.mrb[0].mxu0
    %v529 = vadd.f32 %v355, %v528
    %v530 = vpop.f32.mrb[0].mxu0
    %v531 = vpop.f32.mrb[0].mxu0
    %v532 = vadd.f32 %v355, %v531
    %v533 = vpop.f32.mrb[0].mxu0
    %534 = vmatprep.mubr.bf16.mxu0 0
    %535 = vmatmul.mubr.bf16.gmra.mrb[0].mxu0 %v176
    %v536 = vpop.f32.mrb[0].mxu0
    %v537 = vadd.f32 %v355, %v536
    %v538 = vpop.f32.mrb[0].mxu0
    %v539 = vpop.f32.mrb[0].mxu0
    %v540 = vadd.f32 %v355, %v539
    %v541 = vpop.f32.mrb[0].mxu0
    %542 = vdwg.mxu0
    %v543 = vmax.f32 %v481, 0.0
    %v544 = vmax.f32 %v484, 0.0
    %v545 = vmax.f32 %v489, 0.0
    %v546 = vmax.f32 %v492, 0.0
    %v547 = vmax.f32 %v497, 0.0
    %v548 = vmax.f32 %v500, 0.0
    %v549 = vmax.f32 %v505, 0.0
    %v550 = vmax.f32 %v508, 0.0
    %v551 = vmax.f32 %v513, 0.0
    %v552 = vmax.f32 %v516, 0.0
    %v553 = vmax.f32 %v521, 0.0
    %v554 = vmax.f32 %v524, 0.0
    %v555 = vmax.f32 %v529, 0.0
    %v556 = vmax.f32 %v532, 0.0
    %v557 = vmax.f32 %v537, 0.0
    %v558 = vmax.f32 %v540, 0.0
    %v559 = vpack.c.bf16 %v544, %v543
    %v560 = vpack.c.bf16 %v546, %v545
    %v561 = vpack.c.bf16 %v548, %v547
    %v562 = vpack.c.bf16 %v550, %v549
    %v563 = vpack.c.bf16 %v552, %v551
    %v564 = vpack.c.bf16 %v554, %v553
    %v565 = vpack.c.bf16 %v556, %v555
    %v566 = vpack.c.bf16 %v558, %v557
    %v583 = vunpack.c.l.b16 %v219
    %v584 = vunpack.c.l.b16 %v220
    %v585 = vunpack.c.l.b16 %v221
    %v586 = vunpack.c.l.b16 %v222
    %v587 = vunpack.c.l.b16 %v223
    %v588 = vunpack.c.l.b16 %v224
    %v589 = vunpack.c.l.b16 %v225
    %v590 = vunpack.c.l.b16 %v226
    %v591 = vunpack.c.l.b16 %v227
    %v592 = vunpack.c.l.b16 %v228
    %v593 = vunpack.c.l.b16 %v229
    %v594 = vunpack.c.l.b16 %v230
    %v595 = vunpack.c.l.b16 %v231
    %v596 = vunpack.c.l.b16 %v232
    %v597 = vunpack.c.l.b16 %v233
    %v598 = vunpack.c.l.b16 %v234
    %v599 = vpack.c.b16 %v584, %v583
    %v600 = vpack.c.b16 %v586, %v585
    %v601 = vpack.c.b16 %v588, %v587
    %v602 = vpack.c.b16 %v590, %v589
    %v603 = vpack.c.b16 %v592, %v591
    %v604 = vpack.c.b16 %v594, %v593
    %v605 = vpack.c.b16 %v596, %v595
    %v606 = vpack.c.b16 %v598, %v597
    %615 = vmatprep.subr.bf16.mxu0 0
    %616 = vmatpush1.bf16.msra.mxu0 %v599
    %617 = vmatprep.subr.bf16.mxu0 0
    %618 = vmatpush1.bf16.msra.mxu0 %v600
    %619 = vmatprep.subr.bf16.mxu0 0
    %620 = vmatpush1.bf16.msra.mxu0 %v601
    %621 = vmatprep.subr.bf16.mxu0 0
    %622 = vmatpush1.bf16.msra.mxu0 %v602
    %623 = vmatprep.subr.bf16.mxu0 0
    %624 = vmatpush1.bf16.msra.mxu0 %v603
    %625 = vmatprep.subr.bf16.mxu0 0
    %626 = vmatpush1.bf16.msra.mxu0 %v604
    %627 = vmatprep.subr.bf16.mxu0 0
    %628 = vmatpush1.bf16.msra.mxu0 %v605
    %629 = vmatprep.subr.bf16.mxu0 0
    %630 = vmatpush1.bf16.msra.mxu0 %v606
    %631 = vmatprep.subr.bf16.mxu0 0
    %632 = vmatpush1.bf16.msra.mxu0 0
    %633 = vmatprep.subr.bf16.mxu0 0
    %634 = vmatpush1.bf16.msra.mxu0 0
    %635 = vmatprep.subr.bf16.mxu0 0
    %636 = vmatpush1.bf16.msra.mxu0 0
    %637 = vmatprep.subr.bf16.mxu0 0
    %638 = vmatpush1.bf16.msra.mxu0 0
    %639 = vmatprep.subr.bf16.mxu0 0
    %640 = vmatpush1.bf16.msra.mxu0 0
    %641 = vmatprep.subr.bf16.mxu0 0
    %642 = vmatpush1.bf16.msra.mxu0 0
    %643 = vmatprep.subr.bf16.mxu0 0
    %644 = vmatpush1.bf16.msra.mxu0 0
    %645 = vmatprep.subr.bf16.mxu0 0
    %646 = vmatpush1.bf16.msra.mxu0 0
    %647 = vmatprep.mubr.bf16.mxu0 0
    %648 = vmatmul.mubr.bf16.gmra.mrb[0].mxu0 %v559
    %v649 = vpop.f32.mrb[0].mxu0
    %v650 = vadd.f32 0.0, %v649
    %v651 = vpop.f32.mrb[0].mxu0
    %v652 = vpop.f32.mrb[0].mxu0
    %v653 = vadd.f32 0.0, %v652
    %v654 = vpop.f32.mrb[0].mxu0
    %655 = vmatprep.mubr.bf16.mxu0 0
    %656 = vmatmul.mubr.bf16.gmra.mrb[0].mxu0 %v560
    %v657 = vpop.f32.mrb[0].mxu0
    %v658 = vadd.f32 0.0, %v657
    %v659 = vpop.f32.mrb[0].mxu0
    %v660 = vpop.f32.mrb[0].mxu0
    %v661 = vadd.f32 0.0, %v660
    %v662 = vpop.f32.mrb[0].mxu0
    %663 = vmatprep.mubr.bf16.mxu0 0
    %664 = vmatmul.mubr.bf16.gmra.mrb[0].mxu0 %v561
    %v665 = vpop.f32.mrb[0].mxu0
    %v666 = vadd.f32 0.0, %v665
    %v667 = vpop.f32.mrb[0].mxu0
    %v668 = vpop.f32.mrb[0].mxu0
    %v669 = vadd.f32 0.0, %v668
    %v670 = vpop.f32.mrb[0].mxu0
    %671 = vmatprep.mubr.bf16.mxu0 0
    %672 = vmatmul.mubr.bf16.gmra.mrb[0].mxu0 %v562
    %v673 = vpop.f32.mrb[0].mxu0
    %v674 = vadd.f32 0.0, %v673
    %v675 = vpop.f32.mrb[0].mxu0
    %v676 = vpop.f32.mrb[0].mxu0
    %v677 = vadd.f32 0.0, %v676
    %v678 = vpop.f32.mrb[0].mxu0
    %679 = vmatprep.mubr.bf16.mxu0 0
    %680 = vmatmul.mubr.bf16.gmra.mrb[0].mxu0 %v563
    %v681 = vpop.f32.mrb[0].mxu0
    %v682 = vadd.f32 0.0, %v681
    %v683 = vpop.f32.mrb[0].mxu0
    %v684 = vpop.f32.mrb[0].mxu0
    %v685 = vadd.f32 0.0, %v684
    %v686 = vpop.f32.mrb[0].mxu0
    %687 = vmatprep.mubr.bf16.mxu0 0
    %688 = vmatmul.mubr.bf16.gmra.mrb[0].mxu0 %v564
    %v689 = vpop.f32.mrb[0].mxu0
    %v690 = vadd.f32 0.0, %v689
    %v691 = vpop.f32.mrb[0].mxu0
    %v692 = vpop.f32.mrb[0].mxu0
    %v693 = vadd.f32 0.0, %v692
    %v694 = vpop.f32.mrb[0].mxu0
    %695 = vmatprep.mubr.bf16.mxu0 0
    %696 = vmatmul.mubr.bf16.gmra.mrb[0].mxu0 %v565
    %v697 = vpop.f32.mrb[0].mxu0
    %v698 = vadd.f32 0.0, %v697
    %v699 = vpop.f32.mrb[0].mxu0
    %v700 = vpop.f32.mrb[0].mxu0
    %v701 = vadd.f32 0.0, %v700
    %v702 = vpop.f32.mrb[0].mxu0
    %703 = vmatprep.mubr.bf16.mxu0 0
    %704 = vmatmul.mubr.bf16.gmra.mrb[0].mxu0 %v566
    %v705 = vpop.f32.mrb[0].mxu0
    %v706 = vadd.f32 0.0, %v705
    %v707 = vpop.f32.mrb[0].mxu0
    %v708 = vpop.f32.mrb[0].mxu0
    %v709 = vadd.f32 0.0, %v708
    %v710 = vpop.f32.mrb[0].mxu0
    %711 = vdwg.mxu0
    %v712 = vpack.c.bf16 %v653, %v650
    %v713 = vpack.c.bf16 %v661, %v658
    %v714 = vpack.c.bf16 %v669, %v666
    %v715 = vpack.c.bf16 %v677, %v674
    %v716 = vpack.c.bf16 %v685, %v682
    %v717 = vpack.c.bf16 %v693, %v690
    %v718 = vpack.c.bf16 %v701, %v698
    %v719 = vpack.c.bf16 %v709, %v706
    %720 = vmatprep.subr.bf16.mxu0 0
    %721 = vmatpush1.bf16.msra.mxu0 %v712
    %722 = vmatprep.subr.bf16.mxu0 0
    %723 = vmatpush1.bf16.msra.mxu0 %v713
    %724 = vmatprep.subr.bf16.mxu0 0
    %725 = vmatpush1.bf16.msra.mxu0 %v714
    %726 = vmatprep.subr.bf16.mxu0 0
    %727 = vmatpush1.bf16.msra.mxu0 %v715
    %728 = vmatprep.subr.bf16.mxu0 0
    %729 = vmatpush1.bf16.msra.mxu0 %v716
    %730 = vmatprep.subr.bf16.mxu0 0
    %731 = vmatpush1.bf16.msra.mxu0 %v717
    %732 = vmatprep.subr.bf16.mxu0 0
    %733 = vmatpush1.bf16.msra.mxu0 %v718
    %734 = vmatprep.subr.bf16.mxu0 0
    %735 = vmatpush1.bf16.msra.mxu0 %v719
    %736 = vmatprep.subr.bf16.mxu0 0
    %737 = vmatpush1.bf16.msra.mxu0 0
    %738 = vmatprep.subr.bf16.mxu0 0
    %739 = vmatpush1.bf16.msra.mxu0 0
    %740 = vmatprep.subr.bf16.mxu0 0
    %741 = vmatpush1.bf16.msra.mxu0 0
    %742 = vmatprep.subr.bf16.mxu0 0
    %743 = vmatpush1.bf16.msra.mxu0 0
    %744 = vmatprep.subr.bf16.mxu0 0
    %745 = vmatpush1.bf16.msra.mxu0 0
    %746 = vmatprep.subr.bf16.mxu0 0
    %747 = vmatpush1.bf16.msra.mxu0 0
    %748 = vmatprep.subr.bf16.mxu0 0
    %749 = vmatpush1.bf16.msra.mxu0 0
    %750 = vmatprep.subr.bf16.mxu0 0
    %751 = vmatpush1.bf16.msra.mxu0 0
    %752 = vmatprep.mubr.bf16.mxu0 0
    %753 = vmatmul.mubr.bf16.gmra.mrb[0].mxu0 %v193
    %v754 = vpop.f32.mrb[0].mxu0
    %v755 = vadd.f32 %v361, %v754
    %v756 = vpop.f32.mrb[0].mxu0
    %v757 = vpop.f32.mrb[0].mxu0
    %v758 = vadd.f32 %v361, %v757
    %v759 = vpop.f32.mrb[0].mxu0
    %760 = vmatprep.mubr.bf16.mxu0 0
    %761 = vmatmul.mubr.bf16.gmra.mrb[0].mxu0 %v194
    %v762 = vpop.f32.mrb[0].mxu0
    %v763 = vadd.f32 %v361, %v762
    %v764 = vpop.f32.mrb[0].mxu0
    %v765 = vpop.f32.mrb[0].mxu0
    %v766 = vadd.f32 %v361, %v765
    %v767 = vpop.f32.mrb[0].mxu0
    %768 = vmatprep.mubr.bf16.mxu0 0
    %769 = vmatmul.mubr.bf16.gmra.mrb[0].mxu0 %v195
    %v770 = vpop.f32.mrb[0].mxu0
    %v771 = vadd.f32 %v361, %v770
    %v772 = vpop.f32.mrb[0].mxu0
    %v773 = vpop.f32.mrb[0].mxu0
    %v774 = vadd.f32 %v361, %v773
    %v775 = vpop.f32.mrb[0].mxu0
    %776 = vmatprep.mubr.bf16.mxu0 0
    %777 = vmatmul.mubr.bf16.gmra.mrb[0].mxu0 %v196
    %v778 = vpop.f32.mrb[0].mxu0
    %v779 = vadd.f32 %v361, %v778
    %v780 = vpop.f32.mrb[0].mxu0
    %v781 = vpop.f32.mrb[0].mxu0
    %v782 = vadd.f32 %v361, %v781
    %v783 = vpop.f32.mrb[0].mxu0
    %784 = vmatprep.mubr.bf16.mxu0 0
    %785 = vmatmul.mubr.bf16.gmra.mrb[0].mxu0 %v197
    %v786 = vpop.f32.mrb[0].mxu0
    %v787 = vadd.f32 %v361, %v786
    %v788 = vpop.f32.mrb[0].mxu0
    %v789 = vpop.f32.mrb[0].mxu0
    %v790 = vadd.f32 %v361, %v789
    %v791 = vpop.f32.mrb[0].mxu0
    %792 = vmatprep.mubr.bf16.mxu0 0
    %793 = vmatmul.mubr.bf16.gmra.mrb[0].mxu0 %v198
    %v794 = vpop.f32.mrb[0].mxu0
    %v795 = vadd.f32 %v361, %v794
    %v796 = vpop.f32.mrb[0].mxu0
    %v797 = vpop.f32.mrb[0].mxu0
    %v798 = vadd.f32 %v361, %v797
    %v799 = vpop.f32.mrb[0].mxu0
    %800 = vmatprep.mubr.bf16.mxu0 0
    %801 = vmatmul.mubr.bf16.gmra.mrb[0].mxu0 %v199
    %v802 = vpop.f32.mrb[0].mxu0
    %v803 = vadd.f32 %v361, %v802
    %v804 = vpop.f32.mrb[0].mxu0
    %v805 = vpop.f32.mrb[0].mxu0
    %v806 = vadd.f32 %v361, %v805
    %v807 = vpop.f32.mrb[0].mxu0
    %808 = vmatprep.mubr.bf16.mxu0 0
    %809 = vmatmul.mubr.bf16.gmra.mrb[0].mxu0 %v200
    %v810 = vpop.f32.mrb[0].mxu0
    %v811 = vadd.f32 %v361, %v810
    %v812 = vpop.f32.mrb[0].mxu0
    %v813 = vpop.f32.mrb[0].mxu0
    %v814 = vadd.f32 %v361, %v813
    %v815 = vpop.f32.mrb[0].mxu0
    %816 = vdwg.mxu0
    %v817 = vmax.f32 %v755, 0.0
    %v818 = vmax.f32 %v758, 0.0
    %v819 = vmax.f32 %v763, 0.0
    %v820 = vmax.f32 %v766, 0.0
    %v821 = vmax.f32 %v771, 0.0
    %v822 = vmax.f32 %v774, 0.0
    %v823 = vmax.f32 %v779, 0.0
    %v824 = vmax.f32 %v782, 0.0
    %v825 = vmax.f32 %v787, 0.0
    %v826 = vmax.f32 %v790, 0.0
    %v827 = vmax.f32 %v795, 0.0
    %v828 = vmax.f32 %v798, 0.0
    %v829 = vmax.f32 %v803, 0.0
    %v830 = vmax.f32 %v806, 0.0
    %v831 = vmax.f32 %v811, 0.0
    %v832 = vmax.f32 %v814, 0.0
    %v833 = vpack.c.bf16 %v818, %v817
    %v834 = vpack.c.bf16 %v820, %v819
    %v835 = vpack.c.bf16 %v822, %v821
    %v836 = vpack.c.bf16 %v824, %v823
    %v837 = vpack.c.bf16 %v826, %v825
    %v838 = vpack.c.bf16 %v828, %v827
    %v839 = vpack.c.bf16 %v830, %v829
    %v840 = vpack.c.bf16 %v832, %v831
    %841 = vmatprep.subr.bf16.mxu0 0
    %842 = vmatpush1.bf16.msra.mxu0 %v599
    %843 = vmatprep.subr.bf16.mxu0 0
    %844 = vmatpush1.bf16.msra.mxu0 %v600
    %845 = vmatprep.subr.bf16.mxu0 0
    %846 = vmatpush1.bf16.msra.mxu0 %v601
    %847 = vmatprep.subr.bf16.mxu0 0
    %848 = vmatpush1.bf16.msra.mxu0 %v602
    %849 = vmatprep.subr.bf16.mxu0 0
    %850 = vmatpush1.bf16.msra.mxu0 %v603
    %851 = vmatprep.subr.bf16.mxu0 0
    %852 = vmatpush1.bf16.msra.mxu0 %v604
    %853 = vmatprep.subr.bf16.mxu0 0
    %854 = vmatpush1.bf16.msra.mxu0 %v605
    %855 = vmatprep.subr.bf16.mxu0 0
    %856 = vmatpush1.bf16.msra.mxu0 %v606
    %857 = vmatprep.subr.bf16.mxu0 0
    %858 = vmatpush1.bf16.msra.mxu0 0
    %859 = vmatprep.subr.bf16.mxu0 0
    %860 = vmatpush1.bf16.msra.mxu0 0
    %861 = vmatprep.subr.bf16.mxu0 0
    %862 = vmatpush1.bf16.msra.mxu0 0
    %863 = vmatprep.subr.bf16.mxu0 0
    %864 = vmatpush1.bf16.msra.mxu0 0
    %865 = vmatprep.subr.bf16.mxu0 0
    %866 = vmatpush1.bf16.msra.mxu0 0
    %867 = vmatprep.subr.bf16.mxu0 0
    %868 = vmatpush1.bf16.msra.mxu0 0
    %869 = vmatprep.subr.bf16.mxu0 0
    %870 = vmatpush1.bf16.msra.mxu0 0
    %871 = vmatprep.subr.bf16.mxu0 0
    %872 = vmatpush1.bf16.msra.mxu0 0
    %873 = vmatprep.mubr.bf16.mxu0 0
    %874 = vmatmul.mubr.bf16.gmra.mrb[0].mxu0 %v833
    %v875 = vpop.f32.mrb[0].mxu0
    %v876 = vadd.f32 0.0, %v875
    %v877 = vpop.f32.mrb[0].mxu0
    %v878 = vpop.f32.mrb[0].mxu0
    %v879 = vadd.f32 0.0, %v878
    %v880 = vpop.f32.mrb[0].mxu0
    %881 = vmatprep.mubr.bf16.mxu0 0
    %882 = vmatmul.mubr.bf16.gmra.mrb[0].mxu0 %v834
    %v883 = vpop.f32.mrb[0].mxu0
    %v884 = vadd.f32 0.0, %v883
    %v885 = vpop.f32.mrb[0].mxu0
    %v886 = vpop.f32.mrb[0].mxu0
    %v887 = vadd.f32 0.0, %v886
    %v888 = vpop.f32.mrb[0].mxu0
    %889 = vmatprep.mubr.bf16.mxu0 0
    %890 = vmatmul.mubr.bf16.gmra.mrb[0].mxu0 %v835
    %v891 = vpop.f32.mrb[0].mxu0
    %v892 = vadd.f32 0.0, %v891
    %v893 = vpop.f32.mrb[0].mxu0
    %v894 = vpop.f32.mrb[0].mxu0
    %v895 = vadd.f32 0.0, %v894
    %v896 = vpop.f32.mrb[0].mxu0
    %897 = vmatprep.mubr.bf16.mxu0 0
    %898 = vmatmul.mubr.bf16.gmra.mrb[0].mxu0 %v836
    %v899 = vpop.f32.mrb[0].mxu0
    %v900 = vadd.f32 0.0, %v899
    %v901 = vpop.f32.mrb[0].mxu0
    %v902 = vpop.f32.mrb[0].mxu0
    %v903 = vadd.f32 0.0, %v902
    %v904 = vpop.f32.mrb[0].mxu0
    %905 = vmatprep.mubr.bf16.mxu0 0
    %906 = vmatmul.mubr.bf16.gmra.mrb[0].mxu0 %v837
    %v907 = vpop.f32.mrb[0].mxu0
    %v908 = vadd.f32 0.0, %v907
    %v909 = vpop.f32.mrb[0].mxu0
    %v910 = vpop.f32.mrb[0].mxu0
    %v911 = vadd.f32 0.0, %v910
    %v912 = vpop.f32.mrb[0].mxu0
    %913 = vmatprep.mubr.bf16.mxu0 0
    %914 = vmatmul.mubr.bf16.gmra.mrb[0].mxu0 %v838
    %v915 = vpop.f32.mrb[0].mxu0
    %v916 = vadd.f32 0.0, %v915
    %v917 = vpop.f32.mrb[0].mxu0
    %v918 = vpop.f32.mrb[0].mxu0
    %v919 = vadd.f32 0.0, %v918
    %v920 = vpop.f32.mrb[0].mxu0
    %921 = vmatprep.mubr.bf16.mxu0 0
    %922 = vmatmul.mubr.bf16.gmra.mrb[0].mxu0 %v839
    %v923 = vpop.f32.mrb[0].mxu0
    %v924 = vadd.f32 0.0, %v923
    %v925 = vpop.f32.mrb[0].mxu0
    %v926 = vpop.f32.mrb[0].mxu0
    %v927 = vadd.f32 0.0, %v926
    %v928 = vpop.f32.mrb[0].mxu0
    %929 = vmatprep.mubr.bf16.mxu0 0
    %930 = vmatmul.mubr.bf16.gmra.mrb[0].mxu0 %v840
    %v931 = vpop.f32.mrb[0].mxu0
    %v932 = vadd.f32 0.0, %v931
    %v933 = vpop.f32.mrb[0].mxu0
    %v934 = vpop.f32.mrb[0].mxu0
    %v935 = vadd.f32 0.0, %v934
    %v936 = vpop.f32.mrb[0].mxu0
    %937 = vdwg.mxu0
    %v938 = vpack.c.bf16 %v879, %v876
    %v939 = vpack.c.bf16 %v887, %v884
    %v940 = vpack.c.bf16 %v895, %v892
    %v941 = vpack.c.bf16 %v903, %v900
    %v942 = vpack.c.bf16 %v911, %v908
    %v943 = vpack.c.bf16 %v919, %v916
    %v944 = vpack.c.bf16 %v927, %v924
    %v945 = vpack.c.bf16 %v935, %v932
    %946 = vmatprep.subr.bf16.mxu0 0
    %947 = vmatpush1.bf16.msra.mxu0 %v938
    %948 = vmatprep.subr.bf16.mxu0 0
    %949 = vmatpush1.bf16.msra.mxu0 %v939
    %950 = vmatprep.subr.bf16.mxu0 0
    %951 = vmatpush1.bf16.msra.mxu0 %v940
    %952 = vmatprep.subr.bf16.mxu0 0
    %953 = vmatpush1.bf16.msra.mxu0 %v941
    %954 = vmatprep.subr.bf16.mxu0 0
    %955 = vmatpush1.bf16.msra.mxu0 %v942
    %956 = vmatprep.subr.bf16.mxu0 0
    %957 = vmatpush1.bf16.msra.mxu0 %v943
    %958 = vmatprep.subr.bf16.mxu0 0
    %959 = vmatpush1.bf16.msra.mxu0 %v944
    %960 = vmatprep.subr.bf16.mxu0 0
    %961 = vmatpush1.bf16.msra.mxu0 %v945
    %962 = vmatprep.subr.bf16.mxu0 0
    %963 = vmatpush1.bf16.msra.mxu0 0
    %964 = vmatprep.subr.bf16.mxu0 0
    %965 = vmatpush1.bf16.msra.mxu0 0
    %966 = vmatprep.subr.bf16.mxu0 0
    %967 = vmatpush1.bf16.msra.mxu0 0
    %968 = vmatprep.subr.bf16.mxu0 0
    %969 = vmatpush1.bf16.msra.mxu0 0
    %970 = vmatprep.subr.bf16.mxu0 0
    %971 = vmatpush1.bf16.msra.mxu0 0
    %972 = vmatprep.subr.bf16.mxu0 0
    %973 = vmatpush1.bf16.msra.mxu0 0
    %974 = vmatprep.subr.bf16.mxu0 0
    %975 = vmatpush1.bf16.msra.mxu0 0
    %976 = vmatprep.subr.bf16.mxu0 0
    %977 = vmatpush1.bf16.msra.mxu0 0
    %978 = vmatprep.mubr.bf16.mxu0 0
    %979 = vmatmul.mubr.bf16.gmra.mrb[0].mxu0 %v193
    %v980 = vpop.f32.mrb[0].mxu0
    %v981 = vadd.f32 %v361, %v980
    %v982 = vpop.f32.mrb[0].mxu0
    %v983 = vpop.f32.mrb[0].mxu0
    %v984 = vadd.f32 %v361, %v983
    %v985 = vpop.f32.mrb[0].mxu0
    %986 = vmatprep.mubr.bf16.mxu0 0
    %987 = vmatmul.mubr.bf16.gmra.mrb[0].mxu0 %v194
    %v988 = vpop.f32.mrb[0].mxu0
    %v989 = vadd.f32 %v361, %v988
    %v990 = vpop.f32.mrb[0].mxu0
    %v991 = vpop.f32.mrb[0].mxu0
    %v992 = vadd.f32 %v361, %v991
    %v993 = vpop.f32.mrb[0].mxu0
    %994 = vmatprep.mubr.bf16.mxu0 0
    %995 = vmatmul.mubr.bf16.gmra.mrb[0].mxu0 %v195
    %v996 = vpop.f32.mrb[0].mxu0
    %v997 = vadd.f32 %v361, %v996
    %v998 = vpop.f32.mrb[0].mxu0
    %v999 = vpop.f32.mrb[0].mxu0
    %v1000 = vadd.f32 %v361, %v999
    %v1001 = vpop.f32.mrb[0].mxu0
    %1002 = vmatprep.mubr.bf16.mxu0 0
    %1003 = vmatmul.mubr.bf16.gmra.mrb[0].mxu0 %v196
    %v1004 = vpop.f32.mrb[0].mxu0
    %v1005 = vadd.f32 %v361, %v1004
    %v1006 = vpop.f32.mrb[0].mxu0
    %v1007 = vpop.f32.mrb[0].mxu0
    %v1008 = vadd.f32 %v361, %v1007
    %v1009 = vpop.f32.mrb[0].mxu0
    %1010 = vmatprep.mubr.bf16.mxu0 0
    %1011 = vmatmul.mubr.bf16.gmra.mrb[0].mxu0 %v197
    %v1012 = vpop.f32.mrb[0].mxu0
    %v1013 = vadd.f32 %v361, %v1012
    %v1014 = vpop.f32.mrb[0].mxu0
    %v1015 = vpop.f32.mrb[0].mxu0
    %v1016 = vadd.f32 %v361, %v1015
    %v1017 = vpop.f32.mrb[0].mxu0
    %1018 = vmatprep.mubr.bf16.mxu0 0
    %1019 = vmatmul.mubr.bf16.gmra.mrb[0].mxu0 %v198
    %v1020 = vpop.f32.mrb[0].mxu0
    %v1021 = vadd.f32 %v361, %v1020
    %v1022 = vpop.f32.mrb[0].mxu0
    %v1023 = vpop.f32.mrb[0].mxu0
    %v1024 = vadd.f32 %v361, %v1023
    %v1025 = vpop.f32.mrb[0].mxu0
    %1026 = vmatprep.mubr.bf16.mxu0 0
    %1027 = vmatmul.mubr.bf16.gmra.mrb[0].mxu0 %v199
    %v1028 = vpop.f32.mrb[0].mxu0
    %v1029 = vadd.f32 %v361, %v1028
    %v1030 = vpop.f32.mrb[0].mxu0
    %v1031 = vpop.f32.mrb[0].mxu0
    %v1032 = vadd.f32 %v361, %v1031
    %v1033 = vpop.f32.mrb[0].mxu0
    %1034 = vmatprep.mubr.bf16.mxu0 0
    %1035 = vmatmul.mubr.bf16.gmra.mrb[0].mxu0 %v200
    %v1036 = vpop.f32.mrb[0].mxu0
    %v1037 = vadd.f32 %v361, %v1036
    %v1038 = vpop.f32.mrb[0].mxu0
    %v1039 = vpop.f32.mrb[0].mxu0
    %v1040 = vadd.f32 %v361, %v1039
    %v1041 = vpop.f32.mrb[0].mxu0
    %1042 = vdwg.mxu0
    %v1043 = vmax.f32 %v981, 0.0
    %v1044 = vmax.f32 %v984, 0.0
    %v1045 = vmax.f32 %v989, 0.0
    %v1046 = vmax.f32 %v992, 0.0
    %v1047 = vmax.f32 %v997, 0.0
    %v1048 = vmax.f32 %v1000, 0.0
    %v1049 = vmax.f32 %v1005, 0.0
    %v1050 = vmax.f32 %v1008, 0.0
    %v1051 = vmax.f32 %v1013, 0.0
    %v1052 = vmax.f32 %v1016, 0.0
    %v1053 = vmax.f32 %v1021, 0.0
    %v1054 = vmax.f32 %v1024, 0.0
    %v1055 = vmax.f32 %v1029, 0.0
    %v1056 = vmax.f32 %v1032, 0.0
    %v1057 = vmax.f32 %v1037, 0.0
    %v1058 = vmax.f32 %v1040, 0.0
    %v1059 = vpack.c.bf16 %v1044, %v1043
    %v1060 = vpack.c.bf16 %v1046, %v1045
    %v1061 = vpack.c.bf16 %v1048, %v1047
    %v1062 = vpack.c.bf16 %v1050, %v1049
    %v1063 = vpack.c.bf16 %v1052, %v1051
    %v1064 = vpack.c.bf16 %v1054, %v1053
    %v1065 = vpack.c.bf16 %v1056, %v1055
    %v1066 = vpack.c.bf16 %v1058, %v1057
    %1067 = vmatprep.subr.bf16.mxu0 0
    %1068 = vmatpush1.bf16.msra.mxu0 %v599
    %1069 = vmatprep.subr.bf16.mxu0 0
    %1070 = vmatpush1.bf16.msra.mxu0 %v600
    %1071 = vmatprep.subr.bf16.mxu0 0
    %1072 = vmatpush1.bf16.msra.mxu0 %v601
    %1073 = vmatprep.subr.bf16.mxu0 0
    %1074 = vmatpush1.bf16.msra.mxu0 %v602
    %1075 = vmatprep.subr.bf16.mxu0 0
    %1076 = vmatpush1.bf16.msra.mxu0 %v603
    %1077 = vmatprep.subr.bf16.mxu0 0
    %1078 = vmatpush1.bf16.msra.mxu0 %v604
    %1079 = vmatprep.subr.bf16.mxu0 0
    %1080 = vmatpush1.bf16.msra.mxu0 %v605
    %1081 = vmatprep.subr.bf16.mxu0 0
    %1082 = vmatpush1.bf16.msra.mxu0 %v606
    %1083 = vmatprep.subr.bf16.mxu0 0
    %1084 = vmatpush1.bf16.msra.mxu0 0
    %1085 = vmatprep.subr.bf16.mxu0 0
    %1086 = vmatpush1.bf16.msra.mxu0 0
    %1087 = vmatprep.subr.bf16.mxu0 0
    %1088 = vmatpush1.bf16.msra.mxu0 0
    %1089 = vmatprep.subr.bf16.mxu0 0
    %1090 = vmatpush1.bf16.msra.mxu0 0
    %1091 = vmatprep.subr.bf16.mxu0 0
    %1092 = vmatpush1.bf16.msra.mxu0 0
    %1093 = vmatprep.subr.bf16.mxu0 0
    %1094 = vmatpush1.bf16.msra.mxu0 0
    %1095 = vmatprep.subr.bf16.mxu0 0
    %1096 = vmatpush1.bf16.msra.mxu0 0
    %1097 = vmatprep.subr.bf16.mxu0 0
    %1098 = vmatpush1.bf16.msra.mxu0 0
    %1099 = vmatprep.mubr.bf16.mxu0 0
    %1100 = vmatmul.mubr.bf16.gmra.mrb[0].mxu0 %v1059
    %v1101 = vpop.f32.mrb[0].mxu0
    %v1102 = vadd.f32 0.0, %v1101
    %v1103 = vpop.f32.mrb[0].mxu0
    %v1104 = vpop.f32.mrb[0].mxu0
    %v1105 = vadd.f32 0.0, %v1104
    %v1106 = vpop.f32.mrb[0].mxu0
    %1107 = vmatprep.mubr.bf16.mxu0 0
    %1108 = vmatmul.mubr.bf16.gmra.mrb[0].mxu0 %v1060
    %v1109 = vpop.f32.mrb[0].mxu0
    %v1110 = vadd.f32 0.0, %v1109
    %v1111 = vpop.f32.mrb[0].mxu0
    %v1112 = vpop.f32.mrb[0].mxu0
    %v1113 = vadd.f32 0.0, %v1112
    %v1114 = vpop.f32.mrb[0].mxu0
    %1115 = vmatprep.mubr.bf16.mxu0 0
    %1116 = vmatmul.mubr.bf16.gmra.mrb[0].mxu0 %v1061
    %v1117 = vpop.f32.mrb[0].mxu0
    %v1118 = vadd.f32 0.0, %v1117
    %v1119 = vpop.f32.mrb[0].mxu0
    %v1120 = vpop.f32.mrb[0].mxu0
    %v1121 = vadd.f32 0.0, %v1120
    %v1122 = vpop.f32.mrb[0].mxu0
    %1123 = vmatprep.mubr.bf16.mxu0 0
    %1124 = vmatmul.mubr.bf16.gmra.mrb[0].mxu0 %v1062
    %v1125 = vpop.f32.mrb[0].mxu0
    %v1126 = vadd.f32 0.0, %v1125
    %v1127 = vpop.f32.mrb[0].mxu0
    %v1128 = vpop.f32.mrb[0].mxu0
    %v1129 = vadd.f32 0.0, %v1128
    %v1130 = vpop.f32.mrb[0].mxu0
    %1131 = vmatprep.mubr.bf16.mxu0 0
    %1132 = vmatmul.mubr.bf16.gmra.mrb[0].mxu0 %v1063
    %v1133 = vpop.f32.mrb[0].mxu0
    %v1134 = vadd.f32 0.0, %v1133
    %v1135 = vpop.f32.mrb[0].mxu0
    %v1136 = vpop.f32.mrb[0].mxu0
    %v1137 = vadd.f32 0.0, %v1136
    %v1138 = vpop.f32.mrb[0].mxu0
    %1139 = vmatprep.mubr.bf16.mxu0 0
    %1140 = vmatmul.mubr.bf16.gmra.mrb[0].mxu0 %v1064
    %v1141 = vpop.f32.mrb[0].mxu0
    %v1142 = vadd.f32 0.0, %v1141
    %v1143 = vpop.f32.mrb[0].mxu0
    %v1144 = vpop.f32.mrb[0].mxu0
    %v1145 = vadd.f32 0.0, %v1144
    %v1146 = vpop.f32.mrb[0].mxu0
    %1147 = vmatprep.mubr.bf16.mxu0 0
    %1148 = vmatmul.mubr.bf16.gmra.mrb[0].mxu0 %v1065
    %v1149 = vpop.f32.mrb[0].mxu0
    %v1150 = vadd.f32 0.0, %v1149
    %v1151 = vpop.f32.mrb[0].mxu0
    %v1152 = vpop.f32.mrb[0].mxu0
    %v1153 = vadd.f32 0.0, %v1152
    %v1154 = vpop.f32.mrb[0].mxu0
    %1155 = vmatprep.mubr.bf16.mxu0 0
    %1156 = vmatmul.mubr.bf16.gmra.mrb[0].mxu0 %v1066
    %v1157 = vpop.f32.mrb[0].mxu0
    %v1158 = vadd.f32 0.0, %v1157
    %v1159 = vpop.f32.mrb[0].mxu0
    %v1160 = vpop.f32.mrb[0].mxu0
    %v1161 = vadd.f32 0.0, %v1160
    %v1162 = vpop.f32.mrb[0].mxu0
    %1163 = vdwg.mxu0
    %v1164 = vpack.c.bf16 %v1105, %v1102
    %v1165 = vpack.c.bf16 %v1113, %v1110
    %v1166 = vpack.c.bf16 %v1121, %v1118
    %v1167 = vpack.c.bf16 %v1129, %v1126
    %v1168 = vpack.c.bf16 %v1137, %v1134
    %v1169 = vpack.c.bf16 %v1145, %v1142
    %v1170 = vpack.c.bf16 %v1153, %v1150
    %v1171 = vpack.c.bf16 %v1161, %v1158
    %1172 = vmatprep.subr.bf16.mxu0 0
    %1173 = vmatpush1.bf16.msra.mxu0 %v1164
    %1174 = vmatprep.subr.bf16.mxu0 0
    %1175 = vmatpush1.bf16.msra.mxu0 %v1165
    %1176 = vmatprep.subr.bf16.mxu0 0
    %1177 = vmatpush1.bf16.msra.mxu0 %v1166
    %1178 = vmatprep.subr.bf16.mxu0 0
    %1179 = vmatpush1.bf16.msra.mxu0 %v1167
    %1180 = vmatprep.subr.bf16.mxu0 0
    %1181 = vmatpush1.bf16.msra.mxu0 %v1168
    %1182 = vmatprep.subr.bf16.mxu0 0
    %1183 = vmatpush1.bf16.msra.mxu0 %v1169
    %1184 = vmatprep.subr.bf16.mxu0 0
    %1185 = vmatpush1.bf16.msra.mxu0 %v1170
    %1186 = vmatprep.subr.bf16.mxu0 0
    %1187 = vmatpush1.bf16.msra.mxu0 %v1171
    %1188 = vmatprep.subr.bf16.mxu0 0
    %1189 = vmatpush1.bf16.msra.mxu0 0
    %1190 = vmatprep.subr.bf16.mxu0 0
    %1191 = vmatpush1.bf16.msra.mxu0 0
    %1192 = vmatprep.subr.bf16.mxu0 0
    %1193 = vmatpush1.bf16.msra.mxu0 0
    %1194 = vmatprep.subr.bf16.mxu0 0
    %1195 = vmatpush1.bf16.msra.mxu0 0
    %1196 = vmatprep.subr.bf16.mxu0 0
    %1197 = vmatpush1.bf16.msra.mxu0 0
    %1198 = vmatprep.subr.bf16.mxu0 0
    %1199 = vmatpush1.bf16.msra.mxu0 0
    %1200 = vmatprep.subr.bf16.mxu0 0
    %1201 = vmatpush1.bf16.msra.mxu0 0
    %1202 = vmatprep.subr.bf16.mxu0 0
    %1203 = vmatpush1.bf16.msra.mxu0 0
    %1204 = vmatprep.mubr.bf16.mxu0 0
    %1205 = vmatmul.mubr.bf16.gmra.mrb[0].mxu0 %v193
    %v1206 = vpop.f32.mrb[0].mxu0
    %v1207 = vadd.f32 %v361, %v1206
    %v1208 = vpop.f32.mrb[0].mxu0
    %v1209 = vpop.f32.mrb[0].mxu0
    %v1210 = vadd.f32 %v361, %v1209
    %v1211 = vpop.f32.mrb[0].mxu0
    %1212 = vmatprep.mubr.bf16.mxu0 0
    %1213 = vmatmul.mubr.bf16.gmra.mrb[0].mxu0 %v194
    %v1214 = vpop.f32.mrb[0].mxu0
    %v1215 = vadd.f32 %v361, %v1214
    %v1216 = vpop.f32.mrb[0].mxu0
    %v1217 = vpop.f32.mrb[0].mxu0
    %v1218 = vadd.f32 %v361, %v1217
    %v1219 = vpop.f32.mrb[0].mxu0
    %1220 = vmatprep.mubr.bf16.mxu0 0
    %1221 = vmatmul.mubr.bf16.gmra.mrb[0].mxu0 %v195
    %v1222 = vpop.f32.mrb[0].mxu0
    %v1223 = vadd.f32 %v361, %v1222
    %v1224 = vpop.f32.mrb[0].mxu0
    %v1225 = vpop.f32.mrb[0].mxu0
    %v1226 = vadd.f32 %v361, %v1225
    %v1227 = vpop.f32.mrb[0].mxu0
    %1228 = vmatprep.mubr.bf16.mxu0 0
    %1229 = vmatmul.mubr.bf16.gmra.mrb[0].mxu0 %v196
    %v1230 = vpop.f32.mrb[0].mxu0
    %v1231 = vadd.f32 %v361, %v1230
    %v1232 = vpop.f32.mrb[0].mxu0
    %v1233 = vpop.f32.mrb[0].mxu0
    %v1234 = vadd.f32 %v361, %v1233
    %v1235 = vpop.f32.mrb[0].mxu0
    %1236 = vmatprep.mubr.bf16.mxu0 0
    %1237 = vmatmul.mubr.bf16.gmra.mrb[0].mxu0 %v197
    %v1238 = vpop.f32.mrb[0].mxu0
    %v1239 = vadd.f32 %v361, %v1238
    %v1240 = vpop.f32.mrb[0].mxu0
    %v1241 = vpop.f32.mrb[0].mxu0
    %v1242 = vadd.f32 %v361, %v1241
    %v1243 = vpop.f32.mrb[0].mxu0
    %1244 = vmatprep.mubr.bf16.mxu0 0
    %1245 = vmatmul.mubr.bf16.gmra.mrb[0].mxu0 %v198
    %v1246 = vpop.f32.mrb[0].mxu0
    %v1247 = vadd.f32 %v361, %v1246
    %v1248 = vpop.f32.mrb[0].mxu0
    %v1249 = vpop.f32.mrb[0].mxu0
    %v1250 = vadd.f32 %v361, %v1249
    %v1251 = vpop.f32.mrb[0].mxu0
    %1252 = vmatprep.mubr.bf16.mxu0 0
    %1253 = vmatmul.mubr.bf16.gmra.mrb[0].mxu0 %v199
    %v1254 = vpop.f32.mrb[0].mxu0
    %v1255 = vadd.f32 %v361, %v1254
    %v1256 = vpop.f32.mrb[0].mxu0
    %v1257 = vpop.f32.mrb[0].mxu0
    %v1258 = vadd.f32 %v361, %v1257
    %v1259 = vpop.f32.mrb[0].mxu0
    %1260 = vmatprep.mubr.bf16.mxu0 0
    %1261 = vmatmul.mubr.bf16.gmra.mrb[0].mxu0 %v200
    %v1262 = vpop.f32.mrb[0].mxu0
    %v1263 = vadd.f32 %v361, %v1262
    %v1264 = vpop.f32.mrb[0].mxu0
    %v1265 = vpop.f32.mrb[0].mxu0
    %v1266 = vadd.f32 %v361, %v1265
    %v1267 = vpop.f32.mrb[0].mxu0
    %1268 = vdwg.mxu0
    %v1269 = vmax.f32 %v1207, 0.0
    %v1270 = vmax.f32 %v1210, 0.0
    %v1271 = vmax.f32 %v1215, 0.0
    %v1272 = vmax.f32 %v1218, 0.0
    %v1273 = vmax.f32 %v1223, 0.0
    %v1274 = vmax.f32 %v1226, 0.0
    %v1275 = vmax.f32 %v1231, 0.0
    %v1276 = vmax.f32 %v1234, 0.0
    %v1277 = vmax.f32 %v1239, 0.0
    %v1278 = vmax.f32 %v1242, 0.0
    %v1279 = vmax.f32 %v1247, 0.0
    %v1280 = vmax.f32 %v1250, 0.0
    %v1281 = vmax.f32 %v1255, 0.0
    %v1282 = vmax.f32 %v1258, 0.0
    %v1283 = vmax.f32 %v1263, 0.0
    %v1284 = vmax.f32 %v1266, 0.0
    %v1285 = vpack.c.bf16 %v1270, %v1269
    %v1286 = vpack.c.bf16 %v1272, %v1271
    %v1287 = vpack.c.bf16 %v1274, %v1273
    %v1288 = vpack.c.bf16 %v1276, %v1275
    %v1289 = vpack.c.bf16 %v1278, %v1277
    %v1290 = vpack.c.bf16 %v1280, %v1279
    %v1291 = vpack.c.bf16 %v1282, %v1281
    %v1292 = vpack.c.bf16 %v1284, %v1283
    %1293 = vmatprep.subr.bf16.mxu0 0
    %1294 = vmatpush1.bf16.msra.mxu0 %v599
    %1295 = vmatprep.subr.bf16.mxu0 0
    %1296 = vmatpush1.bf16.msra.mxu0 %v600
    %1297 = vmatprep.subr.bf16.mxu0 0
    %1298 = vmatpush1.bf16.msra.mxu0 %v601
    %1299 = vmatprep.subr.bf16.mxu0 0
    %1300 = vmatpush1.bf16.msra.mxu0 %v602
    %1301 = vmatprep.subr.bf16.mxu0 0
    %1302 = vmatpush1.bf16.msra.mxu0 %v603
    %1303 = vmatprep.subr.bf16.mxu0 0
    %1304 = vmatpush1.bf16.msra.mxu0 %v604
    %1305 = vmatprep.subr.bf16.mxu0 0
    %1306 = vmatpush1.bf16.msra.mxu0 %v605
    %1307 = vmatprep.subr.bf16.mxu0 0
    %1308 = vmatpush1.bf16.msra.mxu0 %v606
    %1309 = vmatprep.subr.bf16.mxu0 0
    %1310 = vmatpush1.bf16.msra.mxu0 0
    %1311 = vmatprep.subr.bf16.mxu0 0
    %1312 = vmatpush1.bf16.msra.mxu0 0
    %1313 = vmatprep.subr.bf16.mxu0 0
    %1314 = vmatpush1.bf16.msra.mxu0 0
    %1315 = vmatprep.subr.bf16.mxu0 0
    %1316 = vmatpush1.bf16.msra.mxu0 0
    %1317 = vmatprep.subr.bf16.mxu0 0
    %1318 = vmatpush1.bf16.msra.mxu0 0
    %1319 = vmatprep.subr.bf16.mxu0 0
    %1320 = vmatpush1.bf16.msra.mxu0 0
    %1321 = vmatprep.subr.bf16.mxu0 0
    %1322 = vmatpush1.bf16.msra.mxu0 0
    %1323 = vmatprep.subr.bf16.mxu0 0
    %1324 = vmatpush1.bf16.msra.mxu0 0
    %1325 = vmatprep.mubr.bf16.mxu0 0
    %1326 = vmatmul.mubr.bf16.gmra.mrb[0].mxu0 %v1285
    %v1327 = vpop.f32.mrb[0].mxu0
    %v1328 = vadd.f32 0.0, %v1327
    %v1329 = vpop.f32.mrb[0].mxu0
    %v1330 = vpop.f32.mrb[0].mxu0
    %v1331 = vadd.f32 0.0, %v1330
    %v1332 = vpop.f32.mrb[0].mxu0
    %1333 = vmatprep.mubr.bf16.mxu0 0
    %1334 = vmatmul.mubr.bf16.gmra.mrb[0].mxu0 %v1286
    %v1335 = vpop.f32.mrb[0].mxu0
    %v1336 = vadd.f32 0.0, %v1335
    %v1337 = vpop.f32.mrb[0].mxu0
    %v1338 = vpop.f32.mrb[0].mxu0
    %v1339 = vadd.f32 0.0, %v1338
    %v1340 = vpop.f32.mrb[0].mxu0
    %1341 = vmatprep.mubr.bf16.mxu0 0
    %1342 = vmatmul.mubr.bf16.gmra.mrb[0].mxu0 %v1287
    %v1343 = vpop.f32.mrb[0].mxu0
    %v1344 = vadd.f32 0.0, %v1343
    %v1345 = vpop.f32.mrb[0].mxu0
    %v1346 = vpop.f32.mrb[0].mxu0
    %v1347 = vadd.f32 0.0, %v1346
    %v1348 = vpop.f32.mrb[0].mxu0
    %1349 = vmatprep.mubr.bf16.mxu0 0
    %1350 = vmatmul.mubr.bf16.gmra.mrb[0].mxu0 %v1288
    %v1351 = vpop.f32.mrb[0].mxu0
    %v1352 = vadd.f32 0.0, %v1351
    %v1353 = vpop.f32.mrb[0].mxu0
    %v1354 = vpop.f32.mrb[0].mxu0
    %v1355 = vadd.f32 0.0, %v1354
    %v1356 = vpop.f32.mrb[0].mxu0
    %1357 = vmatprep.mubr.bf16.mxu0 0
    %1358 = vmatmul.mubr.bf16.gmra.mrb[0].mxu0 %v1289
    %v1359 = vpop.f32.mrb[0].mxu0
    %v1360 = vadd.f32 0.0, %v1359
    %v1361 = vpop.f32.mrb[0].mxu0
    %v1362 = vpop.f32.mrb[0].mxu0
    %v1363 = vadd.f32 0.0, %v1362
    %v1364 = vpop.f32.mrb[0].mxu0
    %1365 = vmatprep.mubr.bf16.mxu0 0
    %1366 = vmatmul.mubr.bf16.gmra.mrb[0].mxu0 %v1290
    %v1367 = vpop.f32.mrb[0].mxu0
    %v1368 = vadd.f32 0.0, %v1367
    %v1369 = vpop.f32.mrb[0].mxu0
    %v1370 = vpop.f32.mrb[0].mxu0
    %v1371 = vadd.f32 0.0, %v1370
    %v1372 = vpop.f32.mrb[0].mxu0
    %1373 = vmatprep.mubr.bf16.mxu0 0
    %1374 = vmatmul.mubr.bf16.gmra.mrb[0].mxu0 %v1291
    %v1375 = vpop.f32.mrb[0].mxu0
    %v1376 = vadd.f32 0.0, %v1375
    %v1377 = vpop.f32.mrb[0].mxu0
    %v1378 = vpop.f32.mrb[0].mxu0
    %v1379 = vadd.f32 0.0, %v1378
    %v1380 = vpop.f32.mrb[0].mxu0
    %1381 = vmatprep.mubr.bf16.mxu0 0
    %1382 = vmatmul.mubr.bf16.gmra.mrb[0].mxu0 %v1292
    %v1383 = vpop.f32.mrb[0].mxu0
    %v1384 = vadd.f32 0.0, %v1383
    %v1385 = vpop.f32.mrb[0].mxu0
    %v1386 = vpop.f32.mrb[0].mxu0
    %v1387 = vadd.f32 0.0, %v1386
    %v1388 = vpop.f32.mrb[0].mxu0
    %1389 = vdwg.mxu0
    %v1390 = vpack.c.bf16 %v1331, %v1328
    %v1391 = vpack.c.bf16 %v1339, %v1336
    %v1392 = vpack.c.bf16 %v1347, %v1344
    %v1393 = vpack.c.bf16 %v1355, %v1352
    %v1394 = vpack.c.bf16 %v1363, %v1360
    %v1395 = vpack.c.bf16 %v1371, %v1368
    %v1396 = vpack.c.bf16 %v1379, %v1376
    %v1397 = vpack.c.bf16 %v1387, %v1384
    %1398 = vmatprep.subr.bf16.mxu0 0
    %1399 = vmatpush1.bf16.msra.mxu0 %v1390
    %1400 = vmatprep.subr.bf16.mxu0 0
    %1401 = vmatpush1.bf16.msra.mxu0 %v1391
    %1402 = vmatprep.subr.bf16.mxu0 0
    %1403 = vmatpush1.bf16.msra.mxu0 %v1392
    %1404 = vmatprep.subr.bf16.mxu0 0
    %1405 = vmatpush1.bf16.msra.mxu0 %v1393
    %1406 = vmatprep.subr.bf16.mxu0 0
    %1407 = vmatpush1.bf16.msra.mxu0 %v1394
    %1408 = vmatprep.subr.bf16.mxu0 0
    %1409 = vmatpush1.bf16.msra.mxu0 %v1395
    %1410 = vmatprep.subr.bf16.mxu0 0
    %1411 = vmatpush1.bf16.msra.mxu0 %v1396
    %1412 = vmatprep.subr.bf16.mxu0 0
    %1413 = vmatpush1.bf16.msra.mxu0 %v1397
    %1414 = vmatprep.subr.bf16.mxu0 0
    %1415 = vmatpush1.bf16.msra.mxu0 0
    %1416 = vmatprep.subr.bf16.mxu0 0
    %1417 = vmatpush1.bf16.msra.mxu0 0
    %1418 = vmatprep.subr.bf16.mxu0 0
    %1419 = vmatpush1.bf16.msra.mxu0 0
    %1420 = vmatprep.subr.bf16.mxu0 0
    %1421 = vmatpush1.bf16.msra.mxu0 0
    %1422 = vmatprep.subr.bf16.mxu0 0
    %1423 = vmatpush1.bf16.msra.mxu0 0
    %1424 = vmatprep.subr.bf16.mxu0 0
    %1425 = vmatpush1.bf16.msra.mxu0 0
    %1426 = vmatprep.subr.bf16.mxu0 0
    %1427 = vmatpush1.bf16.msra.mxu0 0
    %1428 = vmatprep.subr.bf16.mxu0 0
    %1429 = vmatpush1.bf16.msra.mxu0 0
    %1430 = vmatprep.mubr.bf16.mxu0 0
    %1431 = vmatmul.mubr.bf16.gmra.mrb[0].mxu0 %v193
    %v1432 = vpop.f32.mrb[0].mxu0
    %v1433 = vadd.f32 %v361, %v1432
    %v1434 = vpop.f32.mrb[0].mxu0
    %v1435 = vpop.f32.mrb[0].mxu0
    %v1436 = vadd.f32 %v361, %v1435
    %v1437 = vpop.f32.mrb[0].mxu0
    %1438 = vmatprep.mubr.bf16.mxu0 0
    %1439 = vmatmul.mubr.bf16.gmra.mrb[0].mxu0 %v194
    %v1440 = vpop.f32.mrb[0].mxu0
    %v1441 = vadd.f32 %v361, %v1440
    %v1442 = vpop.f32.mrb[0].mxu0
    %v1443 = vpop.f32.mrb[0].mxu0
    %v1444 = vadd.f32 %v361, %v1443
    %v1445 = vpop.f32.mrb[0].mxu0
    %1446 = vmatprep.mubr.bf16.mxu0 0
    %1447 = vmatmul.mubr.bf16.gmra.mrb[0].mxu0 %v195
    %v1448 = vpop.f32.mrb[0].mxu0
    %v1449 = vadd.f32 %v361, %v1448
    %v1450 = vpop.f32.mrb[0].mxu0
    %v1451 = vpop.f32.mrb[0].mxu0
    %v1452 = vadd.f32 %v361, %v1451
    %v1453 = vpop.f32.mrb[0].mxu0
    %1454 = vmatprep.mubr.bf16.mxu0 0
    %1455 = vmatmul.mubr.bf16.gmra.mrb[0].mxu0 %v196
    %v1456 = vpop.f32.mrb[0].mxu0
    %v1457 = vadd.f32 %v361, %v1456
    %v1458 = vpop.f32.mrb[0].mxu0
    %v1459 = vpop.f32.mrb[0].mxu0
    %v1460 = vadd.f32 %v361, %v1459
    %v1461 = vpop.f32.mrb[0].mxu0
    %1462 = vmatprep.mubr.bf16.mxu0 0
    %1463 = vmatmul.mubr.bf16.gmra.mrb[0].mxu0 %v197
    %v1464 = vpop.f32.mrb[0].mxu0
    %v1465 = vadd.f32 %v361, %v1464
    %v1466 = vpop.f32.mrb[0].mxu0
    %v1467 = vpop.f32.mrb[0].mxu0
    %v1468 = vadd.f32 %v361, %v1467
    %v1469 = vpop.f32.mrb[0].mxu0
    %1470 = vmatprep.mubr.bf16.mxu0 0
    %1471 = vmatmul.mubr.bf16.gmra.mrb[0].mxu0 %v198
    %v1472 = vpop.f32.mrb[0].mxu0
    %v1473 = vadd.f32 %v361, %v1472
    %v1474 = vpop.f32.mrb[0].mxu0
    %v1475 = vpop.f32.mrb[0].mxu0
    %v1476 = vadd.f32 %v361, %v1475
    %v1477 = vpop.f32.mrb[0].mxu0
    %1478 = vmatprep.mubr.bf16.mxu0 0
    %1479 = vmatmul.mubr.bf16.gmra.mrb[0].mxu0 %v199
    %v1480 = vpop.f32.mrb[0].mxu0
    %v1481 = vadd.f32 %v361, %v1480
    %v1482 = vpop.f32.mrb[0].mxu0
    %v1483 = vpop.f32.mrb[0].mxu0
    %v1484 = vadd.f32 %v361, %v1483
    %v1485 = vpop.f32.mrb[0].mxu0
    %1486 = vmatprep.mubr.bf16.mxu0 0
    %1487 = vmatmul.mubr.bf16.gmra.mrb[0].mxu0 %v200
    %v1488 = vpop.f32.mrb[0].mxu0
    %v1489 = vadd.f32 %v361, %v1488
    %v1490 = vpop.f32.mrb[0].mxu0
    %v1491 = vpop.f32.mrb[0].mxu0
    %v1492 = vadd.f32 %v361, %v1491
    %v1493 = vpop.f32.mrb[0].mxu0
    %1494 = vdwg.mxu0
    %v1495 = vmax.f32 %v1433, 0.0
    %v1496 = vmax.f32 %v1436, 0.0
    %v1497 = vmax.f32 %v1441, 0.0
    %v1498 = vmax.f32 %v1444, 0.0
    %v1499 = vmax.f32 %v1449, 0.0
    %v1500 = vmax.f32 %v1452, 0.0
    %v1501 = vmax.f32 %v1457, 0.0
    %v1502 = vmax.f32 %v1460, 0.0
    %v1503 = vmax.f32 %v1465, 0.0
    %v1504 = vmax.f32 %v1468, 0.0
    %v1505 = vmax.f32 %v1473, 0.0
    %v1506 = vmax.f32 %v1476, 0.0
    %v1507 = vmax.f32 %v1481, 0.0
    %v1508 = vmax.f32 %v1484, 0.0
    %v1509 = vmax.f32 %v1489, 0.0
    %v1510 = vmax.f32 %v1492, 0.0
    %v1511 = vpack.c.bf16 %v1496, %v1495
    %v1512 = vpack.c.bf16 %v1498, %v1497
    %v1513 = vpack.c.bf16 %v1500, %v1499
    %v1514 = vpack.c.bf16 %v1502, %v1501
    %v1515 = vpack.c.bf16 %v1504, %v1503
    %v1516 = vpack.c.bf16 %v1506, %v1505
    %v1517 = vpack.c.bf16 %v1508, %v1507
    %v1518 = vpack.c.bf16 %v1510, %v1509
    %1519 = vmatprep.subr.bf16.mxu0 0
    %1520 = vmatpush1.bf16.msra.mxu0 %v599
    %1521 = vmatprep.subr.bf16.mxu0 0
    %1522 = vmatpush1.bf16.msra.mxu0 %v600
    %1523 = vmatprep.subr.bf16.mxu0 0
    %1524 = vmatpush1.bf16.msra.mxu0 %v601
    %1525 = vmatprep.subr.bf16.mxu0 0
    %1526 = vmatpush1.bf16.msra.mxu0 %v602
    %1527 = vmatprep.subr.bf16.mxu0 0
    %1528 = vmatpush1.bf16.msra.mxu0 %v603
    %1529 = vmatprep.subr.bf16.mxu0 0
    %1530 = vmatpush1.bf16.msra.mxu0 %v604
    %1531 = vmatprep.subr.bf16.mxu0 0
    %1532 = vmatpush1.bf16.msra.mxu0 %v605
    %1533 = vmatprep.subr.bf16.mxu0 0
    %1534 = vmatpush1.bf16.msra.mxu0 %v606
    %1535 = vmatprep.subr.bf16.mxu0 0
    %1536 = vmatpush1.bf16.msra.mxu0 0
    %1537 = vmatprep.subr.bf16.mxu0 0
    %1538 = vmatpush1.bf16.msra.mxu0 0
    %1539 = vmatprep.subr.bf16.mxu0 0
    %1540 = vmatpush1.bf16.msra.mxu0 0
    %1541 = vmatprep.subr.bf16.mxu0 0
    %1542 = vmatpush1.bf16.msra.mxu0 0
    %1543 = vmatprep.subr.bf16.mxu0 0
    %1544 = vmatpush1.bf16.msra.mxu0 0
    %1545 = vmatprep.subr.bf16.mxu0 0
    %1546 = vmatpush1.bf16.msra.mxu0 0
    %1547 = vmatprep.subr.bf16.mxu0 0
    %1548 = vmatpush1.bf16.msra.mxu0 0
    %1549 = vmatprep.subr.bf16.mxu0 0
    %1550 = vmatpush1.bf16.msra.mxu0 0
    %1551 = vmatprep.mubr.bf16.mxu0 0
    %1552 = vmatmul.mubr.bf16.gmra.mrb[0].mxu0 %v1511
    %v1553 = vpop.f32.mrb[0].mxu0
    %v1554 = vadd.f32 0.0, %v1553
    %v1555 = vpop.f32.mrb[0].mxu0
    %v1556 = vpop.f32.mrb[0].mxu0
    %v1557 = vadd.f32 0.0, %v1556
    %v1558 = vpop.f32.mrb[0].mxu0
    %1559 = vmatprep.mubr.bf16.mxu0 0
    %1560 = vmatmul.mubr.bf16.gmra.mrb[0].mxu0 %v1512
    %v1561 = vpop.f32.mrb[0].mxu0
    %v1562 = vadd.f32 0.0, %v1561
    %v1563 = vpop.f32.mrb[0].mxu0
    %v1564 = vpop.f32.mrb[0].mxu0
    %v1565 = vadd.f32 0.0, %v1564
    %v1566 = vpop.f32.mrb[0].mxu0
    %1567 = vmatprep.mubr.bf16.mxu0 0
    %1568 = vmatmul.mubr.bf16.gmra.mrb[0].mxu0 %v1513
    %v1569 = vpop.f32.mrb[0].mxu0
    %v1570 = vadd.f32 0.0, %v1569
    %v1571 = vpop.f32.mrb[0].mxu0
    %v1572 = vpop.f32.mrb[0].mxu0
    %v1573 = vadd.f32 0.0, %v1572
    %v1574 = vpop.f32.mrb[0].mxu0
    %1575 = vmatprep.mubr.bf16.mxu0 0
    %1576 = vmatmul.mubr.bf16.gmra.mrb[0].mxu0 %v1514
    %v1577 = vpop.f32.mrb[0].mxu0
    %v1578 = vadd.f32 0.0, %v1577
    %v1579 = vpop.f32.mrb[0].mxu0
    %v1580 = vpop.f32.mrb[0].mxu0
    %v1581 = vadd.f32 0.0, %v1580
    %v1582 = vpop.f32.mrb[0].mxu0
    %1583 = vmatprep.mubr.bf16.mxu0 0
    %1584 = vmatmul.mubr.bf16.gmra.mrb[0].mxu0 %v1515
    %v1585 = vpop.f32.mrb[0].mxu0
    %v1586 = vadd.f32 0.0, %v1585
    %v1587 = vpop.f32.mrb[0].mxu0
    %v1588 = vpop.f32.mrb[0].mxu0
    %v1589 = vadd.f32 0.0, %v1588
    %v1590 = vpop.f32.mrb[0].mxu0
    %1591 = vmatprep.mubr.bf16.mxu0 0
    %1592 = vmatmul.mubr.bf16.gmra.mrb[0].mxu0 %v1516
    %v1593 = vpop.f32.mrb[0].mxu0
    %v1594 = vadd.f32 0.0, %v1593
    %v1595 = vpop.f32.mrb[0].mxu0
    %v1596 = vpop.f32.mrb[0].mxu0
    %v1597 = vadd.f32 0.0, %v1596
    %v1598 = vpop.f32.mrb[0].mxu0
    %1599 = vmatprep.mubr.bf16.mxu0 0
    %1600 = vmatmul.mubr.bf16.gmra.mrb[0].mxu0 %v1517
    %v1601 = vpop.f32.mrb[0].mxu0
    %v1602 = vadd.f32 0.0, %v1601
    %v1603 = vpop.f32.mrb[0].mxu0
    %v1604 = vpop.f32.mrb[0].mxu0
    %v1605 = vadd.f32 0.0, %v1604
    %v1606 = vpop.f32.mrb[0].mxu0
    %1607 = vmatprep.mubr.bf16.mxu0 0
    %1608 = vmatmul.mubr.bf16.gmra.mrb[0].mxu0 %v1518
    %v1609 = vpop.f32.mrb[0].mxu0
    %v1610 = vadd.f32 0.0, %v1609
    %v1611 = vpop.f32.mrb[0].mxu0
    %v1612 = vpop.f32.mrb[0].mxu0
    %v1613 = vadd.f32 0.0, %v1612
    %v1614 = vpop.f32.mrb[0].mxu0
    %1615 = vdwg.mxu0
    %v1616 = vpack.c.bf16 %v1557, %v1554
    %v1617 = vpack.c.bf16 %v1565, %v1562
    %v1618 = vpack.c.bf16 %v1573, %v1570
    %v1619 = vpack.c.bf16 %v1581, %v1578
    %v1620 = vpack.c.bf16 %v1589, %v1586
    %v1621 = vpack.c.bf16 %v1597, %v1594
    %v1622 = vpack.c.bf16 %v1605, %v1602
    %v1623 = vpack.c.bf16 %v1613, %v1610
    %1624 = vmatprep.subr.bf16.mxu0 0
    %1625 = vmatpush1.bf16.msra.mxu0 %v1616
    %1626 = vmatprep.subr.bf16.mxu0 0
    %1627 = vmatpush1.bf16.msra.mxu0 %v1617
    %1628 = vmatprep.subr.bf16.mxu0 0
    %1629 = vmatpush1.bf16.msra.mxu0 %v1618
    %1630 = vmatprep.subr.bf16.mxu0 0
    %1631 = vmatpush1.bf16.msra.mxu0 %v1619
    %1632 = vmatprep.subr.bf16.mxu0 0
    %1633 = vmatpush1.bf16.msra.mxu0 %v1620
    %1634 = vmatprep.subr.bf16.mxu0 0
    %1635 = vmatpush1.bf16.msra.mxu0 %v1621
    %1636 = vmatprep.subr.bf16.mxu0 0
    %1637 = vmatpush1.bf16.msra.mxu0 %v1622
    %1638 = vmatprep.subr.bf16.mxu0 0
    %1639 = vmatpush1.bf16.msra.mxu0 %v1623
    %1640 = vmatprep.subr.bf16.mxu0 0
    %1641 = vmatpush1.bf16.msra.mxu0 0
    %1642 = vmatprep.subr.bf16.mxu0 0
    %1643 = vmatpush1.bf16.msra.mxu0 0
    %1644 = vmatprep.subr.bf16.mxu0 0
    %1645 = vmatpush1.bf16.msra.mxu0 0
    %1646 = vmatprep.subr.bf16.mxu0 0
    %1647 = vmatpush1.bf16.msra.mxu0 0
    %1648 = vmatprep.subr.bf16.mxu0 0
    %1649 = vmatpush1.bf16.msra.mxu0 0
    %1650 = vmatprep.subr.bf16.mxu0 0
    %1651 = vmatpush1.bf16.msra.mxu0 0
    %1652 = vmatprep.subr.bf16.mxu0 0
    %1653 = vmatpush1.bf16.msra.mxu0 0
    %1654 = vmatprep.subr.bf16.mxu0 0
    %1655 = vmatpush1.bf16.msra.mxu0 0
    %1656 = vmatprep.mubr.bf16.mxu0 0
    %1657 = vmatmul.mubr.bf16.gmra.mrb[0].mxu0 %v193
    %v1658 = vpop.f32.mrb[0].mxu0
    %v1659 = vadd.f32 %v361, %v1658
    %v1660 = vpop.f32.mrb[0].mxu0
    %v1661 = vpop.f32.mrb[0].mxu0
    %v1662 = vadd.f32 %v361, %v1661
    %v1663 = vpop.f32.mrb[0].mxu0
    %1664 = vmatprep.mubr.bf16.mxu0 0
    %1665 = vmatmul.mubr.bf16.gmra.mrb[0].mxu0 %v194
    %v1666 = vpop.f32.mrb[0].mxu0
    %v1667 = vadd.f32 %v361, %v1666
    %v1668 = vpop.f32.mrb[0].mxu0
    %v1669 = vpop.f32.mrb[0].mxu0
    %v1670 = vadd.f32 %v361, %v1669
    %v1671 = vpop.f32.mrb[0].mxu0
    %1672 = vmatprep.mubr.bf16.mxu0 0
    %1673 = vmatmul.mubr.bf16.gmra.mrb[0].mxu0 %v195
    %v1674 = vpop.f32.mrb[0].mxu0
    %v1675 = vadd.f32 %v361, %v1674
    %v1676 = vpop.f32.mrb[0].mxu0
    %v1677 = vpop.f32.mrb[0].mxu0
    %v1678 = vadd.f32 %v361, %v1677
    %v1679 = vpop.f32.mrb[0].mxu0
    %1680 = vmatprep.mubr.bf16.mxu0 0
    %1681 = vmatmul.mubr.bf16.gmra.mrb[0].mxu0 %v196
    %v1682 = vpop.f32.mrb[0].mxu0
    %v1683 = vadd.f32 %v361, %v1682
    %v1684 = vpop.f32.mrb[0].mxu0
    %v1685 = vpop.f32.mrb[0].mxu0
    %v1686 = vadd.f32 %v361, %v1685
    %v1687 = vpop.f32.mrb[0].mxu0
    %1688 = vmatprep.mubr.bf16.mxu0 0
    %1689 = vmatmul.mubr.bf16.gmra.mrb[0].mxu0 %v197
    %v1690 = vpop.f32.mrb[0].mxu0
    %v1691 = vadd.f32 %v361, %v1690
    %v1692 = vpop.f32.mrb[0].mxu0
    %v1693 = vpop.f32.mrb[0].mxu0
    %v1694 = vadd.f32 %v361, %v1693
    %v1695 = vpop.f32.mrb[0].mxu0
    %1696 = vmatprep.mubr.bf16.mxu0 0
    %1697 = vmatmul.mubr.bf16.gmra.mrb[0].mxu0 %v198
    %v1698 = vpop.f32.mrb[0].mxu0
    %v1699 = vadd.f32 %v361, %v1698
    %v1700 = vpop.f32.mrb[0].mxu0
    %v1701 = vpop.f32.mrb[0].mxu0
    %v1702 = vadd.f32 %v361, %v1701
    %v1703 = vpop.f32.mrb[0].mxu0
    %1704 = vmatprep.mubr.bf16.mxu0 0
    %1705 = vmatmul.mubr.bf16.gmra.mrb[0].mxu0 %v199
    %v1706 = vpop.f32.mrb[0].mxu0
    %v1707 = vadd.f32 %v361, %v1706
    %v1708 = vpop.f32.mrb[0].mxu0
    %v1709 = vpop.f32.mrb[0].mxu0
    %v1710 = vadd.f32 %v361, %v1709
    %v1711 = vpop.f32.mrb[0].mxu0
    %1712 = vmatprep.mubr.bf16.mxu0 0
    %1713 = vmatmul.mubr.bf16.gmra.mrb[0].mxu0 %v200
    %v1714 = vpop.f32.mrb[0].mxu0
    %v1715 = vadd.f32 %v361, %v1714
    %v1716 = vpop.f32.mrb[0].mxu0
    %v1717 = vpop.f32.mrb[0].mxu0
    %v1718 = vadd.f32 %v361, %v1717
    %v1719 = vpop.f32.mrb[0].mxu0
    %1720 = vdwg.mxu0
    %v1721 = vmax.f32 %v1659, 0.0
    %v1722 = vmax.f32 %v1662, 0.0
    %v1723 = vmax.f32 %v1667, 0.0
    %v1724 = vmax.f32 %v1670, 0.0
    %v1725 = vmax.f32 %v1675, 0.0
    %v1726 = vmax.f32 %v1678, 0.0
    %v1727 = vmax.f32 %v1683, 0.0
    %v1728 = vmax.f32 %v1686, 0.0
    %v1729 = vmax.f32 %v1691, 0.0
    %v1730 = vmax.f32 %v1694, 0.0
    %v1731 = vmax.f32 %v1699, 0.0
    %v1732 = vmax.f32 %v1702, 0.0
    %v1733 = vmax.f32 %v1707, 0.0
    %v1734 = vmax.f32 %v1710, 0.0
    %v1735 = vmax.f32 %v1715, 0.0
    %v1736 = vmax.f32 %v1718, 0.0
    %v1737 = vpack.c.bf16 %v1722, %v1721
    %v1738 = vpack.c.bf16 %v1724, %v1723
    %v1739 = vpack.c.bf16 %v1726, %v1725
    %v1740 = vpack.c.bf16 %v1728, %v1727
    %v1741 = vpack.c.bf16 %v1730, %v1729
    %v1742 = vpack.c.bf16 %v1732, %v1731
    %v1743 = vpack.c.bf16 %v1734, %v1733
    %v1744 = vpack.c.bf16 %v1736, %v1735
    %1745 = vmatprep.subr.bf16.mxu0 0
    %1746 = vmatpush1.bf16.msra.mxu0 %v599
    %1747 = vmatprep.subr.bf16.mxu0 0
    %1748 = vmatpush1.bf16.msra.mxu0 %v600
    %1749 = vmatprep.subr.bf16.mxu0 0
    %1750 = vmatpush1.bf16.msra.mxu0 %v601
    %1751 = vmatprep.subr.bf16.mxu0 0
    %1752 = vmatpush1.bf16.msra.mxu0 %v602
    %1753 = vmatprep.subr.bf16.mxu0 0
    %1754 = vmatpush1.bf16.msra.mxu0 %v603
    %1755 = vmatprep.subr.bf16.mxu0 0
    %1756 = vmatpush1.bf16.msra.mxu0 %v604
    %1757 = vmatprep.subr.bf16.mxu0 0
    %1758 = vmatpush1.bf16.msra.mxu0 %v605
    %1759 = vmatprep.subr.bf16.mxu0 0
    %1760 = vmatpush1.bf16.msra.mxu0 %v606
    %1761 = vmatprep.subr.bf16.mxu0 0
    %1762 = vmatpush1.bf16.msra.mxu0 0
    %1763 = vmatprep.subr.bf16.mxu0 0
    %1764 = vmatpush1.bf16.msra.mxu0 0
    %1765 = vmatprep.subr.bf16.mxu0 0
    %1766 = vmatpush1.bf16.msra.mxu0 0
    %1767 = vmatprep.subr.bf16.mxu0 0
    %1768 = vmatpush1.bf16.msra.mxu0 0
    %1769 = vmatprep.subr.bf16.mxu0 0
    %1770 = vmatpush1.bf16.msra.mxu0 0
    %1771 = vmatprep.subr.bf16.mxu0 0
    %1772 = vmatpush1.bf16.msra.mxu0 0
    %1773 = vmatprep.subr.bf16.mxu0 0
    %1774 = vmatpush1.bf16.msra.mxu0 0
    %1775 = vmatprep.subr.bf16.mxu0 0
    %1776 = vmatpush1.bf16.msra.mxu0 0
    %1777 = vmatprep.mubr.bf16.mxu0 0
    %1778 = vmatmul.mubr.bf16.gmra.mrb[0].mxu0 %v1737
    %v1779 = vpop.f32.mrb[0].mxu0
    %v1780 = vadd.f32 0.0, %v1779
    %v1781 = vpop.f32.mrb[0].mxu0
    %v1782 = vpop.f32.mrb[0].mxu0
    %v1783 = vadd.f32 0.0, %v1782
    %v1784 = vpop.f32.mrb[0].mxu0
    %1785 = vmatprep.mubr.bf16.mxu0 0
    %1786 = vmatmul.mubr.bf16.gmra.mrb[0].mxu0 %v1738
    %v1787 = vpop.f32.mrb[0].mxu0
    %v1788 = vadd.f32 0.0, %v1787
    %v1789 = vpop.f32.mrb[0].mxu0
    %v1790 = vpop.f32.mrb[0].mxu0
    %v1791 = vadd.f32 0.0, %v1790
    %v1792 = vpop.f32.mrb[0].mxu0
    %1793 = vmatprep.mubr.bf16.mxu0 0
    %1794 = vmatmul.mubr.bf16.gmra.mrb[0].mxu0 %v1739
    %v1795 = vpop.f32.mrb[0].mxu0
    %v1796 = vadd.f32 0.0, %v1795
    %v1797 = vpop.f32.mrb[0].mxu0
    %v1798 = vpop.f32.mrb[0].mxu0
    %v1799 = vadd.f32 0.0, %v1798
    %v1800 = vpop.f32.mrb[0].mxu0
    %1801 = vmatprep.mubr.bf16.mxu0 0
    %1802 = vmatmul.mubr.bf16.gmra.mrb[0].mxu0 %v1740
    %v1803 = vpop.f32.mrb[0].mxu0
    %v1804 = vadd.f32 0.0, %v1803
    %v1805 = vpop.f32.mrb[0].mxu0
    %v1806 = vpop.f32.mrb[0].mxu0
    %v1807 = vadd.f32 0.0, %v1806
    %v1808 = vpop.f32.mrb[0].mxu0
    %1809 = vmatprep.mubr.bf16.mxu0 0
    %1810 = vmatmul.mubr.bf16.gmra.mrb[0].mxu0 %v1741
    %v1811 = vpop.f32.mrb[0].mxu0
    %v1812 = vadd.f32 0.0, %v1811
    %v1813 = vpop.f32.mrb[0].mxu0
    %v1814 = vpop.f32.mrb[0].mxu0
    %v1815 = vadd.f32 0.0, %v1814
    %v1816 = vpop.f32.mrb[0].mxu0
    %1817 = vmatprep.mubr.bf16.mxu0 0
    %1818 = vmatmul.mubr.bf16.gmra.mrb[0].mxu0 %v1742
    %v1819 = vpop.f32.mrb[0].mxu0
    %v1820 = vadd.f32 0.0, %v1819
    %v1821 = vpop.f32.mrb[0].mxu0
    %v1822 = vpop.f32.mrb[0].mxu0
    %v1823 = vadd.f32 0.0, %v1822
    %v1824 = vpop.f32.mrb[0].mxu0
    %1825 = vmatprep.mubr.bf16.mxu0 0
    %1826 = vmatmul.mubr.bf16.gmra.mrb[0].mxu0 %v1743
    %v1827 = vpop.f32.mrb[0].mxu0
    %v1828 = vadd.f32 0.0, %v1827
    %v1829 = vpop.f32.mrb[0].mxu0
    %v1830 = vpop.f32.mrb[0].mxu0
    %v1831 = vadd.f32 0.0, %v1830
    %v1832 = vpop.f32.mrb[0].mxu0
    %1833 = vmatprep.mubr.bf16.mxu0 0
    %1834 = vmatmul.mubr.bf16.gmra.mrb[0].mxu0 %v1744
    %v1835 = vpop.f32.mrb[0].mxu0
    %v1836 = vadd.f32 0.0, %v1835
    %v1837 = vpop.f32.mrb[0].mxu0
    %v1838 = vpop.f32.mrb[0].mxu0
    %v1839 = vadd.f32 0.0, %v1838
    %v1840 = vpop.f32.mrb[0].mxu0
    %1841 = vdwg.mxu0
    %v1842 = vpack.c.bf16 %v1783, %v1780
    %v1843 = vpack.c.bf16 %v1791, %v1788
    %v1844 = vpack.c.bf16 %v1799, %v1796
    %v1845 = vpack.c.bf16 %v1807, %v1804
    %v1846 = vpack.c.bf16 %v1815, %v1812
    %v1847 = vpack.c.bf16 %v1823, %v1820
    %v1848 = vpack.c.bf16 %v1831, %v1828
    %v1849 = vpack.c.bf16 %v1839, %v1836
    %1850 = vmatprep.subr.bf16.mxu0 0
    %1851 = vmatpush1.bf16.msra.mxu0 %v1842
    %1852 = vmatprep.subr.bf16.mxu0 0
    %1853 = vmatpush1.bf16.msra.mxu0 %v1843
    %1854 = vmatprep.subr.bf16.mxu0 0
    %1855 = vmatpush1.bf16.msra.mxu0 %v1844
    %1856 = vmatprep.subr.bf16.mxu0 0
    %1857 = vmatpush1.bf16.msra.mxu0 %v1845
    %1858 = vmatprep.subr.bf16.mxu0 0
    %1859 = vmatpush1.bf16.msra.mxu0 %v1846
    %1860 = vmatprep.subr.bf16.mxu0 0
    %1861 = vmatpush1.bf16.msra.mxu0 %v1847
    %1862 = vmatprep.subr.bf16.mxu0 0
    %1863 = vmatpush1.bf16.msra.mxu0 %v1848
    %1864 = vmatprep.subr.bf16.mxu0 0
    %1865 = vmatpush1.bf16.msra.mxu0 %v1849
    %1866 = vmatprep.subr.bf16.mxu0 0
    %1867 = vmatpush1.bf16.msra.mxu0 0
    %1868 = vmatprep.subr.bf16.mxu0 0
    %1869 = vmatpush1.bf16.msra.mxu0 0
    %1870 = vmatprep.subr.bf16.mxu0 0
    %1871 = vmatpush1.bf16.msra.mxu0 0
    %1872 = vmatprep.subr.bf16.mxu0 0
    %1873 = vmatpush1.bf16.msra.mxu0 0
    %1874 = vmatprep.subr.bf16.mxu0 0
    %1875 = vmatpush1.bf16.msra.mxu0 0
    %1876 = vmatprep.subr.bf16.mxu0 0
    %1877 = vmatpush1.bf16.msra.mxu0 0
    %1878 = vmatprep.subr.bf16.mxu0 0
    %1879 = vmatpush1.bf16.msra.mxu0 0
    %1880 = vmatprep.subr.bf16.mxu0 0
    %1881 = vmatpush1.bf16.msra.mxu0 0
    %1882 = vmatprep.mubr.bf16.mxu0 0
    %1883 = vmatmul.mubr.bf16.gmra.mrb[0].mxu0 %v193
    %v1884 = vpop.f32.mrb[0].mxu0
    %v1885 = vadd.f32 %v361, %v1884
    %v1886 = vpop.f32.mrb[0].mxu0
    %v1887 = vpop.f32.mrb[0].mxu0
    %v1888 = vadd.f32 %v361, %v1887
    %v1889 = vpop.f32.mrb[0].mxu0
    %1890 = vmatprep.mubr.bf16.mxu0 0
    %1891 = vmatmul.mubr.bf16.gmra.mrb[0].mxu0 %v194
    %v1892 = vpop.f32.mrb[0].mxu0
    %v1893 = vadd.f32 %v361, %v1892
    %v1894 = vpop.f32.mrb[0].mxu0
    %v1895 = vpop.f32.mrb[0].mxu0
    %v1896 = vadd.f32 %v361, %v1895
    %v1897 = vpop.f32.mrb[0].mxu0
    %1898 = vmatprep.mubr.bf16.mxu0 0
    %1899 = vmatmul.mubr.bf16.gmra.mrb[0].mxu0 %v195
    %v1900 = vpop.f32.mrb[0].mxu0
    %v1901 = vadd.f32 %v361, %v1900
    %v1902 = vpop.f32.mrb[0].mxu0
    %v1903 = vpop.f32.mrb[0].mxu0
    %v1904 = vadd.f32 %v361, %v1903
    %v1905 = vpop.f32.mrb[0].mxu0
    %1906 = vmatprep.mubr.bf16.mxu0 0
    %1907 = vmatmul.mubr.bf16.gmra.mrb[0].mxu0 %v196
    %v1908 = vpop.f32.mrb[0].mxu0
    %v1909 = vadd.f32 %v361, %v1908
    %v1910 = vpop.f32.mrb[0].mxu0
    %v1911 = vpop.f32.mrb[0].mxu0
    %v1912 = vadd.f32 %v361, %v1911
    %v1913 = vpop.f32.mrb[0].mxu0
    %1914 = vmatprep.mubr.bf16.mxu0 0
    %1915 = vmatmul.mubr.bf16.gmra.mrb[0].mxu0 %v197
    %v1916 = vpop.f32.mrb[0].mxu0
    %v1917 = vadd.f32 %v361, %v1916
    %v1918 = vpop.f32.mrb[0].mxu0
    %v1919 = vpop.f32.mrb[0].mxu0
    %v1920 = vadd.f32 %v361, %v1919
    %v1921 = vpop.f32.mrb[0].mxu0
    %1922 = vmatprep.mubr.bf16.mxu0 0
    %1923 = vmatmul.mubr.bf16.gmra.mrb[0].mxu0 %v198
    %v1924 = vpop.f32.mrb[0].mxu0
    %v1925 = vadd.f32 %v361, %v1924
    %v1926 = vpop.f32.mrb[0].mxu0
    %v1927 = vpop.f32.mrb[0].mxu0
    %v1928 = vadd.f32 %v361, %v1927
    %v1929 = vpop.f32.mrb[0].mxu0
    %1930 = vmatprep.mubr.bf16.mxu0 0
    %1931 = vmatmul.mubr.bf16.gmra.mrb[0].mxu0 %v199
    %v1932 = vpop.f32.mrb[0].mxu0
    %v1933 = vadd.f32 %v361, %v1932
    %v1934 = vpop.f32.mrb[0].mxu0
    %v1935 = vpop.f32.mrb[0].mxu0
    %v1936 = vadd.f32 %v361, %v1935
    %v1937 = vpop.f32.mrb[0].mxu0
    %1938 = vmatprep.mubr.bf16.mxu0 0
    %1939 = vmatmul.mubr.bf16.gmra.mrb[0].mxu0 %v200
    %v1940 = vpop.f32.mrb[0].mxu0
    %v1941 = vadd.f32 %v361, %v1940
    %v1942 = vpop.f32.mrb[0].mxu0
    %v1943 = vpop.f32.mrb[0].mxu0
    %v1944 = vadd.f32 %v361, %v1943
    %v1945 = vpop.f32.mrb[0].mxu0
    %1946 = vdwg.mxu0
    %v1947 = vmax.f32 %v1885, 0.0
    %v1948 = vmax.f32 %v1888, 0.0
    %v1949 = vmax.f32 %v1893, 0.0
    %v1950 = vmax.f32 %v1896, 0.0
    %v1951 = vmax.f32 %v1901, 0.0
    %v1952 = vmax.f32 %v1904, 0.0
    %v1953 = vmax.f32 %v1909, 0.0
    %v1954 = vmax.f32 %v1912, 0.0
    %v1955 = vmax.f32 %v1917, 0.0
    %v1956 = vmax.f32 %v1920, 0.0
    %v1957 = vmax.f32 %v1925, 0.0
    %v1958 = vmax.f32 %v1928, 0.0
    %v1959 = vmax.f32 %v1933, 0.0
    %v1960 = vmax.f32 %v1936, 0.0
    %v1961 = vmax.f32 %v1941, 0.0
    %v1962 = vmax.f32 %v1944, 0.0
    %v1963 = vpack.c.bf16 %v1948, %v1947
    %v1964 = vpack.c.bf16 %v1950, %v1949
    %v1965 = vpack.c.bf16 %v1952, %v1951
    %v1966 = vpack.c.bf16 %v1954, %v1953
    %v1967 = vpack.c.bf16 %v1956, %v1955
    %v1968 = vpack.c.bf16 %v1958, %v1957
    %v1969 = vpack.c.bf16 %v1960, %v1959
    %v1970 = vpack.c.bf16 %v1962, %v1961
    %v2035 = vunpack.c.l.b16 %v236
    %v2036 = vunpack.c.h.b16 %v236
    %v2037 = vunpack.c.l.b16 %v237
    %v2038 = vunpack.c.h.b16 %v237
    %v2039 = vunpack.c.l.b16 %v238
    %v2040 = vunpack.c.h.b16 %v238
    %v2041 = vunpack.c.l.b16 %v239
    %v2042 = vunpack.c.h.b16 %v239
    %v2043 = vunpack.c.l.b16 %v240
    %v2044 = vunpack.c.h.b16 %v240
    %v2045 = vunpack.c.l.b16 %v241
    %v2046 = vunpack.c.h.b16 %v241
    %v2047 = vunpack.c.l.b16 %v242
    %v2048 = vunpack.c.h.b16 %v242
    %v2049 = vunpack.c.l.b16 %v243
    %v2050 = vunpack.c.h.b16 %v243
    %v2051 = vunpack.c.l.b16 %v244
    %v2052 = vunpack.c.h.b16 %v244
    %v2053 = vunpack.c.l.b16 %v245
    %v2054 = vunpack.c.h.b16 %v245
    %v2055 = vunpack.c.l.b16 %v246
    %v2056 = vunpack.c.h.b16 %v246
    %v2057 = vunpack.c.l.b16 %v247
    %v2058 = vunpack.c.h.b16 %v247
    %v2059 = vunpack.c.l.b16 %v248
    %v2060 = vunpack.c.h.b16 %v248
    %v2061 = vunpack.c.l.b16 %v249
    %v2062 = vunpack.c.h.b16 %v249
    %v2063 = vunpack.c.l.b16 %v250
    %v2064 = vunpack.c.h.b16 %v250
    %v2065 = vunpack.c.l.b16 %v251
    %v2066 = vunpack.c.h.b16 %v251
    %v2067 = vunpack.c.l.b16 %v252
    %v2068 = vunpack.c.h.b16 %v252
    %v2069 = vunpack.c.l.b16 %v253
    %v2070 = vunpack.c.h.b16 %v253
    %v2071 = vunpack.c.l.b16 %v254
    %v2072 = vunpack.c.h.b16 %v254
    %v2073 = vunpack.c.l.b16 %v255
    %v2074 = vunpack.c.h.b16 %v255
    %v2075 = vunpack.c.l.b16 %v256
    %v2076 = vunpack.c.h.b16 %v256
    %v2077 = vunpack.c.l.b16 %v257
    %v2078 = vunpack.c.h.b16 %v257
    %v2079 = vunpack.c.l.b16 %v258
    %v2080 = vunpack.c.h.b16 %v258
    %v2081 = vunpack.c.l.b16 %v259
    %v2082 = vunpack.c.h.b16 %v259
    %v2083 = vunpack.c.l.b16 %v260
    %v2084 = vunpack.c.h.b16 %v260
    %v2085 = vunpack.c.l.b16 %v261
    %v2086 = vunpack.c.h.b16 %v261
    %v2087 = vunpack.c.l.b16 %v262
    %v2088 = vunpack.c.h.b16 %v262
    %v2089 = vunpack.c.l.b16 %v263
    %v2090 = vunpack.c.h.b16 %v263
    %v2091 = vunpack.c.l.b16 %v264
    %v2092 = vunpack.c.h.b16 %v264
    %v2093 = vunpack.c.l.b16 %v265
    %v2094 = vunpack.c.h.b16 %v265
    %v2095 = vunpack.c.l.b16 %v266
    %v2096 = vunpack.c.h.b16 %v266
    %v2097 = vunpack.c.l.b16 %v267
    %v2098 = vunpack.c.h.b16 %v267
    %v2099 = vunpack.c.l.b16 %v268
    %v2100 = vunpack.c.h.b16 %v268
    %v2101 = vunpack.c.l.b16 %v269
    %v2102 = vunpack.c.h.b16 %v269
    %v2103 = vunpack.c.l.b16 %v270
    %v2104 = vunpack.c.h.b16 %v270
    %v2105 = vunpack.c.l.b16 %v271
    %v2106 = vunpack.c.h.b16 %v271
    %v2107 = vunpack.c.l.b16 %v272
    %v2108 = vunpack.c.h.b16 %v272
    %v2109 = vunpack.c.l.b16 %v273
    %v2110 = vunpack.c.h.b16 %v273
    %v2111 = vunpack.c.l.b16 %v274
    %v2112 = vunpack.c.h.b16 %v274
    %v2113 = vunpack.c.l.b16 %v275
    %v2114 = vunpack.c.h.b16 %v275
    %v2115 = vunpack.c.l.b16 %v276
    %v2116 = vunpack.c.h.b16 %v276
    %v2117 = vunpack.c.l.b16 %v277
    %v2118 = vunpack.c.h.b16 %v277
    %v2119 = vunpack.c.l.b16 %v278
    %v2120 = vunpack.c.h.b16 %v278
    %v2121 = vunpack.c.l.b16 %v279
    %v2122 = vunpack.c.h.b16 %v279
    %v2123 = vunpack.c.l.b16 %v280
    %v2124 = vunpack.c.h.b16 %v280
    %v2125 = vunpack.c.l.b16 %v281
    %v2126 = vunpack.c.h.b16 %v281
    %v2127 = vunpack.c.l.b16 %v282
    %v2128 = vunpack.c.h.b16 %v282
    %v2129 = vunpack.c.l.b16 %v283
    %v2130 = vunpack.c.h.b16 %v283
    %v2131 = vunpack.c.l.b16 %v284
    %v2132 = vunpack.c.h.b16 %v284
    %v2133 = vunpack.c.l.b16 %v285
    %v2134 = vunpack.c.h.b16 %v285
    %v2135 = vunpack.c.l.b16 %v286
    %v2136 = vunpack.c.h.b16 %v286
    %v2137 = vunpack.c.l.b16 %v287
    %v2138 = vunpack.c.h.b16 %v287
    %v2139 = vunpack.c.l.b16 %v288
    %v2140 = vunpack.c.h.b16 %v288
    %v2141 = vunpack.c.l.b16 %v289
    %v2142 = vunpack.c.h.b16 %v289
    %v2143 = vunpack.c.l.b16 %v290
    %v2144 = vunpack.c.h.b16 %v290
    %v2145 = vunpack.c.l.b16 %v291
    %v2146 = vunpack.c.h.b16 %v291
    %v2147 = vunpack.c.l.b16 %v292
    %v2148 = vunpack.c.h.b16 %v292
    %v2149 = vunpack.c.l.b16 %v293
    %v2150 = vunpack.c.h.b16 %v293
    %v2151 = vunpack.c.l.b16 %v294
    %v2152 = vunpack.c.h.b16 %v294
    %v2153 = vunpack.c.l.b16 %v295
    %v2154 = vunpack.c.h.b16 %v295
    %v2155 = vunpack.c.l.b16 %v296
    %v2156 = vunpack.c.h.b16 %v296
    %v2157 = vunpack.c.l.b16 %v297
    %v2158 = vunpack.c.h.b16 %v297
    %v2159 = vunpack.c.l.b16 %v298
    %v2160 = vunpack.c.h.b16 %v298
    %v2161 = vunpack.c.l.b16 %v299
    %v2162 = vunpack.c.h.b16 %v299
    %v2163 = vpack.c.b16 %v2039, %v2035
    %v2164 = vpack.c.b16 %v2040, %v2036
    %v2165 = vpack.c.b16 %v2041, %v2037
    %v2166 = vpack.c.b16 %v2042, %v2038
    %v2167 = vpack.c.b16 %v2047, %v2043
    %v2168 = vpack.c.b16 %v2048, %v2044
    %v2169 = vpack.c.b16 %v2049, %v2045
    %v2170 = vpack.c.b16 %v2050, %v2046
    %v2171 = vpack.c.b16 %v2055, %v2051
    %v2172 = vpack.c.b16 %v2056, %v2052
    %v2173 = vpack.c.b16 %v2057, %v2053
    %v2174 = vpack.c.b16 %v2058, %v2054
    %v2175 = vpack.c.b16 %v2063, %v2059
    %v2176 = vpack.c.b16 %v2064, %v2060
    %v2177 = vpack.c.b16 %v2065, %v2061
    %v2178 = vpack.c.b16 %v2066, %v2062
    %v2179 = vpack.c.b16 %v2071, %v2067
    %v2180 = vpack.c.b16 %v2072, %v2068
    %v2181 = vpack.c.b16 %v2073, %v2069
    %v2182 = vpack.c.b16 %v2074, %v2070
    %v2183 = vpack.c.b16 %v2079, %v2075
    %v2184 = vpack.c.b16 %v2080, %v2076
    %v2185 = vpack.c.b16 %v2081, %v2077
    %v2186 = vpack.c.b16 %v2082, %v2078
    %v2187 = vpack.c.b16 %v2087, %v2083
    %v2188 = vpack.c.b16 %v2088, %v2084
    %v2189 = vpack.c.b16 %v2089, %v2085
    %v2190 = vpack.c.b16 %v2090, %v2086
    %v2191 = vpack.c.b16 %v2095, %v2091
    %v2192 = vpack.c.b16 %v2096, %v2092
    %v2193 = vpack.c.b16 %v2097, %v2093
    %v2194 = vpack.c.b16 %v2098, %v2094
    %v2195 = vpack.c.b16 %v2103, %v2099
    %v2196 = vpack.c.b16 %v2104, %v2100
    %v2197 = vpack.c.b16 %v2105, %v2101
    %v2198 = vpack.c.b16 %v2106, %v2102
    %v2199 = vpack.c.b16 %v2111, %v2107
    %v2200 = vpack.c.b16 %v2112, %v2108
    %v2201 = vpack.c.b16 %v2113, %v2109
    %v2202 = vpack.c.b16 %v2114, %v2110
    %v2203 = vpack.c.b16 %v2119, %v2115
    %v2204 = vpack.c.b16 %v2120, %v2116
    %v2205 = vpack.c.b16 %v2121, %v2117
    %v2206 = vpack.c.b16 %v2122, %v2118
    %v2207 = vpack.c.b16 %v2127, %v2123
    %v2208 = vpack.c.b16 %v2128, %v2124
    %v2209 = vpack.c.b16 %v2129, %v2125
    %v2210 = vpack.c.b16 %v2130, %v2126
    %v2211 = vpack.c.b16 %v2135, %v2131
    %v2212 = vpack.c.b16 %v2136, %v2132
    %v2213 = vpack.c.b16 %v2137, %v2133
    %v2214 = vpack.c.b16 %v2138, %v2134
    %v2215 = vpack.c.b16 %v2143, %v2139
    %v2216 = vpack.c.b16 %v2144, %v2140
    %v2217 = vpack.c.b16 %v2145, %v2141
    %v2218 = vpack.c.b16 %v2146, %v2142
    %v2219 = vpack.c.b16 %v2151, %v2147
    %v2220 = vpack.c.b16 %v2152, %v2148
    %v2221 = vpack.c.b16 %v2153, %v2149
    %v2222 = vpack.c.b16 %v2154, %v2150
    %v2223 = vpack.c.b16 %v2159, %v2155
    %v2224 = vpack.c.b16 %v2160, %v2156
    %v2225 = vpack.c.b16 %v2161, %v2157
    %v2226 = vpack.c.b16 %v2162, %v2158
    %2291 = vmatprep.subr.bf16.mxu0 %v2164
    %2292 = vmatpush1.bf16.msra.mxu0 %v2163
    %2293 = vmatprep.subr.bf16.mxu0 %v2168
    %2294 = vmatpush1.bf16.msra.mxu0 %v2167
    %2295 = vmatprep.subr.bf16.mxu0 %v2172
    %2296 = vmatpush1.bf16.msra.mxu0 %v2171
    %2297 = vmatprep.subr.bf16.mxu0 %v2176
    %2298 = vmatpush1.bf16.msra.mxu0 %v2175
    %2299 = vmatprep.subr.bf16.mxu0 %v2180
    %2300 = vmatpush1.bf16.msra.mxu0 %v2179
    %2301 = vmatprep.subr.bf16.mxu0 %v2184
    %2302 = vmatpush1.bf16.msra.mxu0 %v2183
    %2303 = vmatprep.subr.bf16.mxu0 %v2188
    %2304 = vmatpush1.bf16.msra.mxu0 %v2187
    %2305 = vmatprep.subr.bf16.mxu0 %v2192
    %2306 = vmatpush1.bf16.msra.mxu0 %v2191
    %2307 = vmatprep.subr.bf16.mxu0 %v2196
    %2308 = vmatpush1.bf16.msra.mxu0 %v2195
    %2309 = vmatprep.subr.bf16.mxu0 %v2200
    %2310 = vmatpush1.bf16.msra.mxu0 %v2199
    %2311 = vmatprep.subr.bf16.mxu0 %v2204
    %2312 = vmatpush1.bf16.msra.mxu0 %v2203
    %2313 = vmatprep.subr.bf16.mxu0 %v2208
    %2314 = vmatpush1.bf16.msra.mxu0 %v2207
    %2315 = vmatprep.subr.bf16.mxu0 %v2212
    %2316 = vmatpush1.bf16.msra.mxu0 %v2211
    %2317 = vmatprep.subr.bf16.mxu0 %v2216
    %2318 = vmatpush1.bf16.msra.mxu0 %v2215
    %2319 = vmatprep.subr.bf16.mxu0 %v2220
    %2320 = vmatpush1.bf16.msra.mxu0 %v2219
    %2321 = vmatprep.subr.bf16.mxu0 %v2224
    %2322 = vmatpush1.bf16.msra.mxu0 %v2223
    %2323 = vmatprep.mubr.bf16.mxu0 0
    %2324 = vmatmul.mubr.bf16.gmra.mrb[0].mxu0 0
    %v2325 = vpop.f32.mrb[0].mxu0
    %v2326 = vadd.f32 %v367, %v2325
    %v2327 = vpop.f32.mrb[0].mxu0
    %v2328 = vadd.f32 %v371, %v2327
    %v2329 = vpop.f32.mrb[0].mxu0
    %v2330 = vpop.f32.mrb[0].mxu0
    %2331 = vdwg.mxu0
    %2332 = vmatprep.subr.bf16.mxu0 %v2166
    %2333 = vmatpush1.bf16.msra.mxu0 %v2165
    %2334 = vmatprep.subr.bf16.mxu0 %v2170
    %2335 = vmatpush1.bf16.msra.mxu0 %v2169
    %2336 = vmatprep.subr.bf16.mxu0 %v2174
    %2337 = vmatpush1.bf16.msra.mxu0 %v2173
    %2338 = vmatprep.subr.bf16.mxu0 %v2178
    %2339 = vmatpush1.bf16.msra.mxu0 %v2177
    %2340 = vmatprep.subr.bf16.mxu0 %v2182
    %2341 = vmatpush1.bf16.msra.mxu0 %v2181
    %2342 = vmatprep.subr.bf16.mxu0 %v2186
    %2343 = vmatpush1.bf16.msra.mxu0 %v2185
    %2344 = vmatprep.subr.bf16.mxu0 %v2190
    %2345 = vmatpush1.bf16.msra.mxu0 %v2189
    %2346 = vmatprep.subr.bf16.mxu0 %v2194
    %2347 = vmatpush1.bf16.msra.mxu0 %v2193
    %2348 = vmatprep.subr.bf16.mxu0 %v2198
    %2349 = vmatpush1.bf16.msra.mxu0 %v2197
    %2350 = vmatprep.subr.bf16.mxu0 %v2202
    %2351 = vmatpush1.bf16.msra.mxu0 %v2201
    %2352 = vmatprep.subr.bf16.mxu0 %v2206
    %2353 = vmatpush1.bf16.msra.mxu0 %v2205
    %2354 = vmatprep.subr.bf16.mxu0 %v2210
    %2355 = vmatpush1.bf16.msra.mxu0 %v2209
    %2356 = vmatprep.subr.bf16.mxu0 %v2214
    %2357 = vmatpush1.bf16.msra.mxu0 %v2213
    %2358 = vmatprep.subr.bf16.mxu0 %v2218
    %2359 = vmatpush1.bf16.msra.mxu0 %v2217
    %2360 = vmatprep.subr.bf16.mxu0 %v2222
    %2361 = vmatpush1.bf16.msra.mxu0 %v2221
    %2362 = vmatprep.subr.bf16.mxu0 %v2226
    %2363 = vmatpush1.bf16.msra.mxu0 %v2225
    %2364 = vmatprep.mubr.bf16.mxu0 0
    %2365 = vmatmul.mubr.bf16.gmra.mrb[0].mxu0 0
    %v2366 = vpop.f32.mrb[0].mxu0
    %v2367 = vadd.f32 %v375, %v2366
    %v2368 = vpop.f32.mrb[0].mxu0
    %v2369 = vadd.f32 %v379, %v2368
    %v2370 = vpop.f32.mrb[0].mxu0
    %v2371 = vpop.f32.mrb[0].mxu0
    %2372 = vdwg.mxu0
    %v2373 = vxor.u32 %v2326, 2147483648
    %v2374 = vmul.f32 %v2373, 1.442695
    %v2375 = vpow.pop %v2374
    %v2376 = vadd.f32 %v2375, 1.0
    %v2377 = vrcp.pop %v2376
    %v2378 = vmul.f32 1.0, %v2377
    %v2379 = vxor.u32 %v2328, 2147483648
    %v2380 = vmul.f32 %v2379, 1.442695
    %v2381 = vpow.pop %v2380
    %v2382 = vadd.f32 %v2381, 1.0
    %v2383 = vrcp.pop %v2382
    %v2384 = vmul.f32 1.0, %v2383
    %v2385 = vtanh.pop %v2367
    %v2386 = vxor.u32 %v2369, 2147483648
    %v2387 = vmul.f32 %v2386, 1.442695
    %v2388 = vpow.pop %v2387
    %v2389 = vadd.f32 %v2388, 1.0
    %v2390 = vrcp.pop %v2389
    %v2391 = vmul.f32 1.0, %v2390
    %v2392 = vmul.f32 %v2384, 0.0
    %v2393 = vmul.f32 %v2378, %v2385
    %v2394 = vadd.f32 %v2392, %v2393
    %v2395 = vtanh.pop %v2394
    %v2396 = vmul.f32 %v2391, %v2395
    %v2397 = vpack.c.bf16 %v2396, %v2396
    %2398 = vmatprep.subr.bf16.mxu0 0
    %2399 = vmatpush1.bf16.xpose.msra.mxu0 %v1963
    %2400 = vmatprep.subr.bf16.mxu0 0
    %2401 = vmatpush1.bf16.xpose.msra.mxu0 %v1964
    %2402 = vmatprep.subr.bf16.mxu0 0
    %2403 = vmatpush1.bf16.xpose.msra.mxu0 %v1965
    %2404 = vmatprep.subr.bf16.mxu0 0
    %2405 = vmatpush1.bf16.xpose.msra.mxu0 %v1966
    %2406 = vmatprep.subr.bf16.mxu0 0
    %2407 = vmatpush1.bf16.xpose.msra.mxu0 %v1967
    %2408 = vmatprep.subr.bf16.mxu0 0
    %2409 = vmatpush1.bf16.xpose.msra.mxu0 %v1968
    %2410 = vmatprep.subr.bf16.mxu0 0
    %2411 = vmatpush1.bf16.xpose.msra.mxu0 %v1969
    %2412 = vmatprep.subr.bf16.mxu0 0
    %2413 = vmatpush1.bf16.xpose.msra.mxu0 %v1970
    %2414 = vmatprep.subr.bf16.mxu0 0
    %2415 = vmatpush1.bf16.xpose.msra.mxu0 0
    %2416 = vmatprep.subr.bf16.mxu0 0
    %2417 = vmatpush1.bf16.xpose.msra.mxu0 0
    %2418 = vmatprep.subr.bf16.mxu0 0
    %2419 = vmatpush1.bf16.xpose.msra.mxu0 0
    %2420 = vmatprep.subr.bf16.mxu0 0
    %2421 = vmatpush1.bf16.xpose.msra.mxu0 0
    %2422 = vmatprep.subr.bf16.mxu0 0
    %2423 = vmatpush1.bf16.xpose.msra.mxu0 0
    %2424 = vmatprep.subr.bf16.mxu0 0
    %2425 = vmatpush1.bf16.xpose.msra.mxu0 0
    %2426 = vmatprep.subr.bf16.mxu0 0
    %2427 = vmatpush1.bf16.xpose.msra.mxu0 0
    %2428 = vmatprep.subr.bf16.mxu0 0
    %2429 = vmatpush1.bf16.xpose.msra.mxu0 0
    %2430 = vmatprep.mubr.bf16.mxu0 0
    %2431 = vmatmul.mubr.bf16.gmra.mrb[0].mxu0 %v2397
    %v2432 = vpop.f32.mrb[0].mxu0
    %v2433 = vadd.f32 %v397, %v2432
    %v2434 = vpop.f32.mrb[0].mxu0
    %v2435 = vpop.f32.mrb[0].mxu0
    %v2436 = vpop.f32.mrb[0].mxu0
    %2437 = vdwg.mxu0
    %2438 = vmax.xlane.f32.xlu0 %v2433
    %v2439 = vpop.xlane.xlu0 %2438
    %v2440 = vsub.f32 %v2433, %v2439
    %v2441 = vmul.f32 %v2440, 1.442695
    %v2442 = vpow.pop %v2441
    %v2443 = vmul.f32 %v2442, %v201
    %2444 = vadd.xlane.f32.xlu0 %v2443
    %v2445 = vpop.xlane.xlu0 %2444
    %v2446 = vadd.f32 %v2445, 1e-16
    %v2447 = vrcp.pop %v2446
    %v2448 = vmul.f32 %v2443, %v2447
    %v2449 = vpack.c.bf16 %v2448, %v2448
    %2450 = vmatprep.subr.bf16.mxu0 0
    %2451 = vmatpush1.bf16.msra.mxu0 %v1963
    %2452 = vmatprep.subr.bf16.mxu0 0
    %2453 = vmatpush1.bf16.msra.mxu0 %v1964
    %2454 = vmatprep.subr.bf16.mxu0 0
    %2455 = vmatpush1.bf16.msra.mxu0 %v1965
    %2456 = vmatprep.subr.bf16.mxu0 0
    %2457 = vmatpush1.bf16.msra.mxu0 %v1966
    %2458 = vmatprep.subr.bf16.mxu0 0
    %2459 = vmatpush1.bf16.msra.mxu0 %v1967
    %2460 = vmatprep.subr.bf16.mxu0 0
    %2461 = vmatpush1.bf16.msra.mxu0 %v1968
    %2462 = vmatprep.subr.bf16.mxu0 0
    %2463 = vmatpush1.bf16.msra.mxu0 %v1969
    %2464 = vmatprep.subr.bf16.mxu0 0
    %2465 = vmatpush1.bf16.msra.mxu0 %v1970
    %2466 = vmatprep.subr.bf16.mxu0 0
    %2467 = vmatpush1.bf16.msra.mxu0 0
    %2468 = vmatprep.subr.bf16.mxu0 0
    %2469 = vmatpush1.bf16.msra.mxu0 0
    %2470 = vmatprep.subr.bf16.mxu0 0
    %2471 = vmatpush1.bf16.msra.mxu0 0
    %2472 = vmatprep.subr.bf16.mxu0 0
    %2473 = vmatpush1.bf16.msra.mxu0 0
    %2474 = vmatprep.subr.bf16.mxu0 0
    %2475 = vmatpush1.bf16.msra.mxu0 0
    %2476 = vmatprep.subr.bf16.mxu0 0
    %2477 = vmatpush1.bf16.msra.mxu0 0
    %2478 = vmatprep.subr.bf16.mxu0 0
    %2479 = vmatpush1.bf16.msra.mxu0 0
    %2480 = vmatprep.subr.bf16.mxu0 0
    %2481 = vmatpush1.bf16.msra.mxu0 0
    %2482 = vmatprep.mubr.bf16.mxu0 0
    %2483 = vmatmul.mubr.bf16.gmra.mrb[0].mxu0 %v2449
    %v2484 = vpop.f32.mrb[0].mxu0
    %v2485 = vadd.f32 0.0, %v2484
    %v2486 = vpop.f32.mrb[0].mxu0
    %v2487 = vpop.f32.mrb[0].mxu0
    %v2488 = vpop.f32.mrb[0].mxu0
    %2489 = vdwg.mxu0
    %v2490 = vpack.c.bf16 %v2485, %v2485
    %2491 = vmatprep.subr.bf16.mxu0 %v2164
    %2492 = vmatpush1.bf16.msra.mxu0 %v2163
    %2493 = vmatprep.subr.bf16.mxu0 %v2168
    %2494 = vmatpush1.bf16.msra.mxu0 %v2167
    %2495 = vmatprep.subr.bf16.mxu0 %v2172
    %2496 = vmatpush1.bf16.msra.mxu0 %v2171
    %2497 = vmatprep.subr.bf16.mxu0 %v2176
    %2498 = vmatpush1.bf16.msra.mxu0 %v2175
    %2499 = vmatprep.subr.bf16.mxu0 %v2180
    %2500 = vmatpush1.bf16.msra.mxu0 %v2179
    %2501 = vmatprep.subr.bf16.mxu0 %v2184
    %2502 = vmatpush1.bf16.msra.mxu0 %v2183
    %2503 = vmatprep.subr.bf16.mxu0 %v2188
    %2504 = vmatpush1.bf16.msra.mxu0 %v2187
    %2505 = vmatprep.subr.bf16.mxu0 %v2192
    %2506 = vmatpush1.bf16.msra.mxu0 %v2191
    %2507 = vmatprep.subr.bf16.mxu0 %v2196
    %2508 = vmatpush1.bf16.msra.mxu0 %v2195
    %2509 = vmatprep.subr.bf16.mxu0 %v2200
    %2510 = vmatpush1.bf16.msra.mxu0 %v2199
    %2511 = vmatprep.subr.bf16.mxu0 %v2204
    %2512 = vmatpush1.bf16.msra.mxu0 %v2203
    %2513 = vmatprep.subr.bf16.mxu0 %v2208
    %2514 = vmatpush1.bf16.msra.mxu0 %v2207
    %2515 = vmatprep.subr.bf16.mxu0 %v2212
    %2516 = vmatpush1.bf16.msra.mxu0 %v2211
    %2517 = vmatprep.subr.bf16.mxu0 %v2216
    %2518 = vmatpush1.bf16.msra.mxu0 %v2215
    %2519 = vmatprep.subr.bf16.mxu0 %v2220
    %2520 = vmatpush1.bf16.msra.mxu0 %v2219
    %2521 = vmatprep.subr.bf16.mxu0 %v2224
    %2522 = vmatpush1.bf16.msra.mxu0 %v2223
    %2523 = vmatprep.mubr.bf16.mxu0 %v2490
    %2524 = vmatmul.mubr.bf16.gmra.mrb[0].mxu0 %v2397
    %v2525 = vpop.f32.mrb[0].mxu0
    %v2526 = vadd.f32 %v367, %v2525
    %v2527 = vpop.f32.mrb[0].mxu0
    %v2528 = vadd.f32 %v371, %v2527
    %v2529 = vpop.f32.mrb[0].mxu0
    %v2530 = vpop.f32.mrb[0].mxu0
    %2531 = vdwg.mxu0
    %2532 = vmatprep.subr.bf16.mxu0 %v2166
    %2533 = vmatpush1.bf16.msra.mxu0 %v2165
    %2534 = vmatprep.subr.bf16.mxu0 %v2170
    %2535 = vmatpush1.bf16.msra.mxu0 %v2169
    %2536 = vmatprep.subr.bf16.mxu0 %v2174
    %2537 = vmatpush1.bf16.msra.mxu0 %v2173
    %2538 = vmatprep.subr.bf16.mxu0 %v2178
    %2539 = vmatpush1.bf16.msra.mxu0 %v2177
    %2540 = vmatprep.subr.bf16.mxu0 %v2182
    %2541 = vmatpush1.bf16.msra.mxu0 %v2181
    %2542 = vmatprep.subr.bf16.mxu0 %v2186
    %2543 = vmatpush1.bf16.msra.mxu0 %v2185
    %2544 = vmatprep.subr.bf16.mxu0 %v2190
    %2545 = vmatpush1.bf16.msra.mxu0 %v2189
    %2546 = vmatprep.subr.bf16.mxu0 %v2194
    %2547 = vmatpush1.bf16.msra.mxu0 %v2193
    %2548 = vmatprep.subr.bf16.mxu0 %v2198
    %2549 = vmatpush1.bf16.msra.mxu0 %v2197
    %2550 = vmatprep.subr.bf16.mxu0 %v2202
    %2551 = vmatpush1.bf16.msra.mxu0 %v2201
    %2552 = vmatprep.subr.bf16.mxu0 %v2206
    %2553 = vmatpush1.bf16.msra.mxu0 %v2205
    %2554 = vmatprep.subr.bf16.mxu0 %v2210
    %2555 = vmatpush1.bf16.msra.mxu0 %v2209
    %2556 = vmatprep.subr.bf16.mxu0 %v2214
    %2557 = vmatpush1.bf16.msra.mxu0 %v2213
    %2558 = vmatprep.subr.bf16.mxu0 %v2218
    %2559 = vmatpush1.bf16.msra.mxu0 %v2217
    %2560 = vmatprep.subr.bf16.mxu0 %v2222
    %2561 = vmatpush1.bf16.msra.mxu0 %v2221
    %2562 = vmatprep.subr.bf16.mxu0 %v2226
    %2563 = vmatpush1.bf16.msra.mxu0 %v2225
    %2564 = vmatprep.mubr.bf16.mxu0 %v2490
    %2565 = vmatmul.mubr.bf16.gmra.mrb[0].mxu0 %v2397
    %v2566 = vpop.f32.mrb[0].mxu0
    %v2567 = vadd.f32 %v375, %v2566
    %v2568 = vpop.f32.mrb[0].mxu0
    %v2569 = vadd.f32 %v379, %v2568
    %v2570 = vpop.f32.mrb[0].mxu0
    %v2571 = vpop.f32.mrb[0].mxu0
    %2572 = vdwg.mxu0
    %v2573 = vxor.u32 %v2526, 2147483648
    %v2574 = vmul.f32 %v2573, 1.442695
    %v2575 = vpow.pop %v2574
    %v2576 = vadd.f32 %v2575, 1.0
    %v2577 = vrcp.pop %v2576
    %v2578 = vmul.f32 1.0, %v2577
    %v2579 = vxor.u32 %v2528, 2147483648
    %v2580 = vmul.f32 %v2579, 1.442695
    %v2581 = vpow.pop %v2580
    %v2582 = vadd.f32 %v2581, 1.0
    %v2583 = vrcp.pop %v2582
    %v2584 = vmul.f32 1.0, %v2583
    %v2585 = vtanh.pop %v2567
    %v2586 = vxor.u32 %v2569, 2147483648
    %v2587 = vmul.f32 %v2586, 1.442695
    %v2588 = vpow.pop %v2587
    %v2589 = vadd.f32 %v2588, 1.0
    %v2590 = vrcp.pop %v2589
    %v2591 = vmul.f32 1.0, %v2590
    %v2592 = vmul.f32 %v2584, %v2394
    %v2593 = vmul.f32 %v2578, %v2585
    %v2594 = vadd.f32 %v2592, %v2593
    %v2595 = vtanh.pop %v2594
    %v2596 = vmul.f32 %v2591, %v2595
    %v2597 = vpack.c.bf16 %v2596, %v2596
    %2598 = vmatprep.subr.bf16.mxu0 0
    %2599 = vmatpush1.bf16.xpose.msra.mxu0 %v1963
    %2600 = vmatprep.subr.bf16.mxu0 0
    %2601 = vmatpush1.bf16.xpose.msra.mxu0 %v1964
    %2602 = vmatprep.subr.bf16.mxu0 0
    %2603 = vmatpush1.bf16.xpose.msra.mxu0 %v1965
    %2604 = vmatprep.subr.bf16.mxu0 0
    %2605 = vmatpush1.bf16.xpose.msra.mxu0 %v1966
    %2606 = vmatprep.subr.bf16.mxu0 0
    %2607 = vmatpush1.bf16.xpose.msra.mxu0 %v1967
    %2608 = vmatprep.subr.bf16.mxu0 0
    %2609 = vmatpush1.bf16.xpose.msra.mxu0 %v1968
    %2610 = vmatprep.subr.bf16.mxu0 0
    %2611 = vmatpush1.bf16.xpose.msra.mxu0 %v1969
    %2612 = vmatprep.subr.bf16.mxu0 0
    %2613 = vmatpush1.bf16.xpose.msra.mxu0 %v1970
    %2614 = vmatprep.subr.bf16.mxu0 0
    %2615 = vmatpush1.bf16.xpose.msra.mxu0 0
    %2616 = vmatprep.subr.bf16.mxu0 0
    %2617 = vmatpush1.bf16.xpose.msra.mxu0 0
    %2618 = vmatprep.subr.bf16.mxu0 0
    %2619 = vmatpush1.bf16.xpose.msra.mxu0 0
    %2620 = vmatprep.subr.bf16.mxu0 0
    %2621 = vmatpush1.bf16.xpose.msra.mxu0 0
    %2622 = vmatprep.subr.bf16.mxu0 0
    %2623 = vmatpush1.bf16.xpose.msra.mxu0 0
    %2624 = vmatprep.subr.bf16.mxu0 0
    %2625 = vmatpush1.bf16.xpose.msra.mxu0 0
    %2626 = vmatprep.subr.bf16.mxu0 0
    %2627 = vmatpush1.bf16.xpose.msra.mxu0 0
    %2628 = vmatprep.subr.bf16.mxu0 0
    %2629 = vmatpush1.bf16.xpose.msra.mxu0 0
    %2630 = vmatprep.mubr.bf16.mxu0 0
    %2631 = vmatmul.mubr.bf16.gmra.mrb[0].mxu0 %v2597
    %v2632 = vpop.f32.mrb[0].mxu0
    %v2633 = vadd.f32 %v397, %v2632
    %v2634 = vpop.f32.mrb[0].mxu0
    %v2635 = vpop.f32.mrb[0].mxu0
    %v2636 = vpop.f32.mrb[0].mxu0
    %2637 = vdwg.mxu0
    %2638 = vmax.xlane.f32.xlu0 %v2633
    %v2639 = vpop.xlane.xlu0 %2638
    %v2640 = vsub.f32 %v2633, %v2639
    %v2641 = vmul.f32 %v2640, 1.442695
    %v2642 = vpow.pop %v2641
    %v2643 = vmul.f32 %v2642, %v201
    %2644 = vadd.xlane.f32.xlu0 %v2643
    %v2645 = vpop.xlane.xlu0 %2644
    %v2646 = vadd.f32 %v2645, 1e-16
    %v2647 = vrcp.pop %v2646
    %v2648 = vmul.f32 %v2643, %v2647
    %v2649 = vpack.c.bf16 %v2648, %v2648
    %2650 = vmatprep.subr.bf16.mxu0 0
    %2651 = vmatpush1.bf16.msra.mxu0 %v1963
    %2652 = vmatprep.subr.bf16.mxu0 0
    %2653 = vmatpush1.bf16.msra.mxu0 %v1964
    %2654 = vmatprep.subr.bf16.mxu0 0
    %2655 = vmatpush1.bf16.msra.mxu0 %v1965
    %2656 = vmatprep.subr.bf16.mxu0 0
    %2657 = vmatpush1.bf16.msra.mxu0 %v1966
    %2658 = vmatprep.subr.bf16.mxu0 0
    %2659 = vmatpush1.bf16.msra.mxu0 %v1967
    %2660 = vmatprep.subr.bf16.mxu0 0
    %2661 = vmatpush1.bf16.msra.mxu0 %v1968
    %2662 = vmatprep.subr.bf16.mxu0 0
    %2663 = vmatpush1.bf16.msra.mxu0 %v1969
    %2664 = vmatprep.subr.bf16.mxu0 0
    %2665 = vmatpush1.bf16.msra.mxu0 %v1970
    %2666 = vmatprep.subr.bf16.mxu0 0
    %2667 = vmatpush1.bf16.msra.mxu0 0
    %2668 = vmatprep.subr.bf16.mxu0 0
    %2669 = vmatpush1.bf16.msra.mxu0 0
    %2670 = vmatprep.subr.bf16.mxu0 0
    %2671 = vmatpush1.bf16.msra.mxu0 0
    %2672 = vmatprep.subr.bf16.mxu0 0
    %2673 = vmatpush1.bf16.msra.mxu0 0
    %2674 = vmatprep.subr.bf16.mxu0 0
    %2675 = vmatpush1.bf16.msra.mxu0 0
    %2676 = vmatprep.subr.bf16.mxu0 0
    %2677 = vmatpush1.bf16.msra.mxu0 0
    %2678 = vmatprep.subr.bf16.mxu0 0
    %2679 = vmatpush1.bf16.msra.mxu0 0
    %2680 = vmatprep.subr.bf16.mxu0 0
    %2681 = vmatpush1.bf16.msra.mxu0 0
    %2682 = vmatprep.mubr.bf16.mxu0 0
    %2683 = vmatmul.mubr.bf16.gmra.mrb[0].mxu0 %v2649
    %v2684 = vpop.f32.mrb[0].mxu0
    %v2685 = vadd.f32 0.0, %v2684
    %v2686 = vpop.f32.mrb[0].mxu0
    %v2687 = vpop.f32.mrb[0].mxu0
    %v2688 = vpop.f32.mrb[0].mxu0
    %2689 = vdwg.mxu0
    %v2690 = vpack.c.bf16 %v2685, %v2685
    %2691 = vmatprep.subr.bf16.mxu0 %v2164
    %2692 = vmatpush1.bf16.msra.mxu0 %v2163
    %2693 = vmatprep.subr.bf16.mxu0 %v2168
    %2694 = vmatpush1.bf16.msra.mxu0 %v2167
    %2695 = vmatprep.subr.bf16.mxu0 %v2172
    %2696 = vmatpush1.bf16.msra.mxu0 %v2171
    %2697 = vmatprep.subr.bf16.mxu0 %v2176
    %2698 = vmatpush1.bf16.msra.mxu0 %v2175
    %2699 = vmatprep.subr.bf16.mxu0 %v2180
    %2700 = vmatpush1.bf16.msra.mxu0 %v2179
    %2701 = vmatprep.subr.bf16.mxu0 %v2184
    %2702 = vmatpush1.bf16.msra.mxu0 %v2183
    %2703 = vmatprep.subr.bf16.mxu0 %v2188
    %2704 = vmatpush1.bf16.msra.mxu0 %v2187
    %2705 = vmatprep.subr.bf16.mxu0 %v2192
    %2706 = vmatpush1.bf16.msra.mxu0 %v2191
    %2707 = vmatprep.subr.bf16.mxu0 %v2196
    %2708 = vmatpush1.bf16.msra.mxu0 %v2195
    %2709 = vmatprep.subr.bf16.mxu0 %v2200
    %2710 = vmatpush1.bf16.msra.mxu0 %v2199
    %2711 = vmatprep.subr.bf16.mxu0 %v2204
    %2712 = vmatpush1.bf16.msra.mxu0 %v2203
    %2713 = vmatprep.subr.bf16.mxu0 %v2208
    %2714 = vmatpush1.bf16.msra.mxu0 %v2207
    %2715 = vmatprep.subr.bf16.mxu0 %v2212
    %2716 = vmatpush1.bf16.msra.mxu0 %v2211
    %2717 = vmatprep.subr.bf16.mxu0 %v2216
    %2718 = vmatpush1.bf16.msra.mxu0 %v2215
    %2719 = vmatprep.subr.bf16.mxu0 %v2220
    %2720 = vmatpush1.bf16.msra.mxu0 %v2219
    %2721 = vmatprep.subr.bf16.mxu0 %v2224
    %2722 = vmatpush1.bf16.msra.mxu0 %v2223
    %2723 = vmatprep.mubr.bf16.mxu0 %v2690
    %2724 = vmatmul.mubr.bf16.gmra.mrb[0].mxu0 %v2597
    %v2725 = vpop.f32.mrb[0].mxu0
    %v2726 = vadd.f32 %v367, %v2725
    %v2727 = vpop.f32.mrb[0].mxu0
    %v2728 = vadd.f32 %v371, %v2727
    %v2729 = vpop.f32.mrb[0].mxu0
    %v2730 = vpop.f32.mrb[0].mxu0
    %2731 = vdwg.mxu0
    %2732 = vmatprep.subr.bf16.mxu0 %v2166
    %2733 = vmatpush1.bf16.msra.mxu0 %v2165
    %2734 = vmatprep.subr.bf16.mxu0 %v2170
    %2735 = vmatpush1.bf16.msra.mxu0 %v2169
    %2736 = vmatprep.subr.bf16.mxu0 %v2174
    %2737 = vmatpush1.bf16.msra.mxu0 %v2173
    %2738 = vmatprep.subr.bf16.mxu0 %v2178
    %2739 = vmatpush1.bf16.msra.mxu0 %v2177
    %2740 = vmatprep.subr.bf16.mxu0 %v2182
    %2741 = vmatpush1.bf16.msra.mxu0 %v2181
    %2742 = vmatprep.subr.bf16.mxu0 %v2186
    %2743 = vmatpush1.bf16.msra.mxu0 %v2185
    %2744 = vmatprep.subr.bf16.mxu0 %v2190
    %2745 = vmatpush1.bf16.msra.mxu0 %v2189
    %2746 = vmatprep.subr.bf16.mxu0 %v2194
    %2747 = vmatpush1.bf16.msra.mxu0 %v2193
    %2748 = vmatprep.subr.bf16.mxu0 %v2198
    %2749 = vmatpush1.bf16.msra.mxu0 %v2197
    %2750 = vmatprep.subr.bf16.mxu0 %v2202
    %2751 = vmatpush1.bf16.msra.mxu0 %v2201
    %2752 = vmatprep.subr.bf16.mxu0 %v2206
    %2753 = vmatpush1.bf16.msra.mxu0 %v2205
    %2754 = vmatprep.subr.bf16.mxu0 %v2210
    %2755 = vmatpush1.bf16.msra.mxu0 %v2209
    %2756 = vmatprep.subr.bf16.mxu0 %v2214
    %2757 = vmatpush1.bf16.msra.mxu0 %v2213
    %2758 = vmatprep.subr.bf16.mxu0 %v2218
    %2759 = vmatpush1.bf16.msra.mxu0 %v2217
    %2760 = vmatprep.subr.bf16.mxu0 %v2222
    %2761 = vmatpush1.bf16.msra.mxu0 %v2221
    %2762 = vmatprep.subr.bf16.mxu0 %v2226
    %2763 = vmatpush1.bf16.msra.mxu0 %v2225
    %2764 = vmatprep.mubr.bf16.mxu0 %v2690
    %2765 = vmatmul.mubr.bf16.gmra.mrb[0].mxu0 %v2597
    %v2766 = vpop.f32.mrb[0].mxu0
    %v2767 = vadd.f32 %v375, %v2766
    %v2768 = vpop.f32.mrb[0].mxu0
    %v2769 = vadd.f32 %v379, %v2768
    %v2770 = vpop.f32.mrb[0].mxu0
    %v2771 = vpop.f32.mrb[0].mxu0
    %2772 = vdwg.mxu0
    %v2773 = vxor.u32 %v2726, 2147483648
    %v2774 = vmul.f32 %v2773, 1.442695
    %v2775 = vpow.pop %v2774
    %v2776 = vadd.f32 %v2775, 1.0
    %v2777 = vrcp.pop %v2776
    %v2778 = vmul.f32 1.0, %v2777
    %v2779 = vxor.u32 %v2728, 2147483648
    %v2780 = vmul.f32 %v2779, 1.442695
    %v2781 = vpow.pop %v2780
    %v2782 = vadd.f32 %v2781, 1.0
    %v2783 = vrcp.pop %v2782
    %v2784 = vmul.f32 1.0, %v2783
    %v2785 = vtanh.pop %v2767
    %v2786 = vxor.u32 %v2769, 2147483648
    %v2787 = vmul.f32 %v2786, 1.442695
    %v2788 = vpow.pop %v2787
    %v2789 = vadd.f32 %v2788, 1.0
    %v2790 = vrcp.pop %v2789
    %v2791 = vmul.f32 1.0, %v2790
    %v2792 = vmul.f32 %v2784, %v2594
    %v2793 = vmul.f32 %v2778, %v2785
    %v2794 = vadd.f32 %v2792, %v2793
    %v2795 = vtanh.pop %v2794
    %v2796 = vmul.f32 %v2791, %v2795
    %v2797 = vpack.c.bf16 %v2796, %v2796
    %2798 = vmatprep.subr.bf16.mxu0 0
    %2799 = vmatpush1.bf16.xpose.msra.mxu0 %v1963
    %2800 = vmatprep.subr.bf16.mxu0 0
    %2801 = vmatpush1.bf16.xpose.msra.mxu0 %v1964
    %2802 = vmatprep.subr.bf16.mxu0 0
    %2803 = vmatpush1.bf16.xpose.msra.mxu0 %v1965
    %2804 = vmatprep.subr.bf16.mxu0 0
    %2805 = vmatpush1.bf16.xpose.msra.mxu0 %v1966
    %2806 = vmatprep.subr.bf16.mxu0 0
    %2807 = vmatpush1.bf16.xpose.msra.mxu0 %v1967
    %2808 = vmatprep.subr.bf16.mxu0 0
    %2809 = vmatpush1.bf16.xpose.msra.mxu0 %v1968
    %2810 = vmatprep.subr.bf16.mxu0 0
    %2811 = vmatpush1.bf16.xpose.msra.mxu0 %v1969
    %2812 = vmatprep.subr.bf16.mxu0 0
    %2813 = vmatpush1.bf16.xpose.msra.mxu0 %v1970
    %2814 = vmatprep.subr.bf16.mxu0 0
    %2815 = vmatpush1.bf16.xpose.msra.mxu0 0
    %2816 = vmatprep.subr.bf16.mxu0 0
    %2817 = vmatpush1.bf16.xpose.msra.mxu0 0
    %2818 = vmatprep.subr.bf16.mxu0 0
    %2819 = vmatpush1.bf16.xpose.msra.mxu0 0
    %2820 = vmatprep.subr.bf16.mxu0 0
    %2821 = vmatpush1.bf16.xpose.msra.mxu0 0
    %2822 = vmatprep.subr.bf16.mxu0 0
    %2823 = vmatpush1.bf16.xpose.msra.mxu0 0
    %2824 = vmatprep.subr.bf16.mxu0 0
    %2825 = vmatpush1.bf16.xpose.msra.mxu0 0
    %2826 = vmatprep.subr.bf16.mxu0 0
    %2827 = vmatpush1.bf16.xpose.msra.mxu0 0
    %2828 = vmatprep.subr.bf16.mxu0 0
    %2829 = vmatpush1.bf16.xpose.msra.mxu0 0
    %2830 = vmatprep.mubr.bf16.mxu0 0
    %2831 = vmatmul.mubr.bf16.gmra.mrb[0].mxu0 %v2797
    %v2832 = vpop.f32.mrb[0].mxu0
    %v2833 = vadd.f32 %v397, %v2832
    %v2834 = vpop.f32.mrb[0].mxu0
    %v2835 = vpop.f32.mrb[0].mxu0
    %v2836 = vpop.f32.mrb[0].mxu0
    %2837 = vdwg.mxu0
    %2838 = vmax.xlane.f32.xlu0 %v2833
    %v2839 = vpop.xlane.xlu0 %2838
    %v2840 = vsub.f32 %v2833, %v2839
    %v2841 = vmul.f32 %v2840, 1.442695
    %v2842 = vpow.pop %v2841
    %v2843 = vmul.f32 %v2842, %v201
    %2844 = vadd.xlane.f32.xlu0 %v2843
    %v2845 = vpop.xlane.xlu0 %2844
    %v2846 = vadd.f32 %v2845, 1e-16
    %v2847 = vrcp.pop %v2846
    %v2848 = vmul.f32 %v2843, %v2847
    %v2849 = vpack.c.bf16 %v2848, %v2848
    %2850 = vmatprep.subr.bf16.mxu0 0
    %2851 = vmatpush1.bf16.msra.mxu0 %v1963
    %2852 = vmatprep.subr.bf16.mxu0 0
    %2853 = vmatpush1.bf16.msra.mxu0 %v1964
    %2854 = vmatprep.subr.bf16.mxu0 0
    %2855 = vmatpush1.bf16.msra.mxu0 %v1965
    %2856 = vmatprep.subr.bf16.mxu0 0
    %2857 = vmatpush1.bf16.msra.mxu0 %v1966
    %2858 = vmatprep.subr.bf16.mxu0 0
    %2859 = vmatpush1.bf16.msra.mxu0 %v1967
    %2860 = vmatprep.subr.bf16.mxu0 0
    %2861 = vmatpush1.bf16.msra.mxu0 %v1968
    %2862 = vmatprep.subr.bf16.mxu0 0
    %2863 = vmatpush1.bf16.msra.mxu0 %v1969
    %2864 = vmatprep.subr.bf16.mxu0 0
    %2865 = vmatpush1.bf16.msra.mxu0 %v1970
    %2866 = vmatprep.subr.bf16.mxu0 0
    %2867 = vmatpush1.bf16.msra.mxu0 0
    %2868 = vmatprep.subr.bf16.mxu0 0
    %2869 = vmatpush1.bf16.msra.mxu0 0
    %2870 = vmatprep.subr.bf16.mxu0 0
    %2871 = vmatpush1.bf16.msra.mxu0 0
    %2872 = vmatprep.subr.bf16.mxu0 0
    %2873 = vmatpush1.bf16.msra.mxu0 0
    %2874 = vmatprep.subr.bf16.mxu0 0
    %2875 = vmatpush1.bf16.msra.mxu0 0
    %2876 = vmatprep.subr.bf16.mxu0 0
    %2877 = vmatpush1.bf16.msra.mxu0 0
    %2878 = vmatprep.subr.bf16.mxu0 0
    %2879 = vmatpush1.bf16.msra.mxu0 0
    %2880 = vmatprep.subr.bf16.mxu0 0
    %2881 = vmatpush1.bf16.msra.mxu0 0
    %2882 = vmatprep.mubr.bf16.mxu0 0
    %2883 = vmatmul.mubr.bf16.gmra.mrb[0].mxu0 %v2849
    %v2884 = vpop.f32.mrb[0].mxu0
    %v2885 = vadd.f32 0.0, %v2884
    %v2886 = vpop.f32.mrb[0].mxu0
    %v2887 = vpop.f32.mrb[0].mxu0
    %v2888 = vpop.f32.mrb[0].mxu0
    %2889 = vdwg.mxu0
    %v2890 = vpack.c.bf16 %v2885, %v2885
    %2891 = vmatprep.subr.bf16.mxu0 %v2164
    %2892 = vmatpush1.bf16.msra.mxu0 %v2163
    %2893 = vmatprep.subr.bf16.mxu0 %v2168
    %2894 = vmatpush1.bf16.msra.mxu0 %v2167
    %2895 = vmatprep.subr.bf16.mxu0 %v2172
    %2896 = vmatpush1.bf16.msra.mxu0 %v2171
    %2897 = vmatprep.subr.bf16.mxu0 %v2176
    %2898 = vmatpush1.bf16.msra.mxu0 %v2175
    %2899 = vmatprep.subr.bf16.mxu0 %v2180
    %2900 = vmatpush1.bf16.msra.mxu0 %v2179
    %2901 = vmatprep.subr.bf16.mxu0 %v2184
    %2902 = vmatpush1.bf16.msra.mxu0 %v2183
    %2903 = vmatprep.subr.bf16.mxu0 %v2188
    %2904 = vmatpush1.bf16.msra.mxu0 %v2187
    %2905 = vmatprep.subr.bf16.mxu0 %v2192
    %2906 = vmatpush1.bf16.msra.mxu0 %v2191
    %2907 = vmatprep.subr.bf16.mxu0 %v2196
    %2908 = vmatpush1.bf16.msra.mxu0 %v2195
    %2909 = vmatprep.subr.bf16.mxu0 %v2200
    %2910 = vmatpush1.bf16.msra.mxu0 %v2199
    %2911 = vmatprep.subr.bf16.mxu0 %v2204
    %2912 = vmatpush1.bf16.msra.mxu0 %v2203
    %2913 = vmatprep.subr.bf16.mxu0 %v2208
    %2914 = vmatpush1.bf16.msra.mxu0 %v2207
    %2915 = vmatprep.subr.bf16.mxu0 %v2212
    %2916 = vmatpush1.bf16.msra.mxu0 %v2211
    %2917 = vmatprep.subr.bf16.mxu0 %v2216
    %2918 = vmatpush1.bf16.msra.mxu0 %v2215
    %2919 = vmatprep.subr.bf16.mxu0 %v2220
    %2920 = vmatpush1.bf16.msra.mxu0 %v2219
    %2921 = vmatprep.subr.bf16.mxu0 %v2224
    %2922 = vmatpush1.bf16.msra.mxu0 %v2223
    %2923 = vmatprep.mubr.bf16.mxu0 %v2890
    %2924 = vmatmul.mubr.bf16.gmra.mrb[0].mxu0 %v2797
    %v2925 = vpop.f32.mrb[0].mxu0
    %v2926 = vadd.f32 %v367, %v2925
    %v2927 = vpop.f32.mrb[0].mxu0
    %v2928 = vadd.f32 %v371, %v2927
    %v2929 = vpop.f32.mrb[0].mxu0
    %v2930 = vpop.f32.mrb[0].mxu0
    %2931 = vdwg.mxu0
    %2932 = vmatprep.subr.bf16.mxu0 %v2166
    %2933 = vmatpush1.bf16.msra.mxu0 %v2165
    %2934 = vmatprep.subr.bf16.mxu0 %v2170
    %2935 = vmatpush1.bf16.msra.mxu0 %v2169
    %2936 = vmatprep.subr.bf16.mxu0 %v2174
    %2937 = vmatpush1.bf16.msra.mxu0 %v2173
    %2938 = vmatprep.subr.bf16.mxu0 %v2178
    %2939 = vmatpush1.bf16.msra.mxu0 %v2177
    %2940 = vmatprep.subr.bf16.mxu0 %v2182
    %2941 = vmatpush1.bf16.msra.mxu0 %v2181
    %2942 = vmatprep.subr.bf16.mxu0 %v2186
    %2943 = vmatpush1.bf16.msra.mxu0 %v2185
    %2944 = vmatprep.subr.bf16.mxu0 %v2190
    %2945 = vmatpush1.bf16.msra.mxu0 %v2189
    %2946 = vmatprep.subr.bf16.mxu0 %v2194
    %2947 = vmatpush1.bf16.msra.mxu0 %v2193
    %2948 = vmatprep.subr.bf16.mxu0 %v2198
    %2949 = vmatpush1.bf16.msra.mxu0 %v2197
    %2950 = vmatprep.subr.bf16.mxu0 %v2202
    %2951 = vmatpush1.bf16.msra.mxu0 %v2201
    %2952 = vmatprep.subr.bf16.mxu0 %v2206
    %2953 = vmatpush1.bf16.msra.mxu0 %v2205
    %2954 = vmatprep.subr.bf16.mxu0 %v2210
    %2955 = vmatpush1.bf16.msra.mxu0 %v2209
    %2956 = vmatprep.subr.bf16.mxu0 %v2214
    %2957 = vmatpush1.bf16.msra.mxu0 %v2213
    %2958 = vmatprep.subr.bf16.mxu0 %v2218
    %2959 = vmatpush1.bf16.msra.mxu0 %v2217
    %2960 = vmatprep.subr.bf16.mxu0 %v2222
    %2961 = vmatpush1.bf16.msra.mxu0 %v2221
    %2962 = vmatprep.subr.bf16.mxu0 %v2226
    %2963 = vmatpush1.bf16.msra.mxu0 %v2225
    %2964 = vmatprep.mubr.bf16.mxu0 %v2890
    %2965 = vmatmul.mubr.bf16.gmra.mrb[0].mxu0 %v2797
    %v2966 = vpop.f32.mrb[0].mxu0
    %v2967 = vadd.f32 %v375, %v2966
    %v2968 = vpop.f32.mrb[0].mxu0
    %v2969 = vadd.f32 %v379, %v2968
    %v2970 = vpop.f32.mrb[0].mxu0
    %v2971 = vpop.f32.mrb[0].mxu0
    %2972 = vdwg.mxu0
    %v2973 = vxor.u32 %v2926, 2147483648
    %v2974 = vmul.f32 %v2973, 1.442695
    %v2975 = vpow.pop %v2974
    %v2976 = vadd.f32 %v2975, 1.0
    %v2977 = vrcp.pop %v2976
    %v2978 = vmul.f32 1.0, %v2977
    %v2979 = vxor.u32 %v2928, 2147483648
    %v2980 = vmul.f32 %v2979, 1.442695
    %v2981 = vpow.pop %v2980
    %v2982 = vadd.f32 %v2981, 1.0
    %v2983 = vrcp.pop %v2982
    %v2984 = vmul.f32 1.0, %v2983
    %v2985 = vtanh.pop %v2967
    %v2986 = vxor.u32 %v2969, 2147483648
    %v2987 = vmul.f32 %v2986, 1.442695
    %v2988 = vpow.pop %v2987
    %v2989 = vadd.f32 %v2988, 1.0
    %v2990 = vrcp.pop %v2989
    %v2991 = vmul.f32 1.0, %v2990
    %v2992 = vmul.f32 %v2984, %v2794
    %v2993 = vmul.f32 %v2978, %v2985
    %v2994 = vadd.f32 %v2992, %v2993
    %v2995 = vtanh.pop %v2994
    %v2996 = vmul.f32 %v2991, %v2995
    %v2997 = vpack.c.bf16 %v2996, %v2996
    %2998 = vmatprep.subr.bf16.mxu0 0
    %2999 = vmatpush1.bf16.xpose.msra.mxu0 %v1963
    %3000 = vmatprep.subr.bf16.mxu0 0
    %3001 = vmatpush1.bf16.xpose.msra.mxu0 %v1964
    %3002 = vmatprep.subr.bf16.mxu0 0
    %3003 = vmatpush1.bf16.xpose.msra.mxu0 %v1965
    %3004 = vmatprep.subr.bf16.mxu0 0
    %3005 = vmatpush1.bf16.xpose.msra.mxu0 %v1966
    %3006 = vmatprep.subr.bf16.mxu0 0
    %3007 = vmatpush1.bf16.xpose.msra.mxu0 %v1967
    %3008 = vmatprep.subr.bf16.mxu0 0
    %3009 = vmatpush1.bf16.xpose.msra.mxu0 %v1968
    %3010 = vmatprep.subr.bf16.mxu0 0
    %3011 = vmatpush1.bf16.xpose.msra.mxu0 %v1969
    %3012 = vmatprep.subr.bf16.mxu0 0
    %3013 = vmatpush1.bf16.xpose.msra.mxu0 %v1970
    %3014 = vmatprep.subr.bf16.mxu0 0
    %3015 = vmatpush1.bf16.xpose.msra.mxu0 0
    %3016 = vmatprep.subr.bf16.mxu0 0
    %3017 = vmatpush1.bf16.xpose.msra.mxu0 0
    %3018 = vmatprep.subr.bf16.mxu0 0
    %3019 = vmatpush1.bf16.xpose.msra.mxu0 0
    %3020 = vmatprep.subr.bf16.mxu0 0
    %3021 = vmatpush1.bf16.xpose.msra.mxu0 0
    %3022 = vmatprep.subr.bf16.mxu0 0
    %3023 = vmatpush1.bf16.xpose.msra.mxu0 0
    %3024 = vmatprep.subr.bf16.mxu0 0
    %3025 = vmatpush1.bf16.xpose.msra.mxu0 0
    %3026 = vmatprep.subr.bf16.mxu0 0
    %3027 = vmatpush1.bf16.xpose.msra.mxu0 0
    %3028 = vmatprep.subr.bf16.mxu0 0
    %3029 = vmatpush1.bf16.xpose.msra.mxu0 0
    %3030 = vmatprep.mubr.bf16.mxu0 0
    %3031 = vmatmul.mubr.bf16.gmra.mrb[0].mxu0 %v2997
    %v3032 = vpop.f32.mrb[0].mxu0
    %v3033 = vadd.f32 %v397, %v3032
    %v3034 = vpop.f32.mrb[0].mxu0
    %v3035 = vpop.f32.mrb[0].mxu0
    %v3036 = vpop.f32.mrb[0].mxu0
    %3037 = vdwg.mxu0
    %3038 = vmax.xlane.f32.xlu0 %v3033
    %v3039 = vpop.xlane.xlu0 %3038
    %v3040 = vsub.f32 %v3033, %v3039
    %v3041 = vmul.f32 %v3040, 1.442695
    %v3042 = vpow.pop %v3041
    %v3043 = vmul.f32 %v3042, %v201
    %3044 = vadd.xlane.f32.xlu0 %v3043
    %v3045 = vpop.xlane.xlu0 %3044
    %v3046 = vadd.f32 %v3045, 1e-16
    %v3047 = vrcp.pop %v3046
    %v3048 = vmul.f32 %v3043, %v3047
    %v3049 = vpack.c.bf16 %v3048, %v3048
    %3050 = vmatprep.subr.bf16.mxu0 0
    %3051 = vmatpush1.bf16.msra.mxu0 %v1963
    %3052 = vmatprep.subr.bf16.mxu0 0
    %3053 = vmatpush1.bf16.msra.mxu0 %v1964
    %3054 = vmatprep.subr.bf16.mxu0 0
    %3055 = vmatpush1.bf16.msra.mxu0 %v1965
    %3056 = vmatprep.subr.bf16.mxu0 0
    %3057 = vmatpush1.bf16.msra.mxu0 %v1966
    %3058 = vmatprep.subr.bf16.mxu0 0
    %3059 = vmatpush1.bf16.msra.mxu0 %v1967
    %3060 = vmatprep.subr.bf16.mxu0 0
    %3061 = vmatpush1.bf16.msra.mxu0 %v1968
    %3062 = vmatprep.subr.bf16.mxu0 0
    %3063 = vmatpush1.bf16.msra.mxu0 %v1969
    %3064 = vmatprep.subr.bf16.mxu0 0
    %3065 = vmatpush1.bf16.msra.mxu0 %v1970
    %3066 = vmatprep.subr.bf16.mxu0 0
    %3067 = vmatpush1.bf16.msra.mxu0 0
    %3068 = vmatprep.subr.bf16.mxu0 0
    %3069 = vmatpush1.bf16.msra.mxu0 0
    %3070 = vmatprep.subr.bf16.mxu0 0
    %3071 = vmatpush1.bf16.msra.mxu0 0
    %3072 = vmatprep.subr.bf16.mxu0 0
    %3073 = vmatpush1.bf16.msra.mxu0 0
    %3074 = vmatprep.subr.bf16.mxu0 0
    %3075 = vmatpush1.bf16.msra.mxu0 0
    %3076 = vmatprep.subr.bf16.mxu0 0
    %3077 = vmatpush1.bf16.msra.mxu0 0
    %3078 = vmatprep.subr.bf16.mxu0 0
    %3079 = vmatpush1.bf16.msra.mxu0 0
    %3080 = vmatprep.subr.bf16.mxu0 0
    %3081 = vmatpush1.bf16.msra.mxu0 0
    %3082 = vmatprep.mubr.bf16.mxu0 0
    %3083 = vmatmul.mubr.bf16.gmra.mrb[0].mxu0 %v3049
    %v3084 = vpop.f32.mrb[0].mxu0
    %v3085 = vadd.f32 0.0, %v3084
    %v3086 = vpop.f32.mrb[0].mxu0
    %v3087 = vpop.f32.mrb[0].mxu0
    %v3088 = vpop.f32.mrb[0].mxu0
    %3089 = vdwg.mxu0
    %v3090 = vpack.c.bf16 %v3085, %v3085
    %3091 = vmatprep.subr.bf16.mxu0 %v2164
    %3092 = vmatpush1.bf16.msra.mxu0 %v2163
    %3093 = vmatprep.subr.bf16.mxu0 %v2168
    %3094 = vmatpush1.bf16.msra.mxu0 %v2167
    %3095 = vmatprep.subr.bf16.mxu0 %v2172
    %3096 = vmatpush1.bf16.msra.mxu0 %v2171
    %3097 = vmatprep.subr.bf16.mxu0 %v2176
    %3098 = vmatpush1.bf16.msra.mxu0 %v2175
    %3099 = vmatprep.subr.bf16.mxu0 %v2180
    %3100 = vmatpush1.bf16.msra.mxu0 %v2179
    %3101 = vmatprep.subr.bf16.mxu0 %v2184
    %3102 = vmatpush1.bf16.msra.mxu0 %v2183
    %3103 = vmatprep.subr.bf16.mxu0 %v2188
    %3104 = vmatpush1.bf16.msra.mxu0 %v2187
    %3105 = vmatprep.subr.bf16.mxu0 %v2192
    %3106 = vmatpush1.bf16.msra.mxu0 %v2191
    %3107 = vmatprep.subr.bf16.mxu0 %v2196
    %3108 = vmatpush1.bf16.msra.mxu0 %v2195
    %3109 = vmatprep.subr.bf16.mxu0 %v2200
    %3110 = vmatpush1.bf16.msra.mxu0 %v2199
    %3111 = vmatprep.subr.bf16.mxu0 %v2204
    %3112 = vmatpush1.bf16.msra.mxu0 %v2203
    %3113 = vmatprep.subr.bf16.mxu0 %v2208
    %3114 = vmatpush1.bf16.msra.mxu0 %v2207
    %3115 = vmatprep.subr.bf16.mxu0 %v2212
    %3116 = vmatpush1.bf16.msra.mxu0 %v2211
    %3117 = vmatprep.subr.bf16.mxu0 %v2216
    %3118 = vmatpush1.bf16.msra.mxu0 %v2215
    %3119 = vmatprep.subr.bf16.mxu0 %v2220
    %3120 = vmatpush1.bf16.msra.mxu0 %v2219
    %3121 = vmatprep.subr.bf16.mxu0 %v2224
    %3122 = vmatpush1.bf16.msra.mxu0 %v2223
    %3123 = vmatprep.mubr.bf16.mxu0 %v3090
    %3124 = vmatmul.mubr.bf16.gmra.mrb[0].mxu0 %v2997
    %v3125 = vpop.f32.mrb[0].mxu0
    %v3126 = vadd.f32 %v367, %v3125
    %v3127 = vpop.f32.mrb[0].mxu0
    %v3128 = vadd.f32 %v371, %v3127
    %v3129 = vpop.f32.mrb[0].mxu0
    %v3130 = vpop.f32.mrb[0].mxu0
    %3131 = vdwg.mxu0
    %3132 = vmatprep.subr.bf16.mxu0 %v2166
    %3133 = vmatpush1.bf16.msra.mxu0 %v2165
    %3134 = vmatprep.subr.bf16.mxu0 %v2170
    %3135 = vmatpush1.bf16.msra.mxu0 %v2169
    %3136 = vmatprep.subr.bf16.mxu0 %v2174
    %3137 = vmatpush1.bf16.msra.mxu0 %v2173
    %3138 = vmatprep.subr.bf16.mxu0 %v2178
    %3139 = vmatpush1.bf16.msra.mxu0 %v2177
    %3140 = vmatprep.subr.bf16.mxu0 %v2182
    %3141 = vmatpush1.bf16.msra.mxu0 %v2181
    %3142 = vmatprep.subr.bf16.mxu0 %v2186
    %3143 = vmatpush1.bf16.msra.mxu0 %v2185
    %3144 = vmatprep.subr.bf16.mxu0 %v2190
    %3145 = vmatpush1.bf16.msra.mxu0 %v2189
    %3146 = vmatprep.subr.bf16.mxu0 %v2194
    %3147 = vmatpush1.bf16.msra.mxu0 %v2193
    %3148 = vmatprep.subr.bf16.mxu0 %v2198
    %3149 = vmatpush1.bf16.msra.mxu0 %v2197
    %3150 = vmatprep.subr.bf16.mxu0 %v2202
    %3151 = vmatpush1.bf16.msra.mxu0 %v2201
    %3152 = vmatprep.subr.bf16.mxu0 %v2206
    %3153 = vmatpush1.bf16.msra.mxu0 %v2205
    %3154 = vmatprep.subr.bf16.mxu0 %v2210
    %3155 = vmatpush1.bf16.msra.mxu0 %v2209
    %3156 = vmatprep.subr.bf16.mxu0 %v2214
    %3157 = vmatpush1.bf16.msra.mxu0 %v2213
    %3158 = vmatprep.subr.bf16.mxu0 %v2218
    %3159 = vmatpush1.bf16.msra.mxu0 %v2217
    %3160 = vmatprep.subr.bf16.mxu0 %v2222
    %3161 = vmatpush1.bf16.msra.mxu0 %v2221
    %3162 = vmatprep.subr.bf16.mxu0 %v2226
    %3163 = vmatpush1.bf16.msra.mxu0 %v2225
    %3164 = vmatprep.mubr.bf16.mxu0 %v3090
    %3165 = vmatmul.mubr.bf16.gmra.mrb[0].mxu0 %v2997
    %v3166 = vpop.f32.mrb[0].mxu0
    %v3167 = vadd.f32 %v375, %v3166
    %v3168 = vpop.f32.mrb[0].mxu0
    %v3169 = vadd.f32 %v379, %v3168
    %v3170 = vpop.f32.mrb[0].mxu0
    %v3171 = vpop.f32.mrb[0].mxu0
    %3172 = vdwg.mxu0
    %v3173 = vxor.u32 %v3126, 2147483648
    %v3174 = vmul.f32 %v3173, 1.442695
    %v3175 = vpow.pop %v3174
    %v3176 = vadd.f32 %v3175, 1.0
    %v3177 = vrcp.pop %v3176
    %v3178 = vmul.f32 1.0, %v3177
    %v3179 = vxor.u32 %v3128, 2147483648
    %v3180 = vmul.f32 %v3179, 1.442695
    %v3181 = vpow.pop %v3180
    %v3182 = vadd.f32 %v3181, 1.0
    %v3183 = vrcp.pop %v3182
    %v3184 = vmul.f32 1.0, %v3183
    %v3185 = vtanh.pop %v3167
    %v3186 = vxor.u32 %v3169, 2147483648
    %v3187 = vmul.f32 %v3186, 1.442695
    %v3188 = vpow.pop %v3187
    %v3189 = vadd.f32 %v3188, 1.0
    %v3190 = vrcp.pop %v3189
    %v3191 = vmul.f32 1.0, %v3190
    %v3192 = vmul.f32 %v3184, %v2994
    %v3193 = vmul.f32 %v3178, %v3185
    %v3194 = vadd.f32 %v3192, %v3193
    %v3195 = vtanh.pop %v3194
    %v3196 = vmul.f32 %v3191, %v3195
    %v3197 = vpack.c.bf16 %v3196, %v3196
    %3198 = vmatprep.subr.bf16.mxu0 0
    %3199 = vmatpush1.bf16.xpose.msra.mxu0 %v1963
    %3200 = vmatprep.subr.bf16.mxu0 0
    %3201 = vmatpush1.bf16.xpose.msra.mxu0 %v1964
    %3202 = vmatprep.subr.bf16.mxu0 0
    %3203 = vmatpush1.bf16.xpose.msra.mxu0 %v1965
    %3204 = vmatprep.subr.bf16.mxu0 0
    %3205 = vmatpush1.bf16.xpose.msra.mxu0 %v1966
    %3206 = vmatprep.subr.bf16.mxu0 0
    %3207 = vmatpush1.bf16.xpose.msra.mxu0 %v1967
    %3208 = vmatprep.subr.bf16.mxu0 0
    %3209 = vmatpush1.bf16.xpose.msra.mxu0 %v1968
    %3210 = vmatprep.subr.bf16.mxu0 0
    %3211 = vmatpush1.bf16.xpose.msra.mxu0 %v1969
    %3212 = vmatprep.subr.bf16.mxu0 0
    %3213 = vmatpush1.bf16.xpose.msra.mxu0 %v1970
    %3214 = vmatprep.subr.bf16.mxu0 0
    %3215 = vmatpush1.bf16.xpose.msra.mxu0 0
    %3216 = vmatprep.subr.bf16.mxu0 0
    %3217 = vmatpush1.bf16.xpose.msra.mxu0 0
    %3218 = vmatprep.subr.bf16.mxu0 0
    %3219 = vmatpush1.bf16.xpose.msra.mxu0 0
    %3220 = vmatprep.subr.bf16.mxu0 0
    %3221 = vmatpush1.bf16.xpose.msra.mxu0 0
    %3222 = vmatprep.subr.bf16.mxu0 0
    %3223 = vmatpush1.bf16.xpose.msra.mxu0 0
    %3224 = vmatprep.subr.bf16.mxu0 0
    %3225 = vmatpush1.bf16.xpose.msra.mxu0 0
    %3226 = vmatprep.subr.bf16.mxu0 0
    %3227 = vmatpush1.bf16.xpose.msra.mxu0 0
    %3228 = vmatprep.subr.bf16.mxu0 0
    %3229 = vmatpush1.bf16.xpose.msra.mxu0 0
    %3230 = vmatprep.mubr.bf16.mxu0 0
    %3231 = vmatmul.mubr.bf16.gmra.mrb[0].mxu0 %v3197
    %v3232 = vpop.f32.mrb[0].mxu0
    %v3233 = vadd.f32 %v397, %v3232
    %v3234 = vpop.f32.mrb[0].mxu0
    %v3235 = vpop.f32.mrb[0].mxu0
    %v3236 = vpop.f32.mrb[0].mxu0
    %3237 = vdwg.mxu0
    %3238 = vmax.xlane.f32.xlu0 %v3233
    %v3239 = vpop.xlane.xlu0 %3238
    %v3240 = vsub.f32 %v3233, %v3239
    %v3241 = vmul.f32 %v3240, 1.442695
    %v3242 = vpow.pop %v3241
    %v3243 = vmul.f32 %v3242, %v201
    %3244 = vadd.xlane.f32.xlu0 %v3243
    %v3245 = vpop.xlane.xlu0 %3244
    %v3246 = vadd.f32 %v3245, 1e-16
    %v3247 = vrcp.pop %v3246
    %v3248 = vmul.f32 %v3243, %v3247
    %v3249 = vpack.c.bf16 %v3248, %v3248
    %3250 = vmatprep.subr.bf16.mxu0 0
    %3251 = vmatpush1.bf16.msra.mxu0 %v1963
    %3252 = vmatprep.subr.bf16.mxu0 0
    %3253 = vmatpush1.bf16.msra.mxu0 %v1964
    %3254 = vmatprep.subr.bf16.mxu0 0
    %3255 = vmatpush1.bf16.msra.mxu0 %v1965
    %3256 = vmatprep.subr.bf16.mxu0 0
    %3257 = vmatpush1.bf16.msra.mxu0 %v1966
    %3258 = vmatprep.subr.bf16.mxu0 0
    %3259 = vmatpush1.bf16.msra.mxu0 %v1967
    %3260 = vmatprep.subr.bf16.mxu0 0
    %3261 = vmatpush1.bf16.msra.mxu0 %v1968
    %3262 = vmatprep.subr.bf16.mxu0 0
    %3263 = vmatpush1.bf16.msra.mxu0 %v1969
    %3264 = vmatprep.subr.bf16.mxu0 0
    %3265 = vmatpush1.bf16.msra.mxu0 %v1970
    %3266 = vmatprep.subr.bf16.mxu0 0
    %3267 = vmatpush1.bf16.msra.mxu0 0
    %3268 = vmatprep.subr.bf16.mxu0 0
    %3269 = vmatpush1.bf16.msra.mxu0 0
    %3270 = vmatprep.subr.bf16.mxu0 0
    %3271 = vmatpush1.bf16.msra.mxu0 0
    %3272 = vmatprep.subr.bf16.mxu0 0
    %3273 = vmatpush1.bf16.msra.mxu0 0
    %3274 = vmatprep.subr.bf16.mxu0 0
    %3275 = vmatpush1.bf16.msra.mxu0 0
    %3276 = vmatprep.subr.bf16.mxu0 0
    %3277 = vmatpush1.bf16.msra.mxu0 0
    %3278 = vmatprep.subr.bf16.mxu0 0
    %3279 = vmatpush1.bf16.msra.mxu0 0
    %3280 = vmatprep.subr.bf16.mxu0 0
    %3281 = vmatpush1.bf16.msra.mxu0 0
    %3282 = vmatprep.mubr.bf16.mxu0 0
    %3283 = vmatmul.mubr.bf16.gmra.mrb[0].mxu0 %v3249
    %v3284 = vpop.f32.mrb[0].mxu0
    %v3285 = vadd.f32 0.0, %v3284
    %v3286 = vpop.f32.mrb[0].mxu0
    %v3287 = vpop.f32.mrb[0].mxu0
    %v3288 = vpop.f32.mrb[0].mxu0
    %3289 = vdwg.mxu0
    %v3290 = vpack.c.bf16 %v3285, %v3285
    %3291 = vmatprep.subr.bf16.mxu0 %v2164
    %3292 = vmatpush1.bf16.msra.mxu0 %v2163
    %3293 = vmatprep.subr.bf16.mxu0 %v2168
    %3294 = vmatpush1.bf16.msra.mxu0 %v2167
    %3295 = vmatprep.subr.bf16.mxu0 %v2172
    %3296 = vmatpush1.bf16.msra.mxu0 %v2171
    %3297 = vmatprep.subr.bf16.mxu0 %v2176
    %3298 = vmatpush1.bf16.msra.mxu0 %v2175
    %3299 = vmatprep.subr.bf16.mxu0 %v2180
    %3300 = vmatpush1.bf16.msra.mxu0 %v2179
    %3301 = vmatprep.subr.bf16.mxu0 %v2184
    %3302 = vmatpush1.bf16.msra.mxu0 %v2183
    %3303 = vmatprep.subr.bf16.mxu0 %v2188
    %3304 = vmatpush1.bf16.msra.mxu0 %v2187
    %3305 = vmatprep.subr.bf16.mxu0 %v2192
    %3306 = vmatpush1.bf16.msra.mxu0 %v2191
    %3307 = vmatprep.subr.bf16.mxu0 %v2196
    %3308 = vmatpush1.bf16.msra.mxu0 %v2195
    %3309 = vmatprep.subr.bf16.mxu0 %v2200
    %3310 = vmatpush1.bf16.msra.mxu0 %v2199
    %3311 = vmatprep.subr.bf16.mxu0 %v2204
    %3312 = vmatpush1.bf16.msra.mxu0 %v2203
    %3313 = vmatprep.subr.bf16.mxu0 %v2208
    %3314 = vmatpush1.bf16.msra.mxu0 %v2207
    %3315 = vmatprep.subr.bf16.mxu0 %v2212
    %3316 = vmatpush1.bf16.msra.mxu0 %v2211
    %3317 = vmatprep.subr.bf16.mxu0 %v2216
    %3318 = vmatpush1.bf16.msra.mxu0 %v2215
    %3319 = vmatprep.subr.bf16.mxu0 %v2220
    %3320 = vmatpush1.bf16.msra.mxu0 %v2219
    %3321 = vmatprep.subr.bf16.mxu0 %v2224
    %3322 = vmatpush1.bf16.msra.mxu0 %v2223
    %3323 = vmatprep.mubr.bf16.mxu0 %v3290
    %3324 = vmatmul.mubr.bf16.gmra.mrb[0].mxu0 %v3197
    %v3325 = vpop.f32.mrb[0].mxu0
    %v3326 = vadd.f32 %v367, %v3325
    %v3327 = vpop.f32.mrb[0].mxu0
    %v3328 = vadd.f32 %v371, %v3327
    %v3329 = vpop.f32.mrb[0].mxu0
    %v3330 = vpop.f32.mrb[0].mxu0
    %3331 = vdwg.mxu0
    %3332 = vmatprep.subr.bf16.mxu0 %v2166
    %3333 = vmatpush1.bf16.msra.mxu0 %v2165
    %3334 = vmatprep.subr.bf16.mxu0 %v2170
    %3335 = vmatpush1.bf16.msra.mxu0 %v2169
    %3336 = vmatprep.subr.bf16.mxu0 %v2174
    %3337 = vmatpush1.bf16.msra.mxu0 %v2173
    %3338 = vmatprep.subr.bf16.mxu0 %v2178
    %3339 = vmatpush1.bf16.msra.mxu0 %v2177
    %3340 = vmatprep.subr.bf16.mxu0 %v2182
    %3341 = vmatpush1.bf16.msra.mxu0 %v2181
    %3342 = vmatprep.subr.bf16.mxu0 %v2186
    %3343 = vmatpush1.bf16.msra.mxu0 %v2185
    %3344 = vmatprep.subr.bf16.mxu0 %v2190
    %3345 = vmatpush1.bf16.msra.mxu0 %v2189
    %3346 = vmatprep.subr.bf16.mxu0 %v2194
    %3347 = vmatpush1.bf16.msra.mxu0 %v2193
    %3348 = vmatprep.subr.bf16.mxu0 %v2198
    %3349 = vmatpush1.bf16.msra.mxu0 %v2197
    %3350 = vmatprep.subr.bf16.mxu0 %v2202
    %3351 = vmatpush1.bf16.msra.mxu0 %v2201
    %3352 = vmatprep.subr.bf16.mxu0 %v2206
    %3353 = vmatpush1.bf16.msra.mxu0 %v2205
    %3354 = vmatprep.subr.bf16.mxu0 %v2210
    %3355 = vmatpush1.bf16.msra.mxu0 %v2209
    %3356 = vmatprep.subr.bf16.mxu0 %v2214
    %3357 = vmatpush1.bf16.msra.mxu0 %v2213
    %3358 = vmatprep.subr.bf16.mxu0 %v2218
    %3359 = vmatpush1.bf16.msra.mxu0 %v2217
    %3360 = vmatprep.subr.bf16.mxu0 %v2222
    %3361 = vmatpush1.bf16.msra.mxu0 %v2221
    %3362 = vmatprep.subr.bf16.mxu0 %v2226
    %3363 = vmatpush1.bf16.msra.mxu0 %v2225
    %3364 = vmatprep.mubr.bf16.mxu0 %v3290
    %3365 = vmatmul.mubr.bf16.gmra.mrb[0].mxu0 %v3197
    %v3366 = vpop.f32.mrb[0].mxu0
    %v3367 = vadd.f32 %v375, %v3366
    %v3368 = vpop.f32.mrb[0].mxu0
    %v3369 = vadd.f32 %v379, %v3368
    %v3370 = vpop.f32.mrb[0].mxu0
    %v3371 = vpop.f32.mrb[0].mxu0
    %3372 = vdwg.mxu0
    %v3373 = vxor.u32 %v3326, 2147483648
    %v3374 = vmul.f32 %v3373, 1.442695
    %v3375 = vpow.pop %v3374
    %v3376 = vadd.f32 %v3375, 1.0
    %v3377 = vrcp.pop %v3376
    %v3378 = vmul.f32 1.0, %v3377
    %v3379 = vxor.u32 %v3328, 2147483648
    %v3380 = vmul.f32 %v3379, 1.442695
    %v3381 = vpow.pop %v3380
    %v3382 = vadd.f32 %v3381, 1.0
    %v3383 = vrcp.pop %v3382
    %v3384 = vmul.f32 1.0, %v3383
    %v3385 = vtanh.pop %v3367
    %v3386 = vxor.u32 %v3369, 2147483648
    %v3387 = vmul.f32 %v3386, 1.442695
    %v3388 = vpow.pop %v3387
    %v3389 = vadd.f32 %v3388, 1.0
    %v3390 = vrcp.pop %v3389
    %v3391 = vmul.f32 1.0, %v3390
    %v3392 = vmul.f32 %v3384, %v3194
    %v3393 = vmul.f32 %v3378, %v3385
    %v3394 = vadd.f32 %v3392, %v3393
    %v3395 = vtanh.pop %v3394
    %v3396 = vmul.f32 %v3391, %v3395
    %v3397 = vpack.c.bf16 %v3396, %v3396
    %3398 = vmatprep.subr.bf16.mxu0 0
    %3399 = vmatpush1.bf16.xpose.msra.mxu0 %v1963
    %3400 = vmatprep.subr.bf16.mxu0 0
    %3401 = vmatpush1.bf16.xpose.msra.mxu0 %v1964
    %3402 = vmatprep.subr.bf16.mxu0 0
    %3403 = vmatpush1.bf16.xpose.msra.mxu0 %v1965
    %3404 = vmatprep.subr.bf16.mxu0 0
    %3405 = vmatpush1.bf16.xpose.msra.mxu0 %v1966
    %3406 = vmatprep.subr.bf16.mxu0 0
    %3407 = vmatpush1.bf16.xpose.msra.mxu0 %v1967
    %3408 = vmatprep.subr.bf16.mxu0 0
    %3409 = vmatpush1.bf16.xpose.msra.mxu0 %v1968
    %3410 = vmatprep.subr.bf16.mxu0 0
    %3411 = vmatpush1.bf16.xpose.msra.mxu0 %v1969
    %3412 = vmatprep.subr.bf16.mxu0 0
    %3413 = vmatpush1.bf16.xpose.msra.mxu0 %v1970
    %3414 = vmatprep.subr.bf16.mxu0 0
    %3415 = vmatpush1.bf16.xpose.msra.mxu0 0
    %3416 = vmatprep.subr.bf16.mxu0 0
    %3417 = vmatpush1.bf16.xpose.msra.mxu0 0
    %3418 = vmatprep.subr.bf16.mxu0 0
    %3419 = vmatpush1.bf16.xpose.msra.mxu0 0
    %3420 = vmatprep.subr.bf16.mxu0 0
    %3421 = vmatpush1.bf16.xpose.msra.mxu0 0
    %3422 = vmatprep.subr.bf16.mxu0 0
    %3423 = vmatpush1.bf16.xpose.msra.mxu0 0
    %3424 = vmatprep.subr.bf16.mxu0 0
    %3425 = vmatpush1.bf16.xpose.msra.mxu0 0
    %3426 = vmatprep.subr.bf16.mxu0 0
    %3427 = vmatpush1.bf16.xpose.msra.mxu0 0
    %3428 = vmatprep.subr.bf16.mxu0 0
    %3429 = vmatpush1.bf16.xpose.msra.mxu0 0
    %3430 = vmatprep.mubr.bf16.mxu0 0
    %3431 = vmatmul.mubr.bf16.gmra.mrb[0].mxu0 %v3397
    %v3432 = vpop.f32.mrb[0].mxu0
    %v3433 = vadd.f32 %v397, %v3432
    %v3434 = vpop.f32.mrb[0].mxu0
    %v3435 = vpop.f32.mrb[0].mxu0
    %v3436 = vpop.f32.mrb[0].mxu0
    %3437 = vdwg.mxu0
    %3438 = vmax.xlane.f32.xlu0 %v3433
    %v3439 = vpop.xlane.xlu0 %3438
    %v3440 = vsub.f32 %v3433, %v3439
    %v3441 = vmul.f32 %v3440, 1.442695
    %v3442 = vpow.pop %v3441
    %v3443 = vmul.f32 %v3442, %v201
    %3444 = vadd.xlane.f32.xlu0 %v3443
    %v3445 = vpop.xlane.xlu0 %3444
    %v3446 = vadd.f32 %v3445, 1e-16
    %v3447 = vrcp.pop %v3446
    %v3448 = vmul.f32 %v3443, %v3447
    %v3449 = vpack.c.bf16 %v3448, %v3448
    %3450 = vmatprep.subr.bf16.mxu0 0
    %3451 = vmatpush1.bf16.msra.mxu0 %v1963
    %3452 = vmatprep.subr.bf16.mxu0 0
    %3453 = vmatpush1.bf16.msra.mxu0 %v1964
    %3454 = vmatprep.subr.bf16.mxu0 0
    %3455 = vmatpush1.bf16.msra.mxu0 %v1965
    %3456 = vmatprep.subr.bf16.mxu0 0
    %3457 = vmatpush1.bf16.msra.mxu0 %v1966
    %3458 = vmatprep.subr.bf16.mxu0 0
    %3459 = vmatpush1.bf16.msra.mxu0 %v1967
    %3460 = vmatprep.subr.bf16.mxu0 0
    %3461 = vmatpush1.bf16.msra.mxu0 %v1968
    %3462 = vmatprep.subr.bf16.mxu0 0
    %3463 = vmatpush1.bf16.msra.mxu0 %v1969
    %3464 = vmatprep.subr.bf16.mxu0 0
    %3465 = vmatpush1.bf16.msra.mxu0 %v1970
    %3466 = vmatprep.subr.bf16.mxu0 0
    %3467 = vmatpush1.bf16.msra.mxu0 0
    %3468 = vmatprep.subr.bf16.mxu0 0
    %3469 = vmatpush1.bf16.msra.mxu0 0
    %3470 = vmatprep.subr.bf16.mxu0 0
    %3471 = vmatpush1.bf16.msra.mxu0 0
    %3472 = vmatprep.subr.bf16.mxu0 0
    %3473 = vmatpush1.bf16.msra.mxu0 0
    %3474 = vmatprep.subr.bf16.mxu0 0
    %3475 = vmatpush1.bf16.msra.mxu0 0
    %3476 = vmatprep.subr.bf16.mxu0 0
    %3477 = vmatpush1.bf16.msra.mxu0 0
    %3478 = vmatprep.subr.bf16.mxu0 0
    %3479 = vmatpush1.bf16.msra.mxu0 0
    %3480 = vmatprep.subr.bf16.mxu0 0
    %3481 = vmatpush1.bf16.msra.mxu0 0
    %3482 = vmatprep.mubr.bf16.mxu0 0
    %3483 = vmatmul.mubr.bf16.gmra.mrb[0].mxu0 %v3449
    %v3484 = vpop.f32.mrb[0].mxu0
    %v3485 = vadd.f32 0.0, %v3484
    %v3486 = vpop.f32.mrb[0].mxu0
    %v3487 = vpop.f32.mrb[0].mxu0
    %v3488 = vpop.f32.mrb[0].mxu0
    %3489 = vdwg.mxu0
    %v3490 = vpack.c.bf16 %v3485, %v3485
    %v3523 = vunpack.c.l.b16 %v301
    %v3524 = vunpack.c.l.b16 %v302
    %v3525 = vunpack.c.l.b16 %v303
    %v3526 = vunpack.c.l.b16 %v304
    %v3527 = vunpack.c.l.b16 %v305
    %v3528 = vunpack.c.l.b16 %v306
    %v3529 = vunpack.c.l.b16 %v307
    %v3530 = vunpack.c.l.b16 %v308
    %v3531 = vunpack.c.l.b16 %v309
    %v3532 = vunpack.c.l.b16 %v310
    %v3533 = vunpack.c.l.b16 %v311
    %v3534 = vunpack.c.l.b16 %v312
    %v3535 = vunpack.c.l.b16 %v313
    %v3536 = vunpack.c.l.b16 %v314
    %v3537 = vunpack.c.l.b16 %v315
    %v3538 = vunpack.c.l.b16 %v316
    %v3539 = vunpack.c.l.b16 %v317
    %v3540 = vunpack.c.l.b16 %v318
    %v3541 = vunpack.c.l.b16 %v319
    %v3542 = vunpack.c.l.b16 %v320
    %v3543 = vunpack.c.l.b16 %v321
    %v3544 = vunpack.c.l.b16 %v322
    %v3545 = vunpack.c.l.b16 %v323
    %v3546 = vunpack.c.l.b16 %v324
    %v3547 = vunpack.c.l.b16 %v325
    %v3548 = vunpack.c.l.b16 %v326
    %v3549 = vunpack.c.l.b16 %v327
    %v3550 = vunpack.c.l.b16 %v328
    %v3551 = vunpack.c.l.b16 %v329
    %v3552 = vunpack.c.l.b16 %v330
    %v3553 = vunpack.c.l.b16 %v331
    %v3554 = vunpack.c.l.b16 %v332
    %v3555 = vpack.c.b16 %v3524, %v3523
    %v3556 = vpack.c.b16 %v3526, %v3525
    %v3557 = vpack.c.b16 %v3528, %v3527
    %v3558 = vpack.c.b16 %v3530, %v3529
    %v3559 = vpack.c.b16 %v3532, %v3531
    %v3560 = vpack.c.b16 %v3534, %v3533
    %v3561 = vpack.c.b16 %v3536, %v3535
    %v3562 = vpack.c.b16 %v3538, %v3537
    %v3563 = vpack.c.b16 %v3540, %v3539
    %v3564 = vpack.c.b16 %v3542, %v3541
    %v3565 = vpack.c.b16 %v3544, %v3543
    %v3566 = vpack.c.b16 %v3546, %v3545
    %v3567 = vpack.c.b16 %v3548, %v3547
    %v3568 = vpack.c.b16 %v3550, %v3549
    %v3569 = vpack.c.b16 %v3552, %v3551
    %v3570 = vpack.c.b16 %v3554, %v3553
    %3587 = vmatprep.subr.bf16.mxu0 0
    %3588 = vmatpush1.bf16.msra.mxu0 %v3555
    %3589 = vmatprep.subr.bf16.mxu0 0
    %3590 = vmatpush1.bf16.msra.mxu0 %v3556
    %3591 = vmatprep.subr.bf16.mxu0 0
    %3592 = vmatpush1.bf16.msra.mxu0 %v3557
    %3593 = vmatprep.subr.bf16.mxu0 0
    %3594 = vmatpush1.bf16.msra.mxu0 %v3558
    %3595 = vmatprep.subr.bf16.mxu0 0
    %3596 = vmatpush1.bf16.msra.mxu0 %v3559
    %3597 = vmatprep.subr.bf16.mxu0 0
    %3598 = vmatpush1.bf16.msra.mxu0 %v3560
    %3599 = vmatprep.subr.bf16.mxu0 0
    %3600 = vmatpush1.bf16.msra.mxu0 %v3561
    %3601 = vmatprep.subr.bf16.mxu0 0
    %3602 = vmatpush1.bf16.msra.mxu0 %v3562
    %3603 = vmatprep.subr.bf16.mxu0 0
    %3604 = vmatpush1.bf16.msra.mxu0 %v3563
    %3605 = vmatprep.subr.bf16.mxu0 0
    %3606 = vmatpush1.bf16.msra.mxu0 %v3564
    %3607 = vmatprep.subr.bf16.mxu0 0
    %3608 = vmatpush1.bf16.msra.mxu0 %v3565
    %3609 = vmatprep.subr.bf16.mxu0 0
    %3610 = vmatpush1.bf16.msra.mxu0 %v3566
    %3611 = vmatprep.subr.bf16.mxu0 0
    %3612 = vmatpush1.bf16.msra.mxu0 %v3567
    %3613 = vmatprep.subr.bf16.mxu0 0
    %3614 = vmatpush1.bf16.msra.mxu0 %v3568
    %3615 = vmatprep.subr.bf16.mxu0 0
    %3616 = vmatpush1.bf16.msra.mxu0 %v3569
    %3617 = vmatprep.subr.bf16.mxu0 0
    %3618 = vmatpush1.bf16.msra.mxu0 %v3570
    %3619 = vmatprep.mubr.bf16.mxu0 %v3490
    %3620 = vmatmul.mubr.bf16.gmra.mrb[0].mxu0 %v3397
    %v3621 = vpop.f32.mrb[0].mxu0
    %v3622 = vadd.f32 %v388, %v3621
    %v3623 = vpop.f32.mrb[0].mxu0
    %v3624 = vpop.f32.mrb[0].mxu0
    %v3625 = vpop.f32.mrb[0].mxu0
    %3626 = vdwg.mxu0
    %v3627 = vmax.f32 %v3622, 0.0
    %v3628 = vpack.c.bf16 %v3627, %v3627
    %v3645 = vunpack.c.l.b16 %v334
    %v3646 = vunpack.c.l.b16 %v335
    %v3647 = vunpack.c.l.b16 %v336
    %v3648 = vunpack.c.l.b16 %v337
    %v3649 = vunpack.c.l.b16 %v338
    %v3650 = vunpack.c.l.b16 %v339
    %v3651 = vunpack.c.l.b16 %v340
    %v3652 = vunpack.c.l.b16 %v341
    %v3653 = vunpack.c.l.b16 %v342
    %v3654 = vunpack.c.l.b16 %v343
    %v3655 = vunpack.c.l.b16 %v344
    %v3656 = vunpack.c.l.b16 %v345
    %v3657 = vunpack.c.l.b16 %v346
    %v3658 = vunpack.c.l.b16 %v347
    %v3659 = vunpack.c.l.b16 %v348
    %v3660 = vunpack.c.l.b16 %v349
    %v3661 = vpack.c.b16 %v3646, %v3645
    %v3662 = vpack.c.b16 %v3648, %v3647
    %v3663 = vpack.c.b16 %v3650, %v3649
    %v3664 = vpack.c.b16 %v3652, %v3651
    %v3665 = vpack.c.b16 %v3654, %v3653
    %v3666 = vpack.c.b16 %v3656, %v3655
    %v3667 = vpack.c.b16 %v3658, %v3657
    %v3668 = vpack.c.b16 %v3660, %v3659
    %3677 = vmatprep.subr.bf16.mxu0 0
    %3678 = vmatpush1.bf16.msra.mxu0 %v3661
    %3679 = vmatprep.subr.bf16.mxu0 0
    %3680 = vmatpush1.bf16.msra.mxu0 %v3662
    %3681 = vmatprep.subr.bf16.mxu0 0
    %3682 = vmatpush1.bf16.msra.mxu0 %v3663
    %3683 = vmatprep.subr.bf16.mxu0 0
    %3684 = vmatpush1.bf16.msra.mxu0 %v3664
    %3685 = vmatprep.subr.bf16.mxu0 0
    %3686 = vmatpush1.bf16.msra.mxu0 %v3665
    %3687 = vmatprep.subr.bf16.mxu0 0
    %3688 = vmatpush1.bf16.msra.mxu0 %v3666
    %3689 = vmatprep.subr.bf16.mxu0 0
    %3690 = vmatpush1.bf16.msra.mxu0 %v3667
    %3691 = vmatprep.subr.bf16.mxu0 0
    %3692 = vmatpush1.bf16.msra.mxu0 %v3668
    %3693 = vmatprep.subr.bf16.mxu0 0
    %3694 = vmatpush1.bf16.msra.mxu0 0
    %3695 = vmatprep.subr.bf16.mxu0 0
    %3696 = vmatpush1.bf16.msra.mxu0 0
    %3697 = vmatprep.subr.bf16.mxu0 0
    %3698 = vmatpush1.bf16.msra.mxu0 0
    %3699 = vmatprep.subr.bf16.mxu0 0
    %3700 = vmatpush1.bf16.msra.mxu0 0
    %3701 = vmatprep.subr.bf16.mxu0 0
    %3702 = vmatpush1.bf16.msra.mxu0 0
    %3703 = vmatprep.subr.bf16.mxu0 0
    %3704 = vmatpush1.bf16.msra.mxu0 0
    %3705 = vmatprep.subr.bf16.mxu0 0
    %3706 = vmatpush1.bf16.msra.mxu0 0
    %3707 = vmatprep.subr.bf16.mxu0 0
    %3708 = vmatpush1.bf16.msra.mxu0 0
    %3709 = vmatprep.mubr.bf16.mxu0 0
    %3710 = vmatmul.mubr.bf16.gmra.mrb[0].mxu0 %v3628
    %v3711 = vpop.f32.mrb[0].mxu0
    %v3712 = vadd.f32 %v394, %v3711
    %v3713 = vpop.f32.mrb[0].mxu0
    %v3714 = vpop.f32.mrb[0].mxu0
    %v3715 = vpop.f32.mrb[0].mxu0
    %3716 = vdwg.mxu0
    %3717 = vst [vmem:[#allocation16] sm:$0xff] %v3712
    // Predicated region
    $region86: #{gcn_forward.1} parent=1 // pred_check
      _
    $region87: #{gcn_forward.1} parent=1 // pred_check_branch
      %3719 = sbr.rel (0) target = $region89
    $region88: #{gcn_forward.1} parent=1 // pred_region
      %s3721 = ssub.s32 128, 128
      %3722 = vsyncadd [#allocation4], %s3721
      %s3724 = sshll.u32 [#allocation16], 4
      %s3725 = int_to_ptr.vmem [resolvable:$true] %s3724
      %3727 = dma.vmem_to_hbm [thread:$0]  %s3725, 128, %s13, [#allocation4]
    $region89: #{gcn_forward.1} parent=1 // pred_fallthru
      _
    // Predicated region
    $region90: #{gcn_forward.1} parent=1 // pred_check
      _
    $region91: #{gcn_forward.1} parent=1 // pred_check_branch
      %3729 = sbr.rel (0) target = $region93
    $region92: #{gcn_forward.1} parent=1 // pred_region
      %3730 = dma.done [#allocation4], 128
    $region93: #{gcn_forward.1} parent=1 // pred_fallthru
      _
    %3731 = vsyncpa [#allocation3], 1
    %3732 = vsyncpa [#allocation6], 1
    %3733 = vsyncpa [#allocation9], 1
    %3734 = vsyncpa [#allocation12], 1
    %3735 = vsyncpa [#allocation15], 1
    %3736 = vsyncpa [#allocation4], 1

</llo_original>
